<compile_context>
chip_gen: v6e
topology: v6e:2x2x1
jax: 0.10.0
libtpu: 0.0.40
codegen_flags: <defaults>
</compile_context>

<pallas_src>
import jax
import jax.numpy as jnp
import numpy as np
from jax.experimental import pallas as pl
from jax.experimental.pallas import tpu as pltpu


def import_pytorch_lstm_matrix(w_pt):
    """Convert a PyTorch nn.LSTM weight (4H, in_features), gate order
    (i, f, g, o), into this kernel's transposed (in_features, 4H) layout with
    gate order (i, f, o, g).  Use this when loading real PyTorch weights."""
    w = jnp.asarray(w_pt)
    i_, f_, g_, o_ = jnp.split(w, 4, axis=0)
    return jnp.concatenate([i_, f_, o_, g_], axis=0).T


def init_first_layer_params(key, node_in, window_size, hidden_size, lstm_layers):
    """Deterministic params matching nn.LSTM shapes.

    Layout: weights transposed to (in_features, 4H), gate order (i, f, o, g)
    (PyTorch uses (i, f, g, o) -- see import_pytorch_lstm_matrix).  Biases are
    b_ih + b_hh fused.  Layers >= 1 keep W_ih and W_hh SEPARATE so the kernel
    can issue two K=H dots per step instead of a concat + fused K=2H dot.
    """
    F = node_in // window_size
    H = hidden_size * 4
    bound = 1.0 / np.sqrt(H)
    keys = jax.random.split(key, 4 * lstm_layers)

    def u(k_, shape):
        return jax.random.uniform(k_, shape, jnp.float32, -bound, bound)

    wih0 = u(keys[0], (F, 4 * H))                          # weight_ih_l0.T
    whh0 = u(keys[1], (H, 4 * H))                          # weight_hh_l0.T
    b0 = u(keys[2], (1, 4 * H)) + u(keys[3], (1, 4 * H))   # bias_ih + bias_hh

    if lstm_layers > 1:
        wih_r = jnp.stack([u(keys[4 * l + 0], (H, 4 * H))
                           for l in range(1, lstm_layers)])          # (L-1,H,4H)
        whh_r = jnp.stack([u(keys[4 * l + 1], (H, 4 * H))
                           for l in range(1, lstm_layers)])          # (L-1,H,4H)
        b_r = jnp.stack([u(keys[4 * l + 2], (1, 4 * H))
                         + u(keys[4 * l + 3], (1, 4 * H))
                         for l in range(1, lstm_layers)])            # (L-1,1,4H)
    else:
        wih_r = whh_r = b_r = None                                   # not DMA'd
    return wih0, whh0, b0, wih_r, whh_r, b_r


def first_layer_forward(x, edge_index, edge_attr, params, *,
                        window_size, hidden_size, lstm_layers):
    """Pallas implementation of FirstLayer.forward (LSTM branch).

    edge_index / edge_attr mirror the PyTorch signature but are unused by the
    LSTM branch, exactly as in the reference module.
    """
    del edge_index, edge_attr
    N, node_in = x.shape
    assert node_in % window_size == 0, "node_in must be divisible by window_size"
    T = window_size
    F = node_in // window_size
    H = hidden_size * 4
    L = lstm_layers
    assert H % 128 == 0, (
        "hidden_size*4 must be a multiple of 128 for lane-aligned gate slices")

    wih0, whh0, b0, wih_r, whh_r, b_r = params

    # --- batch tiling: pad N to a multiple of 16 (fills a (16,128) bf16 vreg)
    # and tile in blocks of up to 256 rows (v6e/v7x MXU height) over a
    # parallel grid axis.
    if N >= 256:
        TN = 256
    else:
        TN = ((N + 15) // 16) * 16
    N_pad = ((N + TN - 1) // TN) * TN
    num_tiles = N_pad // TN

    x_pad = x if N_pad == N else jnp.zeros((N_pad, node_in), x.dtype).at[:N].set(x)

    # Hoisted layer-0 input projection (+ bias) done in the XLA wrapper, fused
    # with the reshape/transpose.  Same bf16-operand / f32-accumulation
    # numerics as the in-kernel matmuls.  Time-major (T, N_pad, 4H).
    x_tm = x_pad.reshape(N_pad, T, F).transpose(1, 0, 2)              # (T,N_pad,F)
    gates_x = (jnp.dot(x_tm.reshape(T * N_pad, F).astype(jnp.bfloat16),
                       wih0.astype(jnp.bfloat16),
                       preferred_element_type=jnp.float32)
               .reshape(T, N_pad, 4 * H) + b0)                        # f32

    def kernel(gx_ref, whh0_ref, *rest):
        if L > 1:
            wihr_ref, whhr_ref, br_ref, out_ref = rest
        else:
            (out_ref,) = rest

        def cell(gates, c_prev):
            # gate layout [i | f | o | g]: one sigmoid slab + one tanh (EUP).
            sig = jax.nn.sigmoid(gates[:, :3 * H])
            i_g = sig[:, 0 * H:1 * H]
            f_g = sig[:, 1 * H:2 * H]
            o_g = sig[:, 2 * H:3 * H]
            g_g = jnp.tanh(gates[:, 3 * H:])
            c_new = f_g * c_prev + i_g * g_g
            h_new = o_g * jnp.tanh(c_new)
            return h_new, c_new

        h = [jnp.zeros((TN, H), jnp.float32) for _ in range(L)]
        c = [jnp.zeros((TN, H), jnp.float32) for _ in range(L)]

        # Static unroll over time (T is small; the recurrence is inherently
        # sequential).  Each step reads a fresh (TN, 4H) slab from the input
        # ref and fresh weight values, keeping vreg live ranges short.
        for t in range(T):
            gates0 = gx_ref[t] + jnp.dot(h[0].astype(jnp.bfloat16),
                                         whh0_ref[...],
                                         preferred_element_type=jnp.float32)
            h[0], c[0] = cell(gates0, c[0])
            layer_in = h[0]
            for l in range(1, L):                         # static layer unroll
                # Two K=H dots into one f32 accumulator -- no per-step concat.
                gates = (jnp.dot(layer_in.astype(jnp.bfloat16), wihr_ref[l - 1],
                                 preferred_element_type=jnp.float32)
                         + jnp.dot(h[l].astype(jnp.bfloat16), whhr_ref[l - 1],
                                   preferred_element_type=jnp.float32)
                         + br_ref[l - 1])
                h[l], c[l] = cell(gates, c[l])
                layer_in = h[l]

        out_ref[...] = layer_in.astype(out_ref.dtype)     # h_n[-1, :, :]

    # Weight specs use constant index maps: VMEM-resident, not re-DMA'd per tile.
    in_specs = [
        pl.BlockSpec((T, TN, 4 * H), lambda i: (0, i, 0)),            # gates_x
        pl.BlockSpec((H, 4 * H), lambda i: (0, 0)),                   # whh0
    ]
    operands = [gates_x, whh0.astype(jnp.bfloat16)]
    if L > 1:
        in_specs += [
            pl.BlockSpec((L - 1, H, 4 * H), lambda i: (0, 0, 0)),     # wih_r
            pl.BlockSpec((L - 1, H, 4 * H), lambda i: (0, 0, 0)),     # whh_r
            pl.BlockSpec((L - 1, 1, 4 * H), lambda i: (0, 0, 0)),     # b_r
        ]
        operands += [wih_r.astype(jnp.bfloat16), whh_r.astype(jnp.bfloat16), b_r]

    # Explicit VMEM budget: blocks x2 (double buffering) + headroom, capped at
    # the v7x physical 64 MiB (beyond that, weights must be streamed -- TODO).
    bytes_gx = T * TN * 4 * H * 4
    bytes_out = TN * H * 4
    bytes_w = H * 4 * H * 2
    if L > 1:
        bytes_w += 2 * (L - 1) * H * 4 * H * 2 + (L - 1) * 4 * H * 4
    vmem_bytes = min(2 * (bytes_gx + bytes_out + bytes_w) + (4 << 20), 64 << 20)

    out_pad = pl.pallas_call(
        kernel,
        out_shape=jax.ShapeDtypeStruct((N_pad, H), jnp.float32),
        grid=(num_tiles,),
        in_specs=in_specs,
        out_specs=pl.BlockSpec((TN, H), lambda i: (i, 0)),
        compiler_params=pltpu.CompilerParams(
            dimension_semantics=("parallel",),
            vmem_limit_bytes=vmem_bytes),
    )(*operands)
    return out_pad[:N]


def first_layer_reference(x, params, *, window_size, hidden_size, lstm_layers):
    """Pure-JAX reference of the stacked LSTM (same bf16 operand / f32
    accumulation numerics as the kernel), returns h_n[-1]."""
    N, node_in = x.shape
    F = node_in // window_size
    H = hidden_size * 4
    wih0, whh0, b0, wih_r, whh_r, b_r = params
    x_seq = x.reshape(N, window_size, F).astype(jnp.float32)

    def mm(a, w):
        return jnp.dot(a.astype(jnp.bfloat16), w.astype(jnp.bfloat16),
                       preferred_element_type=jnp.float32)

    h = [jnp.zeros((N, H), jnp.float32) for _ in range(lstm_layers)]
    c = [jnp.zeros((N, H), jnp.float32) for _ in range(lstm_layers)]
    for t in range(window_size):
        inp = x_seq[:, t, :]
        for l in range(lstm_layers):
            if l == 0:
                gates = mm(inp, wih0) + mm(h[0], whh0) + b0
            else:
                gates = mm(inp, wih_r[l - 1]) + mm(h[l], whh_r[l - 1]) + b_r[l - 1]
            i_g = jax.nn.sigmoid(gates[:, 0 * H:1 * H])
            f_g = jax.nn.sigmoid(gates[:, 1 * H:2 * H])
            o_g = jax.nn.sigmoid(gates[:, 2 * H:3 * H])
            g_g = jnp.tanh(gates[:, 3 * H:4 * H])
            c[l] = f_g * c[l] + i_g * g_g
            h[l] = o_g * jnp.tanh(c[l])
            inp = h[l]
    return h[-1]


if __name__ == "__main__":
    # Small, TPU-friendly shapes consistent with the module's forward:
    node_in, window_size, hidden_size, lstm_layers = 128, 8, 32, 2
    N = 8  # batch (number of nodes)

    key = jax.random.PRNGKey(0)
    kx, kp = jax.random.split(key)
    x = jax.random.normal(kx, (N, node_in), jnp.float32)
    params = init_first_layer_params(kp, node_in, window_size,
                                     hidden_size, lstm_layers)

    out = first_layer_forward(
        x, None, None, params,
        window_size=window_size, hidden_size=hidden_size,
        lstm_layers=lstm_layers)
    out = jax.block_until_ready(out)

    ref = first_layer_reference(
        x, params, window_size=window_size, hidden_size=hidden_size,
        lstm_layers=lstm_layers)

    assert out.shape == (N, hidden_size * 4)
    np.testing.assert_allclose(np.asarray(out), np.asarray(ref),
                               rtol=2e-3, atol=2e-3)
    print("KERNEL_OK")
</pallas_src>

<mosaic_0001>
module attributes {stable_mosaic.version = 11 : i64} {
  func.func @kernel(%arg0: i32, %arg1: memref<8x16x512xf32, #tpu.memory_space<vmem>>, %arg2: memref<128x512xbf16, #tpu.memory_space<vmem>>, %arg3: memref<1x128x512xbf16, #tpu.memory_space<vmem>>, %arg4: memref<1x128x512xbf16, #tpu.memory_space<vmem>>, %arg5: memref<1x1x512xf32, #tpu.memory_space<vmem>>, %arg6: memref<16x128xf32, #tpu.memory_space<vmem>>) attributes {dimension_semantics = [#tpu.dimension_semantics<parallel>], iteration_bounds = array<i64: 1>, scalar_prefetch = 0 : i64, scratch_operands = 0 : i64, tpu.core_type = #tpu.core_type<tc>, window_params = [{transform_indices = @transform_0, window_bounds = array<i64: 8, 16, 512>}, {pipeline_mode = #tpu.pipeline_mode<synchronous>, transform_indices = @transform_1, window_bounds = array<i64: 128, 512>}, {pipeline_mode = #tpu.pipeline_mode<synchronous>, transform_indices = @transform_2, window_bounds = array<i64: 1, 128, 512>}, {pipeline_mode = #tpu.pipeline_mode<synchronous>, transform_indices = @transform_3, window_bounds = array<i64: 1, 128, 512>}, {pipeline_mode = #tpu.pipeline_mode<synchronous>, transform_indices = @transform_4, window_bounds = array<i64: 1, 1, 512>}, {transform_indices = @transform_5, window_bounds = array<i64: 16, 128>}]} {
    %cst = arith.constant 0.000000e+00 : f32
    %0 = vector.broadcast %cst : f32 to vector<16x128xf32>
    %cst_0 = arith.constant 0.000000e+00 : f32
    %1 = vector.broadcast %cst_0 : f32 to vector<16x128xf32>
    %cst_1 = arith.constant 0.000000e+00 : f32
    %2 = vector.broadcast %cst_1 : f32 to vector<16x128xf32>
    %cst_2 = arith.constant 0.000000e+00 : f32
    %3 = vector.broadcast %cst_2 : f32 to vector<16x128xf32>
    %c0 = arith.constant 0 : index
    %c0_3 = arith.constant 0 : index
    %c0_4 = arith.constant 0 : index
    %4 = vector.load %arg1[%c0, %c0_3, %c0_4] : memref<8x16x512xf32, #tpu.memory_space<vmem>>, vector<1x16x512xf32>
    %5 = vector.shape_cast %4 : vector<1x16x512xf32> to vector<16x512xf32>
    %6 = arith.truncf %0 : vector<16x128xf32> to vector<16x128xbf16>
    %c0_5 = arith.constant 0 : index
    %c0_6 = arith.constant 0 : index
    %7 = vector.load %arg2[%c0_5, %c0_6] : memref<128x512xbf16, #tpu.memory_space<vmem>>, vector<128x512xbf16>
    %cst_7 = arith.constant dense<0.000000e+00> : vector<16x512xf32>
    %8 = tpu.matmul %6, %7, %cst_7 {dimension_numbers = #tpu.dot_dimension_numbers<[1], [0], [0], [1], [0, 0, 1, 1], [], []>} : vector<16x128xbf16>, vector<128x512xbf16>, vector<16x512xf32> -> vector<16x512xf32>
    %9 = arith.addf %5, %8 : vector<16x512xf32>
    %10 = vector.extract_strided_slice %9 {offsets = [0, 0], sizes = [16, 384], strides = [1, 1]} : vector<16x512xf32> to vector<16x384xf32>
    %11 = arith.negf %10 : vector<16x384xf32>
    %12 = math.exp %11 : vector<16x384xf32>
    %cst_8 = arith.constant 1.000000e+00 : f32
    %13 = vector.broadcast %cst_8 : f32 to vector<16x384xf32>
    %14 = arith.addf %13, %12 : vector<16x384xf32>
    %15 = arith.divf %13, %14 : vector<16x384xf32>
    %16 = vector.extract_strided_slice %15 {offsets = [0, 0], sizes = [16, 128], strides = [1, 1]} : vector<16x384xf32> to vector<16x128xf32>
    %17 = vector.extract_strided_slice %15 {offsets = [0, 128], sizes = [16, 128], strides = [1, 1]} : vector<16x384xf32> to vector<16x128xf32>
    %18 = vector.extract_strided_slice %15 {offsets = [0, 256], sizes = [16, 128], strides = [1, 1]} : vector<16x384xf32> to vector<16x128xf32>
    %19 = vector.extract_strided_slice %9 {offsets = [0, 384], sizes = [16, 128], strides = [1, 1]} : vector<16x512xf32> to vector<16x128xf32>
    %20 = math.tanh %19 : vector<16x128xf32>
    %21 = arith.mulf %17, %2 : vector<16x128xf32>
    %22 = arith.mulf %16, %20 : vector<16x128xf32>
    %23 = arith.addf %21, %22 : vector<16x128xf32>
    %24 = math.tanh %23 : vector<16x128xf32>
    %25 = arith.mulf %18, %24 : vector<16x128xf32>
    %26 = arith.truncf %25 : vector<16x128xf32> to vector<16x128xbf16>
    %c0_9 = arith.constant 0 : index
    %c0_10 = arith.constant 0 : index
    %c0_11 = arith.constant 0 : index
    %27 = vector.load %arg3[%c0_9, %c0_10, %c0_11] : memref<1x128x512xbf16, #tpu.memory_space<vmem>>, vector<1x128x512xbf16>
    %28 = vector.shape_cast %27 : vector<1x128x512xbf16> to vector<128x512xbf16>
    %cst_12 = arith.constant dense<0.000000e+00> : vector<16x512xf32>
    %29 = tpu.matmul %26, %28, %cst_12 {dimension_numbers = #tpu.dot_dimension_numbers<[1], [0], [0], [1], [0, 0, 1, 1], [], []>} : vector<16x128xbf16>, vector<128x512xbf16>, vector<16x512xf32> -> vector<16x512xf32>
    %30 = arith.truncf %1 : vector<16x128xf32> to vector<16x128xbf16>
    %c0_13 = arith.constant 0 : index
    %c0_14 = arith.constant 0 : index
    %c0_15 = arith.constant 0 : index
    %31 = vector.load %arg4[%c0_13, %c0_14, %c0_15] : memref<1x128x512xbf16, #tpu.memory_space<vmem>>, vector<1x128x512xbf16>
    %32 = vector.shape_cast %31 : vector<1x128x512xbf16> to vector<128x512xbf16>
    %cst_16 = arith.constant dense<0.000000e+00> : vector<16x512xf32>
    %33 = tpu.matmul %30, %32, %cst_16 {dimension_numbers = #tpu.dot_dimension_numbers<[1], [0], [0], [1], [0, 0, 1, 1], [], []>} : vector<16x128xbf16>, vector<128x512xbf16>, vector<16x512xf32> -> vector<16x512xf32>
    %34 = arith.addf %29, %33 : vector<16x512xf32>
    %c0_17 = arith.constant 0 : index
    %c0_18 = arith.constant 0 : index
    %c0_19 = arith.constant 0 : index
    %35 = vector.load %arg5[%c0_17, %c0_18, %c0_19] : memref<1x1x512xf32, #tpu.memory_space<vmem>>, vector<1x1x512xf32>
    %36 = vector.shape_cast %35 : vector<1x1x512xf32> to vector<1x512xf32>
    %37 = vector.broadcast %36 : vector<1x512xf32> to vector<16x512xf32>
    %38 = arith.addf %34, %37 : vector<16x512xf32>
    %39 = vector.extract_strided_slice %38 {offsets = [0, 0], sizes = [16, 384], strides = [1, 1]} : vector<16x512xf32> to vector<16x384xf32>
    %40 = arith.negf %39 : vector<16x384xf32>
    %41 = math.exp %40 : vector<16x384xf32>
    %cst_20 = arith.constant 1.000000e+00 : f32
    %42 = vector.broadcast %cst_20 : f32 to vector<16x384xf32>
    %43 = arith.addf %42, %41 : vector<16x384xf32>
    %44 = arith.divf %42, %43 : vector<16x384xf32>
    %45 = vector.extract_strided_slice %44 {offsets = [0, 0], sizes = [16, 128], strides = [1, 1]} : vector<16x384xf32> to vector<16x128xf32>
    %46 = vector.extract_strided_slice %44 {offsets = [0, 128], sizes = [16, 128], strides = [1, 1]} : vector<16x384xf32> to vector<16x128xf32>
    %47 = vector.extract_strided_slice %44 {offsets = [0, 256], sizes = [16, 128], strides = [1, 1]} : vector<16x384xf32> to vector<16x128xf32>
    %48 = vector.extract_strided_slice %38 {offsets = [0, 384], sizes = [16, 128], strides = [1, 1]} : vector<16x512xf32> to vector<16x128xf32>
    %49 = math.tanh %48 : vector<16x128xf32>
    %50 = arith.mulf %46, %3 : vector<16x128xf32>
    %51 = arith.mulf %45, %49 : vector<16x128xf32>
    %52 = arith.addf %50, %51 : vector<16x128xf32>
    %53 = math.tanh %52 : vector<16x128xf32>
    %54 = arith.mulf %47, %53 : vector<16x128xf32>
    %c1 = arith.constant 1 : index
    %c0_21 = arith.constant 0 : index
    %c0_22 = arith.constant 0 : index
    %55 = vector.load %arg1[%c1, %c0_21, %c0_22] : memref<8x16x512xf32, #tpu.memory_space<vmem>>, vector<1x16x512xf32>
    %56 = vector.shape_cast %55 : vector<1x16x512xf32> to vector<16x512xf32>
    %57 = arith.truncf %25 : vector<16x128xf32> to vector<16x128xbf16>
    %c0_23 = arith.constant 0 : index
    %c0_24 = arith.constant 0 : index
    %58 = vector.load %arg2[%c0_23, %c0_24] : memref<128x512xbf16, #tpu.memory_space<vmem>>, vector<128x512xbf16>
    %cst_25 = arith.constant dense<0.000000e+00> : vector<16x512xf32>
    %59 = tpu.matmul %57, %58, %cst_25 {dimension_numbers = #tpu.dot_dimension_numbers<[1], [0], [0], [1], [0, 0, 1, 1], [], []>} : vector<16x128xbf16>, vector<128x512xbf16>, vector<16x512xf32> -> vector<16x512xf32>
    %60 = arith.addf %56, %59 : vector<16x512xf32>
    %61 = vector.extract_strided_slice %60 {offsets = [0, 0], sizes = [16, 384], strides = [1, 1]} : vector<16x512xf32> to vector<16x384xf32>
    %62 = arith.negf %61 : vector<16x384xf32>
    %63 = math.exp %62 : vector<16x384xf32>
    %cst_26 = arith.constant 1.000000e+00 : f32
    %64 = vector.broadcast %cst_26 : f32 to vector<16x384xf32>
    %65 = arith.addf %64, %63 : vector<16x384xf32>
    %66 = arith.divf %64, %65 : vector<16x384xf32>
    %67 = vector.extract_strided_slice %66 {offsets = [0, 0], sizes = [16, 128], strides = [1, 1]} : vector<16x384xf32> to vector<16x128xf32>
    %68 = vector.extract_strided_slice %66 {offsets = [0, 128], sizes = [16, 128], strides = [1, 1]} : vector<16x384xf32> to vector<16x128xf32>
    %69 = vector.extract_strided_slice %66 {offsets = [0, 256], sizes = [16, 128], strides = [1, 1]} : vector<16x384xf32> to vector<16x128xf32>
    %70 = vector.extract_strided_slice %60 {offsets = [0, 384], sizes = [16, 128], strides = [1, 1]} : vector<16x512xf32> to vector<16x128xf32>
    %71 = math.tanh %70 : vector<16x128xf32>
    %72 = arith.mulf %68, %23 : vector<16x128xf32>
    %73 = arith.mulf %67, %71 : vector<16x128xf32>
    %74 = arith.addf %72, %73 : vector<16x128xf32>
    %75 = math.tanh %74 : vector<16x128xf32>
    %76 = arith.mulf %69, %75 : vector<16x128xf32>
    %77 = arith.truncf %76 : vector<16x128xf32> to vector<16x128xbf16>
    %c0_27 = arith.constant 0 : index
    %c0_28 = arith.constant 0 : index
    %c0_29 = arith.constant 0 : index
    %78 = vector.load %arg3[%c0_27, %c0_28, %c0_29] : memref<1x128x512xbf16, #tpu.memory_space<vmem>>, vector<1x128x512xbf16>
    %79 = vector.shape_cast %78 : vector<1x128x512xbf16> to vector<128x512xbf16>
    %cst_30 = arith.constant dense<0.000000e+00> : vector<16x512xf32>
    %80 = tpu.matmul %77, %79, %cst_30 {dimension_numbers = #tpu.dot_dimension_numbers<[1], [0], [0], [1], [0, 0, 1, 1], [], []>} : vector<16x128xbf16>, vector<128x512xbf16>, vector<16x512xf32> -> vector<16x512xf32>
    %81 = arith.truncf %54 : vector<16x128xf32> to vector<16x128xbf16>
    %c0_31 = arith.constant 0 : index
    %c0_32 = arith.constant 0 : index
    %c0_33 = arith.constant 0 : index
    %82 = vector.load %arg4[%c0_31, %c0_32, %c0_33] : memref<1x128x512xbf16, #tpu.memory_space<vmem>>, vector<1x128x512xbf16>
    %83 = vector.shape_cast %82 : vector<1x128x512xbf16> to vector<128x512xbf16>
    %cst_34 = arith.constant dense<0.000000e+00> : vector<16x512xf32>
    %84 = tpu.matmul %81, %83, %cst_34 {dimension_numbers = #tpu.dot_dimension_numbers<[1], [0], [0], [1], [0, 0, 1, 1], [], []>} : vector<16x128xbf16>, vector<128x512xbf16>, vector<16x512xf32> -> vector<16x512xf32>
    %85 = arith.addf %80, %84 : vector<16x512xf32>
    %c0_35 = arith.constant 0 : index
    %c0_36 = arith.constant 0 : index
    %c0_37 = arith.constant 0 : index
    %86 = vector.load %arg5[%c0_35, %c0_36, %c0_37] : memref<1x1x512xf32, #tpu.memory_space<vmem>>, vector<1x1x512xf32>
    %87 = vector.shape_cast %86 : vector<1x1x512xf32> to vector<1x512xf32>
    %88 = vector.broadcast %87 : vector<1x512xf32> to vector<16x512xf32>
    %89 = arith.addf %85, %88 : vector<16x512xf32>
    %90 = vector.extract_strided_slice %89 {offsets = [0, 0], sizes = [16, 384], strides = [1, 1]} : vector<16x512xf32> to vector<16x384xf32>
    %91 = arith.negf %90 : vector<16x384xf32>
    %92 = math.exp %91 : vector<16x384xf32>
    %cst_38 = arith.constant 1.000000e+00 : f32
    %93 = vector.broadcast %cst_38 : f32 to vector<16x384xf32>
    %94 = arith.addf %93, %92 : vector<16x384xf32>
    %95 = arith.divf %93, %94 : vector<16x384xf32>
    %96 = vector.extract_strided_slice %95 {offsets = [0, 0], sizes = [16, 128], strides = [1, 1]} : vector<16x384xf32> to vector<16x128xf32>
    %97 = vector.extract_strided_slice %95 {offsets = [0, 128], sizes = [16, 128], strides = [1, 1]} : vector<16x384xf32> to vector<16x128xf32>
    %98 = vector.extract_strided_slice %95 {offsets = [0, 256], sizes = [16, 128], strides = [1, 1]} : vector<16x384xf32> to vector<16x128xf32>
    %99 = vector.extract_strided_slice %89 {offsets = [0, 384], sizes = [16, 128], strides = [1, 1]} : vector<16x512xf32> to vector<16x128xf32>
    %100 = math.tanh %99 : vector<16x128xf32>
    %101 = arith.mulf %97, %52 : vector<16x128xf32>
    %102 = arith.mulf %96, %100 : vector<16x128xf32>
    %103 = arith.addf %101, %102 : vector<16x128xf32>
    %104 = math.tanh %103 : vector<16x128xf32>
    %105 = arith.mulf %98, %104 : vector<16x128xf32>
    %c2 = arith.constant 2 : index
    %c0_39 = arith.constant 0 : index
    %c0_40 = arith.constant 0 : index
    %106 = vector.load %arg1[%c2, %c0_39, %c0_40] : memref<8x16x512xf32, #tpu.memory_space<vmem>>, vector<1x16x512xf32>
    %107 = vector.shape_cast %106 : vector<1x16x512xf32> to vector<16x512xf32>
    %108 = arith.truncf %76 : vector<16x128xf32> to vector<16x128xbf16>
    %c0_41 = arith.constant 0 : index
    %c0_42 = arith.constant 0 : index
    %109 = vector.load %arg2[%c0_41, %c0_42] : memref<128x512xbf16, #tpu.memory_space<vmem>>, vector<128x512xbf16>
    %cst_43 = arith.constant dense<0.000000e+00> : vector<16x512xf32>
    %110 = tpu.matmul %108, %109, %cst_43 {dimension_numbers = #tpu.dot_dimension_numbers<[1], [0], [0], [1], [0, 0, 1, 1], [], []>} : vector<16x128xbf16>, vector<128x512xbf16>, vector<16x512xf32> -> vector<16x512xf32>
    %111 = arith.addf %107, %110 : vector<16x512xf32>
    %112 = vector.extract_strided_slice %111 {offsets = [0, 0], sizes = [16, 384], strides = [1, 1]} : vector<16x512xf32> to vector<16x384xf32>
    %113 = arith.negf %112 : vector<16x384xf32>
    %114 = math.exp %113 : vector<16x384xf32>
    %cst_44 = arith.constant 1.000000e+00 : f32
    %115 = vector.broadcast %cst_44 : f32 to vector<16x384xf32>
    %116 = arith.addf %115, %114 : vector<16x384xf32>
    %117 = arith.divf %115, %116 : vector<16x384xf32>
    %118 = vector.extract_strided_slice %117 {offsets = [0, 0], sizes = [16, 128], strides = [1, 1]} : vector<16x384xf32> to vector<16x128xf32>
    %119 = vector.extract_strided_slice %117 {offsets = [0, 128], sizes = [16, 128], strides = [1, 1]} : vector<16x384xf32> to vector<16x128xf32>
    %120 = vector.extract_strided_slice %117 {offsets = [0, 256], sizes = [16, 128], strides = [1, 1]} : vector<16x384xf32> to vector<16x128xf32>
    %121 = vector.extract_strided_slice %111 {offsets = [0, 384], sizes = [16, 128], strides = [1, 1]} : vector<16x512xf32> to vector<16x128xf32>
    %122 = math.tanh %121 : vector<16x128xf32>
    %123 = arith.mulf %119, %74 : vector<16x128xf32>
    %124 = arith.mulf %118, %122 : vector<16x128xf32>
    %125 = arith.addf %123, %124 : vector<16x128xf32>
    %126 = math.tanh %125 : vector<16x128xf32>
    %127 = arith.mulf %120, %126 : vector<16x128xf32>
    %128 = arith.truncf %127 : vector<16x128xf32> to vector<16x128xbf16>
    %c0_45 = arith.constant 0 : index
    %c0_46 = arith.constant 0 : index
    %c0_47 = arith.constant 0 : index
    %129 = vector.load %arg3[%c0_45, %c0_46, %c0_47] : memref<1x128x512xbf16, #tpu.memory_space<vmem>>, vector<1x128x512xbf16>
    %130 = vector.shape_cast %129 : vector<1x128x512xbf16> to vector<128x512xbf16>
    %cst_48 = arith.constant dense<0.000000e+00> : vector<16x512xf32>
    %131 = tpu.matmul %128, %130, %cst_48 {dimension_numbers = #tpu.dot_dimension_numbers<[1], [0], [0], [1], [0, 0, 1, 1], [], []>} : vector<16x128xbf16>, vector<128x512xbf16>, vector<16x512xf32> -> vector<16x512xf32>
    %132 = arith.truncf %105 : vector<16x128xf32> to vector<16x128xbf16>
    %c0_49 = arith.constant 0 : index
    %c0_50 = arith.constant 0 : index
    %c0_51 = arith.constant 0 : index
    %133 = vector.load %arg4[%c0_49, %c0_50, %c0_51] : memref<1x128x512xbf16, #tpu.memory_space<vmem>>, vector<1x128x512xbf16>
    %134 = vector.shape_cast %133 : vector<1x128x512xbf16> to vector<128x512xbf16>
    %cst_52 = arith.constant dense<0.000000e+00> : vector<16x512xf32>
    %135 = tpu.matmul %132, %134, %cst_52 {dimension_numbers = #tpu.dot_dimension_numbers<[1], [0], [0], [1], [0, 0, 1, 1], [], []>} : vector<16x128xbf16>, vector<128x512xbf16>, vector<16x512xf32> -> vector<16x512xf32>
    %136 = arith.addf %131, %135 : vector<16x512xf32>
    %c0_53 = arith.constant 0 : index
    %c0_54 = arith.constant 0 : index
    %c0_55 = arith.constant 0 : index
    %137 = vector.load %arg5[%c0_53, %c0_54, %c0_55] : memref<1x1x512xf32, #tpu.memory_space<vmem>>, vector<1x1x512xf32>
    %138 = vector.shape_cast %137 : vector<1x1x512xf32> to vector<1x512xf32>
    %139 = vector.broadcast %138 : vector<1x512xf32> to vector<16x512xf32>
    %140 = arith.addf %136, %139 : vector<16x512xf32>
    %141 = vector.extract_strided_slice %140 {offsets = [0, 0], sizes = [16, 384], strides = [1, 1]} : vector<16x512xf32> to vector<16x384xf32>
    %142 = arith.negf %141 : vector<16x384xf32>
    %143 = math.exp %142 : vector<16x384xf32>
    %cst_56 = arith.constant 1.000000e+00 : f32
    %144 = vector.broadcast %cst_56 : f32 to vector<16x384xf32>
    %145 = arith.addf %144, %143 : vector<16x384xf32>
    %146 = arith.divf %144, %145 : vector<16x384xf32>
    %147 = vector.extract_strided_slice %146 {offsets = [0, 0], sizes = [16, 128], strides = [1, 1]} : vector<16x384xf32> to vector<16x128xf32>
    %148 = vector.extract_strided_slice %146 {offsets = [0, 128], sizes = [16, 128], strides = [1, 1]} : vector<16x384xf32> to vector<16x128xf32>
    %149 = vector.extract_strided_slice %146 {offsets = [0, 256], sizes = [16, 128], strides = [1, 1]} : vector<16x384xf32> to vector<16x128xf32>
    %150 = vector.extract_strided_slice %140 {offsets = [0, 384], sizes = [16, 128], strides = [1, 1]} : vector<16x512xf32> to vector<16x128xf32>
    %151 = math.tanh %150 : vector<16x128xf32>
    %152 = arith.mulf %148, %103 : vector<16x128xf32>
    %153 = arith.mulf %147, %151 : vector<16x128xf32>
    %154 = arith.addf %152, %153 : vector<16x128xf32>
    %155 = math.tanh %154 : vector<16x128xf32>
    %156 = arith.mulf %149, %155 : vector<16x128xf32>
    %c3 = arith.constant 3 : index
    %c0_57 = arith.constant 0 : index
    %c0_58 = arith.constant 0 : index
    %157 = vector.load %arg1[%c3, %c0_57, %c0_58] : memref<8x16x512xf32, #tpu.memory_space<vmem>>, vector<1x16x512xf32>
    %158 = vector.shape_cast %157 : vector<1x16x512xf32> to vector<16x512xf32>
    %159 = arith.truncf %127 : vector<16x128xf32> to vector<16x128xbf16>
    %c0_59 = arith.constant 0 : index
    %c0_60 = arith.constant 0 : index
    %160 = vector.load %arg2[%c0_59, %c0_60] : memref<128x512xbf16, #tpu.memory_space<vmem>>, vector<128x512xbf16>
    %cst_61 = arith.constant dense<0.000000e+00> : vector<16x512xf32>
    %161 = tpu.matmul %159, %160, %cst_61 {dimension_numbers = #tpu.dot_dimension_numbers<[1], [0], [0], [1], [0, 0, 1, 1], [], []>} : vector<16x128xbf16>, vector<128x512xbf16>, vector<16x512xf32> -> vector<16x512xf32>
    %162 = arith.addf %158, %161 : vector<16x512xf32>
    %163 = vector.extract_strided_slice %162 {offsets = [0, 0], sizes = [16, 384], strides = [1, 1]} : vector<16x512xf32> to vector<16x384xf32>
    %164 = arith.negf %163 : vector<16x384xf32>
    %165 = math.exp %164 : vector<16x384xf32>
    %cst_62 = arith.constant 1.000000e+00 : f32
    %166 = vector.broadcast %cst_62 : f32 to vector<16x384xf32>
    %167 = arith.addf %166, %165 : vector<16x384xf32>
    %168 = arith.divf %166, %167 : vector<16x384xf32>
    %169 = vector.extract_strided_slice %168 {offsets = [0, 0], sizes = [16, 128], strides = [1, 1]} : vector<16x384xf32> to vector<16x128xf32>
    %170 = vector.extract_strided_slice %168 {offsets = [0, 128], sizes = [16, 128], strides = [1, 1]} : vector<16x384xf32> to vector<16x128xf32>
    %171 = vector.extract_strided_slice %168 {offsets = [0, 256], sizes = [16, 128], strides = [1, 1]} : vector<16x384xf32> to vector<16x128xf32>
    %172 = vector.extract_strided_slice %162 {offsets = [0, 384], sizes = [16, 128], strides = [1, 1]} : vector<16x512xf32> to vector<16x128xf32>
    %173 = math.tanh %172 : vector<16x128xf32>
    %174 = arith.mulf %170, %125 : vector<16x128xf32>
    %175 = arith.mulf %169, %173 : vector<16x128xf32>
    %176 = arith.addf %174, %175 : vector<16x128xf32>
    %177 = math.tanh %176 : vector<16x128xf32>
    %178 = arith.mulf %171, %177 : vector<16x128xf32>
    %179 = arith.truncf %178 : vector<16x128xf32> to vector<16x128xbf16>
    %c0_63 = arith.constant 0 : index
    %c0_64 = arith.constant 0 : index
    %c0_65 = arith.constant 0 : index
    %180 = vector.load %arg3[%c0_63, %c0_64, %c0_65] : memref<1x128x512xbf16, #tpu.memory_space<vmem>>, vector<1x128x512xbf16>
    %181 = vector.shape_cast %180 : vector<1x128x512xbf16> to vector<128x512xbf16>
    %cst_66 = arith.constant dense<0.000000e+00> : vector<16x512xf32>
    %182 = tpu.matmul %179, %181, %cst_66 {dimension_numbers = #tpu.dot_dimension_numbers<[1], [0], [0], [1], [0, 0, 1, 1], [], []>} : vector<16x128xbf16>, vector<128x512xbf16>, vector<16x512xf32> -> vector<16x512xf32>
    %183 = arith.truncf %156 : vector<16x128xf32> to vector<16x128xbf16>
    %c0_67 = arith.constant 0 : index
    %c0_68 = arith.constant 0 : index
    %c0_69 = arith.constant 0 : index
    %184 = vector.load %arg4[%c0_67, %c0_68, %c0_69] : memref<1x128x512xbf16, #tpu.memory_space<vmem>>, vector<1x128x512xbf16>
    %185 = vector.shape_cast %184 : vector<1x128x512xbf16> to vector<128x512xbf16>
    %cst_70 = arith.constant dense<0.000000e+00> : vector<16x512xf32>
    %186 = tpu.matmul %183, %185, %cst_70 {dimension_numbers = #tpu.dot_dimension_numbers<[1], [0], [0], [1], [0, 0, 1, 1], [], []>} : vector<16x128xbf16>, vector<128x512xbf16>, vector<16x512xf32> -> vector<16x512xf32>
    %187 = arith.addf %182, %186 : vector<16x512xf32>
    %c0_71 = arith.constant 0 : index
    %c0_72 = arith.constant 0 : index
    %c0_73 = arith.constant 0 : index
    %188 = vector.load %arg5[%c0_71, %c0_72, %c0_73] : memref<1x1x512xf32, #tpu.memory_space<vmem>>, vector<1x1x512xf32>
    %189 = vector.shape_cast %188 : vector<1x1x512xf32> to vector<1x512xf32>
    %190 = vector.broadcast %189 : vector<1x512xf32> to vector<16x512xf32>
    %191 = arith.addf %187, %190 : vector<16x512xf32>
    %192 = vector.extract_strided_slice %191 {offsets = [0, 0], sizes = [16, 384], strides = [1, 1]} : vector<16x512xf32> to vector<16x384xf32>
    %193 = arith.negf %192 : vector<16x384xf32>
    %194 = math.exp %193 : vector<16x384xf32>
    %cst_74 = arith.constant 1.000000e+00 : f32
    %195 = vector.broadcast %cst_74 : f32 to vector<16x384xf32>
    %196 = arith.addf %195, %194 : vector<16x384xf32>
    %197 = arith.divf %195, %196 : vector<16x384xf32>
    %198 = vector.extract_strided_slice %197 {offsets = [0, 0], sizes = [16, 128], strides = [1, 1]} : vector<16x384xf32> to vector<16x128xf32>
    %199 = vector.extract_strided_slice %197 {offsets = [0, 128], sizes = [16, 128], strides = [1, 1]} : vector<16x384xf32> to vector<16x128xf32>
    %200 = vector.extract_strided_slice %197 {offsets = [0, 256], sizes = [16, 128], strides = [1, 1]} : vector<16x384xf32> to vector<16x128xf32>
    %201 = vector.extract_strided_slice %191 {offsets = [0, 384], sizes = [16, 128], strides = [1, 1]} : vector<16x512xf32> to vector<16x128xf32>
    %202 = math.tanh %201 : vector<16x128xf32>
    %203 = arith.mulf %199, %154 : vector<16x128xf32>
    %204 = arith.mulf %198, %202 : vector<16x128xf32>
    %205 = arith.addf %203, %204 : vector<16x128xf32>
    %206 = math.tanh %205 : vector<16x128xf32>
    %207 = arith.mulf %200, %206 : vector<16x128xf32>
    %c4 = arith.constant 4 : index
    %c0_75 = arith.constant 0 : index
    %c0_76 = arith.constant 0 : index
    %208 = vector.load %arg1[%c4, %c0_75, %c0_76] : memref<8x16x512xf32, #tpu.memory_space<vmem>>, vector<1x16x512xf32>
    %209 = vector.shape_cast %208 : vector<1x16x512xf32> to vector<16x512xf32>
    %210 = arith.truncf %178 : vector<16x128xf32> to vector<16x128xbf16>
    %c0_77 = arith.constant 0 : index
    %c0_78 = arith.constant 0 : index
    %211 = vector.load %arg2[%c0_77, %c0_78] : memref<128x512xbf16, #tpu.memory_space<vmem>>, vector<128x512xbf16>
    %cst_79 = arith.constant dense<0.000000e+00> : vector<16x512xf32>
    %212 = tpu.matmul %210, %211, %cst_79 {dimension_numbers = #tpu.dot_dimension_numbers<[1], [0], [0], [1], [0, 0, 1, 1], [], []>} : vector<16x128xbf16>, vector<128x512xbf16>, vector<16x512xf32> -> vector<16x512xf32>
    %213 = arith.addf %209, %212 : vector<16x512xf32>
    %214 = vector.extract_strided_slice %213 {offsets = [0, 0], sizes = [16, 384], strides = [1, 1]} : vector<16x512xf32> to vector<16x384xf32>
    %215 = arith.negf %214 : vector<16x384xf32>
    %216 = math.exp %215 : vector<16x384xf32>
    %cst_80 = arith.constant 1.000000e+00 : f32
    %217 = vector.broadcast %cst_80 : f32 to vector<16x384xf32>
    %218 = arith.addf %217, %216 : vector<16x384xf32>
    %219 = arith.divf %217, %218 : vector<16x384xf32>
    %220 = vector.extract_strided_slice %219 {offsets = [0, 0], sizes = [16, 128], strides = [1, 1]} : vector<16x384xf32> to vector<16x128xf32>
    %221 = vector.extract_strided_slice %219 {offsets = [0, 128], sizes = [16, 128], strides = [1, 1]} : vector<16x384xf32> to vector<16x128xf32>
    %222 = vector.extract_strided_slice %219 {offsets = [0, 256], sizes = [16, 128], strides = [1, 1]} : vector<16x384xf32> to vector<16x128xf32>
    %223 = vector.extract_strided_slice %213 {offsets = [0, 384], sizes = [16, 128], strides = [1, 1]} : vector<16x512xf32> to vector<16x128xf32>
    %224 = math.tanh %223 : vector<16x128xf32>
    %225 = arith.mulf %221, %176 : vector<16x128xf32>
    %226 = arith.mulf %220, %224 : vector<16x128xf32>
    %227 = arith.addf %225, %226 : vector<16x128xf32>
    %228 = math.tanh %227 : vector<16x128xf32>
    %229 = arith.mulf %222, %228 : vector<16x128xf32>
    %230 = arith.truncf %229 : vector<16x128xf32> to vector<16x128xbf16>
    %c0_81 = arith.constant 0 : index
    %c0_82 = arith.constant 0 : index
    %c0_83 = arith.constant 0 : index
    %231 = vector.load %arg3[%c0_81, %c0_82, %c0_83] : memref<1x128x512xbf16, #tpu.memory_space<vmem>>, vector<1x128x512xbf16>
    %232 = vector.shape_cast %231 : vector<1x128x512xbf16> to vector<128x512xbf16>
    %cst_84 = arith.constant dense<0.000000e+00> : vector<16x512xf32>
    %233 = tpu.matmul %230, %232, %cst_84 {dimension_numbers = #tpu.dot_dimension_numbers<[1], [0], [0], [1], [0, 0, 1, 1], [], []>} : vector<16x128xbf16>, vector<128x512xbf16>, vector<16x512xf32> -> vector<16x512xf32>
    %234 = arith.truncf %207 : vector<16x128xf32> to vector<16x128xbf16>
    %c0_85 = arith.constant 0 : index
    %c0_86 = arith.constant 0 : index
    %c0_87 = arith.constant 0 : index
    %235 = vector.load %arg4[%c0_85, %c0_86, %c0_87] : memref<1x128x512xbf16, #tpu.memory_space<vmem>>, vector<1x128x512xbf16>
    %236 = vector.shape_cast %235 : vector<1x128x512xbf16> to vector<128x512xbf16>
    %cst_88 = arith.constant dense<0.000000e+00> : vector<16x512xf32>
    %237 = tpu.matmul %234, %236, %cst_88 {dimension_numbers = #tpu.dot_dimension_numbers<[1], [0], [0], [1], [0, 0, 1, 1], [], []>} : vector<16x128xbf16>, vector<128x512xbf16>, vector<16x512xf32> -> vector<16x512xf32>
    %238 = arith.addf %233, %237 : vector<16x512xf32>
    %c0_89 = arith.constant 0 : index
    %c0_90 = arith.constant 0 : index
    %c0_91 = arith.constant 0 : index
    %239 = vector.load %arg5[%c0_89, %c0_90, %c0_91] : memref<1x1x512xf32, #tpu.memory_space<vmem>>, vector<1x1x512xf32>
    %240 = vector.shape_cast %239 : vector<1x1x512xf32> to vector<1x512xf32>
    %241 = vector.broadcast %240 : vector<1x512xf32> to vector<16x512xf32>
    %242 = arith.addf %238, %241 : vector<16x512xf32>
    %243 = vector.extract_strided_slice %242 {offsets = [0, 0], sizes = [16, 384], strides = [1, 1]} : vector<16x512xf32> to vector<16x384xf32>
    %244 = arith.negf %243 : vector<16x384xf32>
    %245 = math.exp %244 : vector<16x384xf32>
    %cst_92 = arith.constant 1.000000e+00 : f32
    %246 = vector.broadcast %cst_92 : f32 to vector<16x384xf32>
    %247 = arith.addf %246, %245 : vector<16x384xf32>
    %248 = arith.divf %246, %247 : vector<16x384xf32>
    %249 = vector.extract_strided_slice %248 {offsets = [0, 0], sizes = [16, 128], strides = [1, 1]} : vector<16x384xf32> to vector<16x128xf32>
    %250 = vector.extract_strided_slice %248 {offsets = [0, 128], sizes = [16, 128], strides = [1, 1]} : vector<16x384xf32> to vector<16x128xf32>
    %251 = vector.extract_strided_slice %248 {offsets = [0, 256], sizes = [16, 128], strides = [1, 1]} : vector<16x384xf32> to vector<16x128xf32>
    %252 = vector.extract_strided_slice %242 {offsets = [0, 384], sizes = [16, 128], strides = [1, 1]} : vector<16x512xf32> to vector<16x128xf32>
    %253 = math.tanh %252 : vector<16x128xf32>
    %254 = arith.mulf %250, %205 : vector<16x128xf32>
    %255 = arith.mulf %249, %253 : vector<16x128xf32>
    %256 = arith.addf %254, %255 : vector<16x128xf32>
    %257 = math.tanh %256 : vector<16x128xf32>
    %258 = arith.mulf %251, %257 : vector<16x128xf32>
    %c5 = arith.constant 5 : index
    %c0_93 = arith.constant 0 : index
    %c0_94 = arith.constant 0 : index
    %259 = vector.load %arg1[%c5, %c0_93, %c0_94] : memref<8x16x512xf32, #tpu.memory_space<vmem>>, vector<1x16x512xf32>
    %260 = vector.shape_cast %259 : vector<1x16x512xf32> to vector<16x512xf32>
    %261 = arith.truncf %229 : vector<16x128xf32> to vector<16x128xbf16>
    %c0_95 = arith.constant 0 : index
    %c0_96 = arith.constant 0 : index
    %262 = vector.load %arg2[%c0_95, %c0_96] : memref<128x512xbf16, #tpu.memory_space<vmem>>, vector<128x512xbf16>
    %cst_97 = arith.constant dense<0.000000e+00> : vector<16x512xf32>
    %263 = tpu.matmul %261, %262, %cst_97 {dimension_numbers = #tpu.dot_dimension_numbers<[1], [0], [0], [1], [0, 0, 1, 1], [], []>} : vector<16x128xbf16>, vector<128x512xbf16>, vector<16x512xf32> -> vector<16x512xf32>
    %264 = arith.addf %260, %263 : vector<16x512xf32>
    %265 = vector.extract_strided_slice %264 {offsets = [0, 0], sizes = [16, 384], strides = [1, 1]} : vector<16x512xf32> to vector<16x384xf32>
    %266 = arith.negf %265 : vector<16x384xf32>
    %267 = math.exp %266 : vector<16x384xf32>
    %cst_98 = arith.constant 1.000000e+00 : f32
    %268 = vector.broadcast %cst_98 : f32 to vector<16x384xf32>
    %269 = arith.addf %268, %267 : vector<16x384xf32>
    %270 = arith.divf %268, %269 : vector<16x384xf32>
    %271 = vector.extract_strided_slice %270 {offsets = [0, 0], sizes = [16, 128], strides = [1, 1]} : vector<16x384xf32> to vector<16x128xf32>
    %272 = vector.extract_strided_slice %270 {offsets = [0, 128], sizes = [16, 128], strides = [1, 1]} : vector<16x384xf32> to vector<16x128xf32>
    %273 = vector.extract_strided_slice %270 {offsets = [0, 256], sizes = [16, 128], strides = [1, 1]} : vector<16x384xf32> to vector<16x128xf32>
    %274 = vector.extract_strided_slice %264 {offsets = [0, 384], sizes = [16, 128], strides = [1, 1]} : vector<16x512xf32> to vector<16x128xf32>
    %275 = math.tanh %274 : vector<16x128xf32>
    %276 = arith.mulf %272, %227 : vector<16x128xf32>
    %277 = arith.mulf %271, %275 : vector<16x128xf32>
    %278 = arith.addf %276, %277 : vector<16x128xf32>
    %279 = math.tanh %278 : vector<16x128xf32>
    %280 = arith.mulf %273, %279 : vector<16x128xf32>
    %281 = arith.truncf %280 : vector<16x128xf32> to vector<16x128xbf16>
    %c0_99 = arith.constant 0 : index
    %c0_100 = arith.constant 0 : index
    %c0_101 = arith.constant 0 : index
    %282 = vector.load %arg3[%c0_99, %c0_100, %c0_101] : memref<1x128x512xbf16, #tpu.memory_space<vmem>>, vector<1x128x512xbf16>
    %283 = vector.shape_cast %282 : vector<1x128x512xbf16> to vector<128x512xbf16>
    %cst_102 = arith.constant dense<0.000000e+00> : vector<16x512xf32>
    %284 = tpu.matmul %281, %283, %cst_102 {dimension_numbers = #tpu.dot_dimension_numbers<[1], [0], [0], [1], [0, 0, 1, 1], [], []>} : vector<16x128xbf16>, vector<128x512xbf16>, vector<16x512xf32> -> vector<16x512xf32>
    %285 = arith.truncf %258 : vector<16x128xf32> to vector<16x128xbf16>
    %c0_103 = arith.constant 0 : index
    %c0_104 = arith.constant 0 : index
    %c0_105 = arith.constant 0 : index
    %286 = vector.load %arg4[%c0_103, %c0_104, %c0_105] : memref<1x128x512xbf16, #tpu.memory_space<vmem>>, vector<1x128x512xbf16>
    %287 = vector.shape_cast %286 : vector<1x128x512xbf16> to vector<128x512xbf16>
    %cst_106 = arith.constant dense<0.000000e+00> : vector<16x512xf32>
    %288 = tpu.matmul %285, %287, %cst_106 {dimension_numbers = #tpu.dot_dimension_numbers<[1], [0], [0], [1], [0, 0, 1, 1], [], []>} : vector<16x128xbf16>, vector<128x512xbf16>, vector<16x512xf32> -> vector<16x512xf32>
    %289 = arith.addf %284, %288 : vector<16x512xf32>
    %c0_107 = arith.constant 0 : index
    %c0_108 = arith.constant 0 : index
    %c0_109 = arith.constant 0 : index
    %290 = vector.load %arg5[%c0_107, %c0_108, %c0_109] : memref<1x1x512xf32, #tpu.memory_space<vmem>>, vector<1x1x512xf32>
    %291 = vector.shape_cast %290 : vector<1x1x512xf32> to vector<1x512xf32>
    %292 = vector.broadcast %291 : vector<1x512xf32> to vector<16x512xf32>
    %293 = arith.addf %289, %292 : vector<16x512xf32>
    %294 = vector.extract_strided_slice %293 {offsets = [0, 0], sizes = [16, 384], strides = [1, 1]} : vector<16x512xf32> to vector<16x384xf32>
    %295 = arith.negf %294 : vector<16x384xf32>
    %296 = math.exp %295 : vector<16x384xf32>
    %cst_110 = arith.constant 1.000000e+00 : f32
    %297 = vector.broadcast %cst_110 : f32 to vector<16x384xf32>
    %298 = arith.addf %297, %296 : vector<16x384xf32>
    %299 = arith.divf %297, %298 : vector<16x384xf32>
    %300 = vector.extract_strided_slice %299 {offsets = [0, 0], sizes = [16, 128], strides = [1, 1]} : vector<16x384xf32> to vector<16x128xf32>
    %301 = vector.extract_strided_slice %299 {offsets = [0, 128], sizes = [16, 128], strides = [1, 1]} : vector<16x384xf32> to vector<16x128xf32>
    %302 = vector.extract_strided_slice %299 {offsets = [0, 256], sizes = [16, 128], strides = [1, 1]} : vector<16x384xf32> to vector<16x128xf32>
    %303 = vector.extract_strided_slice %293 {offsets = [0, 384], sizes = [16, 128], strides = [1, 1]} : vector<16x512xf32> to vector<16x128xf32>
    %304 = math.tanh %303 : vector<16x128xf32>
    %305 = arith.mulf %301, %256 : vector<16x128xf32>
    %306 = arith.mulf %300, %304 : vector<16x128xf32>
    %307 = arith.addf %305, %306 : vector<16x128xf32>
    %308 = math.tanh %307 : vector<16x128xf32>
    %309 = arith.mulf %302, %308 : vector<16x128xf32>
    %c6 = arith.constant 6 : index
    %c0_111 = arith.constant 0 : index
    %c0_112 = arith.constant 0 : index
    %310 = vector.load %arg1[%c6, %c0_111, %c0_112] : memref<8x16x512xf32, #tpu.memory_space<vmem>>, vector<1x16x512xf32>
    %311 = vector.shape_cast %310 : vector<1x16x512xf32> to vector<16x512xf32>
    %312 = arith.truncf %280 : vector<16x128xf32> to vector<16x128xbf16>
    %c0_113 = arith.constant 0 : index
    %c0_114 = arith.constant 0 : index
    %313 = vector.load %arg2[%c0_113, %c0_114] : memref<128x512xbf16, #tpu.memory_space<vmem>>, vector<128x512xbf16>
    %cst_115 = arith.constant dense<0.000000e+00> : vector<16x512xf32>
    %314 = tpu.matmul %312, %313, %cst_115 {dimension_numbers = #tpu.dot_dimension_numbers<[1], [0], [0], [1], [0, 0, 1, 1], [], []>} : vector<16x128xbf16>, vector<128x512xbf16>, vector<16x512xf32> -> vector<16x512xf32>
    %315 = arith.addf %311, %314 : vector<16x512xf32>
    %316 = vector.extract_strided_slice %315 {offsets = [0, 0], sizes = [16, 384], strides = [1, 1]} : vector<16x512xf32> to vector<16x384xf32>
    %317 = arith.negf %316 : vector<16x384xf32>
    %318 = math.exp %317 : vector<16x384xf32>
    %cst_116 = arith.constant 1.000000e+00 : f32
    %319 = vector.broadcast %cst_116 : f32 to vector<16x384xf32>
    %320 = arith.addf %319, %318 : vector<16x384xf32>
    %321 = arith.divf %319, %320 : vector<16x384xf32>
    %322 = vector.extract_strided_slice %321 {offsets = [0, 0], sizes = [16, 128], strides = [1, 1]} : vector<16x384xf32> to vector<16x128xf32>
    %323 = vector.extract_strided_slice %321 {offsets = [0, 128], sizes = [16, 128], strides = [1, 1]} : vector<16x384xf32> to vector<16x128xf32>
    %324 = vector.extract_strided_slice %321 {offsets = [0, 256], sizes = [16, 128], strides = [1, 1]} : vector<16x384xf32> to vector<16x128xf32>
    %325 = vector.extract_strided_slice %315 {offsets = [0, 384], sizes = [16, 128], strides = [1, 1]} : vector<16x512xf32> to vector<16x128xf32>
    %326 = math.tanh %325 : vector<16x128xf32>
    %327 = arith.mulf %323, %278 : vector<16x128xf32>
    %328 = arith.mulf %322, %326 : vector<16x128xf32>
    %329 = arith.addf %327, %328 : vector<16x128xf32>
    %330 = math.tanh %329 : vector<16x128xf32>
    %331 = arith.mulf %324, %330 : vector<16x128xf32>
    %332 = arith.truncf %331 : vector<16x128xf32> to vector<16x128xbf16>
    %c0_117 = arith.constant 0 : index
    %c0_118 = arith.constant 0 : index
    %c0_119 = arith.constant 0 : index
    %333 = vector.load %arg3[%c0_117, %c0_118, %c0_119] : memref<1x128x512xbf16, #tpu.memory_space<vmem>>, vector<1x128x512xbf16>
    %334 = vector.shape_cast %333 : vector<1x128x512xbf16> to vector<128x512xbf16>
    %cst_120 = arith.constant dense<0.000000e+00> : vector<16x512xf32>
    %335 = tpu.matmul %332, %334, %cst_120 {dimension_numbers = #tpu.dot_dimension_numbers<[1], [0], [0], [1], [0, 0, 1, 1], [], []>} : vector<16x128xbf16>, vector<128x512xbf16>, vector<16x512xf32> -> vector<16x512xf32>
    %336 = arith.truncf %309 : vector<16x128xf32> to vector<16x128xbf16>
    %c0_121 = arith.constant 0 : index
    %c0_122 = arith.constant 0 : index
    %c0_123 = arith.constant 0 : index
    %337 = vector.load %arg4[%c0_121, %c0_122, %c0_123] : memref<1x128x512xbf16, #tpu.memory_space<vmem>>, vector<1x128x512xbf16>
    %338 = vector.shape_cast %337 : vector<1x128x512xbf16> to vector<128x512xbf16>
    %cst_124 = arith.constant dense<0.000000e+00> : vector<16x512xf32>
    %339 = tpu.matmul %336, %338, %cst_124 {dimension_numbers = #tpu.dot_dimension_numbers<[1], [0], [0], [1], [0, 0, 1, 1], [], []>} : vector<16x128xbf16>, vector<128x512xbf16>, vector<16x512xf32> -> vector<16x512xf32>
    %340 = arith.addf %335, %339 : vector<16x512xf32>
    %c0_125 = arith.constant 0 : index
    %c0_126 = arith.constant 0 : index
    %c0_127 = arith.constant 0 : index
    %341 = vector.load %arg5[%c0_125, %c0_126, %c0_127] : memref<1x1x512xf32, #tpu.memory_space<vmem>>, vector<1x1x512xf32>
    %342 = vector.shape_cast %341 : vector<1x1x512xf32> to vector<1x512xf32>
    %343 = vector.broadcast %342 : vector<1x512xf32> to vector<16x512xf32>
    %344 = arith.addf %340, %343 : vector<16x512xf32>
    %345 = vector.extract_strided_slice %344 {offsets = [0, 0], sizes = [16, 384], strides = [1, 1]} : vector<16x512xf32> to vector<16x384xf32>
    %346 = arith.negf %345 : vector<16x384xf32>
    %347 = math.exp %346 : vector<16x384xf32>
    %cst_128 = arith.constant 1.000000e+00 : f32
    %348 = vector.broadcast %cst_128 : f32 to vector<16x384xf32>
    %349 = arith.addf %348, %347 : vector<16x384xf32>
    %350 = arith.divf %348, %349 : vector<16x384xf32>
    %351 = vector.extract_strided_slice %350 {offsets = [0, 0], sizes = [16, 128], strides = [1, 1]} : vector<16x384xf32> to vector<16x128xf32>
    %352 = vector.extract_strided_slice %350 {offsets = [0, 128], sizes = [16, 128], strides = [1, 1]} : vector<16x384xf32> to vector<16x128xf32>
    %353 = vector.extract_strided_slice %350 {offsets = [0, 256], sizes = [16, 128], strides = [1, 1]} : vector<16x384xf32> to vector<16x128xf32>
    %354 = vector.extract_strided_slice %344 {offsets = [0, 384], sizes = [16, 128], strides = [1, 1]} : vector<16x512xf32> to vector<16x128xf32>
    %355 = math.tanh %354 : vector<16x128xf32>
    %356 = arith.mulf %352, %307 : vector<16x128xf32>
    %357 = arith.mulf %351, %355 : vector<16x128xf32>
    %358 = arith.addf %356, %357 : vector<16x128xf32>
    %359 = math.tanh %358 : vector<16x128xf32>
    %360 = arith.mulf %353, %359 : vector<16x128xf32>
    %c7 = arith.constant 7 : index
    %c0_129 = arith.constant 0 : index
    %c0_130 = arith.constant 0 : index
    %361 = vector.load %arg1[%c7, %c0_129, %c0_130] : memref<8x16x512xf32, #tpu.memory_space<vmem>>, vector<1x16x512xf32>
    %362 = vector.shape_cast %361 : vector<1x16x512xf32> to vector<16x512xf32>
    %363 = arith.truncf %331 : vector<16x128xf32> to vector<16x128xbf16>
    %c0_131 = arith.constant 0 : index
    %c0_132 = arith.constant 0 : index
    %364 = vector.load %arg2[%c0_131, %c0_132] : memref<128x512xbf16, #tpu.memory_space<vmem>>, vector<128x512xbf16>
    %cst_133 = arith.constant dense<0.000000e+00> : vector<16x512xf32>
    %365 = tpu.matmul %363, %364, %cst_133 {dimension_numbers = #tpu.dot_dimension_numbers<[1], [0], [0], [1], [0, 0, 1, 1], [], []>} : vector<16x128xbf16>, vector<128x512xbf16>, vector<16x512xf32> -> vector<16x512xf32>
    %366 = arith.addf %362, %365 : vector<16x512xf32>
    %367 = vector.extract_strided_slice %366 {offsets = [0, 0], sizes = [16, 384], strides = [1, 1]} : vector<16x512xf32> to vector<16x384xf32>
    %368 = arith.negf %367 : vector<16x384xf32>
    %369 = math.exp %368 : vector<16x384xf32>
    %cst_134 = arith.constant 1.000000e+00 : f32
    %370 = vector.broadcast %cst_134 : f32 to vector<16x384xf32>
    %371 = arith.addf %370, %369 : vector<16x384xf32>
    %372 = arith.divf %370, %371 : vector<16x384xf32>
    %373 = vector.extract_strided_slice %372 {offsets = [0, 0], sizes = [16, 128], strides = [1, 1]} : vector<16x384xf32> to vector<16x128xf32>
    %374 = vector.extract_strided_slice %372 {offsets = [0, 128], sizes = [16, 128], strides = [1, 1]} : vector<16x384xf32> to vector<16x128xf32>
    %375 = vector.extract_strided_slice %372 {offsets = [0, 256], sizes = [16, 128], strides = [1, 1]} : vector<16x384xf32> to vector<16x128xf32>
    %376 = vector.extract_strided_slice %366 {offsets = [0, 384], sizes = [16, 128], strides = [1, 1]} : vector<16x512xf32> to vector<16x128xf32>
    %377 = math.tanh %376 : vector<16x128xf32>
    %378 = arith.mulf %374, %329 : vector<16x128xf32>
    %379 = arith.mulf %373, %377 : vector<16x128xf32>
    %380 = arith.addf %378, %379 : vector<16x128xf32>
    %381 = math.tanh %380 : vector<16x128xf32>
    %382 = arith.mulf %375, %381 : vector<16x128xf32>
    %383 = arith.truncf %382 : vector<16x128xf32> to vector<16x128xbf16>
    %c0_135 = arith.constant 0 : index
    %c0_136 = arith.constant 0 : index
    %c0_137 = arith.constant 0 : index
    %384 = vector.load %arg3[%c0_135, %c0_136, %c0_137] : memref<1x128x512xbf16, #tpu.memory_space<vmem>>, vector<1x128x512xbf16>
    %385 = vector.shape_cast %384 : vector<1x128x512xbf16> to vector<128x512xbf16>
    %cst_138 = arith.constant dense<0.000000e+00> : vector<16x512xf32>
    %386 = tpu.matmul %383, %385, %cst_138 {dimension_numbers = #tpu.dot_dimension_numbers<[1], [0], [0], [1], [0, 0, 1, 1], [], []>} : vector<16x128xbf16>, vector<128x512xbf16>, vector<16x512xf32> -> vector<16x512xf32>
    %387 = arith.truncf %360 : vector<16x128xf32> to vector<16x128xbf16>
    %c0_139 = arith.constant 0 : index
    %c0_140 = arith.constant 0 : index
    %c0_141 = arith.constant 0 : index
    %388 = vector.load %arg4[%c0_139, %c0_140, %c0_141] : memref<1x128x512xbf16, #tpu.memory_space<vmem>>, vector<1x128x512xbf16>
    %389 = vector.shape_cast %388 : vector<1x128x512xbf16> to vector<128x512xbf16>
    %cst_142 = arith.constant dense<0.000000e+00> : vector<16x512xf32>
    %390 = tpu.matmul %387, %389, %cst_142 {dimension_numbers = #tpu.dot_dimension_numbers<[1], [0], [0], [1], [0, 0, 1, 1], [], []>} : vector<16x128xbf16>, vector<128x512xbf16>, vector<16x512xf32> -> vector<16x512xf32>
    %391 = arith.addf %386, %390 : vector<16x512xf32>
    %c0_143 = arith.constant 0 : index
    %c0_144 = arith.constant 0 : index
    %c0_145 = arith.constant 0 : index
    %392 = vector.load %arg5[%c0_143, %c0_144, %c0_145] : memref<1x1x512xf32, #tpu.memory_space<vmem>>, vector<1x1x512xf32>
    %393 = vector.shape_cast %392 : vector<1x1x512xf32> to vector<1x512xf32>
    %394 = vector.broadcast %393 : vector<1x512xf32> to vector<16x512xf32>
    %395 = arith.addf %391, %394 : vector<16x512xf32>
    %396 = vector.extract_strided_slice %395 {offsets = [0, 0], sizes = [16, 384], strides = [1, 1]} : vector<16x512xf32> to vector<16x384xf32>
    %397 = arith.negf %396 : vector<16x384xf32>
    %398 = math.exp %397 : vector<16x384xf32>
    %cst_146 = arith.constant 1.000000e+00 : f32
    %399 = vector.broadcast %cst_146 : f32 to vector<16x384xf32>
    %400 = arith.addf %399, %398 : vector<16x384xf32>
    %401 = arith.divf %399, %400 : vector<16x384xf32>
    %402 = vector.extract_strided_slice %401 {offsets = [0, 0], sizes = [16, 128], strides = [1, 1]} : vector<16x384xf32> to vector<16x128xf32>
    %403 = vector.extract_strided_slice %401 {offsets = [0, 128], sizes = [16, 128], strides = [1, 1]} : vector<16x384xf32> to vector<16x128xf32>
    %404 = vector.extract_strided_slice %401 {offsets = [0, 256], sizes = [16, 128], strides = [1, 1]} : vector<16x384xf32> to vector<16x128xf32>
    %405 = vector.extract_strided_slice %395 {offsets = [0, 384], sizes = [16, 128], strides = [1, 1]} : vector<16x512xf32> to vector<16x128xf32>
    %406 = math.tanh %405 : vector<16x128xf32>
    %407 = arith.mulf %403, %358 : vector<16x128xf32>
    %408 = arith.mulf %402, %406 : vector<16x128xf32>
    %409 = arith.addf %407, %408 : vector<16x128xf32>
    %410 = math.tanh %409 : vector<16x128xf32>
    %411 = arith.mulf %404, %410 : vector<16x128xf32>
    %c0_147 = arith.constant 0 : index
    %c0_148 = arith.constant 0 : index
    %412 = vector.load %arg6[%c0_147, %c0_148] : memref<16x128xf32, #tpu.memory_space<vmem>>, vector<16x128xf32>
    tpu.vector_store %arg6[%c0_147, %c0_148], %411 {strides = array<i32>} : memref<16x128xf32, #tpu.memory_space<vmem>>, vector<16x128xf32>,
    return
  }
  func.func @transform_0(%arg0: i32) -> (i32, i32, i32) {
    %c0_i32 = arith.constant 0 : i32
    %c0_i32_0 = arith.constant 0 : i32
    %c0_i32_1 = arith.constant 0 : i32
    return %c0_i32, %arg0, %c0_i32_0 : i32, i32, i32
  }
  func.func @transform_1(%arg0: i32) -> (i32, i32) {
    %c0_i32 = arith.constant 0 : i32
    %c0_i32_0 = arith.constant 0 : i32
    %c0_i32_1 = arith.constant 0 : i32
    return %c0_i32, %c0_i32_0 : i32, i32
  }
  func.func @transform_2(%arg0: i32) -> (i32, i32, i32) {
    %c0_i32 = arith.constant 0 : i32
    %c0_i32_0 = arith.constant 0 : i32
    %c0_i32_1 = arith.constant 0 : i32
    %c0_i32_2 = arith.constant 0 : i32
    return %c0_i32, %c0_i32_0, %c0_i32_1 : i32, i32, i32
  }
  func.func @transform_3(%arg0: i32) -> (i32, i32, i32) {
    %c0_i32 = arith.constant 0 : i32
    %c0_i32_0 = arith.constant 0 : i32
    %c0_i32_1 = arith.constant 0 : i32
    %c0_i32_2 = arith.constant 0 : i32
    return %c0_i32, %c0_i32_0, %c0_i32_1 : i32, i32, i32
  }
  func.func @transform_4(%arg0: i32) -> (i32, i32, i32) {
    %c0_i32 = arith.constant 0 : i32
    %c0_i32_0 = arith.constant 0 : i32
    %c0_i32_1 = arith.constant 0 : i32
    %c0_i32_2 = arith.constant 0 : i32
    return %c0_i32, %c0_i32_0, %c0_i32_1 : i32, i32, i32
  }
  func.func @transform_5(%arg0: i32) -> (i32, i32) {
    %c0_i32 = arith.constant 0 : i32
    %c0_i32_0 = arith.constant 0 : i32
    return %arg0, %c0_i32 : i32, i32
  }
}

</mosaic_0001>

<llo_original>
// kernel: tpu_custom_call.1
$region0: #{tpu_custom_call.1}
  #allocation0 [shape = 'u32[]', space=smem, size = 0x4, offset = 0x4, fixed_abs, tag = 'smem constant byte address 0x4 - core index']
  #allocation1 [shape = 'u32[144,128]{1,0:T(1,128)}', space=vmem, size = 0x12000, scoped, tag = 'internal scratch']
  %s0 = inlined_call_operand.hbm [shape: f32[8,16,512], index: 0, kind: input, shape index: {}]
  %s1 = inlined_call_operand.hbm [shape: bf16[128,512], index: 1, kind: input, shape index: {}]
  %s2 = inlined_call_operand.hbm [shape: bf16[1,128,512], index: 2, kind: input, shape index: {}]
  %s3 = inlined_call_operand.hbm [shape: bf16[1,128,512], index: 3, kind: input, shape index: {}]
  %s4 = inlined_call_operand.vmem [shape: f32[1,1,512], index: 4, kind: input, shape index: {}]
  %s5 = inlined_call_operand.hbm [shape: f32[16,128], index: 5, kind: output, shape index: {}]
  %s6 = sld [smem:[#allocation0]]
  $region46: #{tpu_custom_call.1} parent=0
    _
  %s8 = ssub.s32 1, %s6
  %s9 = scalar_select 0, %s8, %s6
  $region1: #{tpu_custom_call.1} parent=0
    #allocation2 [shape = 'u8[262144]{0}', space=vmem, size = 0x40000, scoped, tag = 'input window, operand 0, single buffered']
    #allocation3 [shape = 's32[1]{0}', space=sflag, size = 0x4, scoped, tag = 'scoped memory for tpu_custom_call.1']
    #allocation4 [shape = 's32[1]{0}', space=sflag, size = 0x4, scoped, tag = 'scoped memory for tpu_custom_call.1']
    #allocation5 [shape = 'u8[131072]{0}', space=vmem, size = 0x20000, scoped, tag = 'input window, operand 1, single buffered']
    #allocation6 [shape = 's32[1]{0}', space=sflag, size = 0x4, scoped, tag = 'scoped memory for tpu_custom_call.1']
    #allocation7 [shape = 'u8[131072]{0}', space=vmem, size = 0x20000, scoped, tag = 'input window, operand 2, single buffered']
    #allocation8 [shape = 'u8[131072]{0}', space=vmem, size = 0x20000, scoped, tag = 'input window, operand 3, single buffered']
    #allocation9 [shape = 's32[1]{0}', space=sflag, size = 0x4, scoped, tag = 'scoped memory for tpu_custom_call.1']
    #allocation10 [shape = 'u8[8192]{0}', space=vmem, size = 0x2000, scoped, tag = 'output window, operand 0, single buffered']
    %10 = vsyncpa [#allocation3], 0
    %11 = vsyncpa [#allocation6], 0
    %12 = vsyncpa [#allocation9], 0
    %13 = vsyncpa [#allocation4], 0
    // Predicated region
    $region2: #{tpu_custom_call.1} parent=1 // pred_check
      _
    $region3: #{tpu_custom_call.1} parent=1 // pred_check_branch
      %15 = sbr.rel (0) target = $region5
    $region4: #{tpu_custom_call.1} parent=1 // pred_region
      %s17 = ssub.s32 8192, 8192
      %18 = vsyncadd [#allocation3], %s17
      %s19 = sshll.u32 [#allocation2], 4
      %s20 = int_to_ptr.vmem [resolvable:$true] %s19
      %25 = dma.hbm_to_vmem [thread:$0]  %s0, 8192, %s20, [#allocation3], 512, 512, 32
    $region5: #{tpu_custom_call.1} parent=1 // pred_fallthru
      _
    // Predicated region
    $region6: #{tpu_custom_call.1} parent=1 // pred_check
      _
    $region7: #{tpu_custom_call.1} parent=1 // pred_check_branch
      %27 = sbr.rel (0) target = $region9
    $region8: #{tpu_custom_call.1} parent=1 // pred_region
      %s29 = ssub.s32 4096, 4096
      %30 = vsyncadd [#allocation6], %s29
      %s31 = sshll.u32 [#allocation5], 4
      %s32 = int_to_ptr.vmem [resolvable:$true] %s31
      %37 = dma.hbm_to_vmem [thread:$0]  %s1, 4096, %s32, [#allocation6], 256, 256, 16
    $region9: #{tpu_custom_call.1} parent=1 // pred_fallthru
      _
    // Predicated region
    $region10: #{tpu_custom_call.1} parent=1 // pred_check
      _
    $region11: #{tpu_custom_call.1} parent=1 // pred_check_branch
      %39 = sbr.rel (0) target = $region13
    $region12: #{tpu_custom_call.1} parent=1 // pred_region
      %s41 = ssub.s32 4096, 4096
      %42 = vsyncadd [#allocation6], %s41
      %s43 = sshll.u32 [#allocation7], 4
      %s44 = int_to_ptr.vmem [resolvable:$true] %s43
      %49 = dma.hbm_to_vmem [thread:$0]  %s2, 4096, %s44, [#allocation6], 256, 256, 16
    $region13: #{tpu_custom_call.1} parent=1 // pred_fallthru
      _
    // Predicated region
    $region14: #{tpu_custom_call.1} parent=1 // pred_check
      _
    $region15: #{tpu_custom_call.1} parent=1 // pred_check_branch
      %51 = sbr.rel (0) target = $region17
    $region16: #{tpu_custom_call.1} parent=1 // pred_region
      %s53 = ssub.s32 4096, 4096
      %54 = vsyncadd [#allocation9], %s53
      %s55 = sshll.u32 [#allocation8], 4
      %s56 = int_to_ptr.vmem [resolvable:$true] %s55
      %61 = dma.hbm_to_vmem [thread:$0]  %s3, 4096, %s56, [#allocation9], 256, 256, 16
    $region17: #{tpu_custom_call.1} parent=1 // pred_fallthru
      _
    // Predicated region
    $region18: #{tpu_custom_call.1} parent=1 // pred_check
      _
    $region19: #{tpu_custom_call.1} parent=1 // pred_check_branch
      %63 = sbr.rel (0) target = $region21
    $region20: #{tpu_custom_call.1} parent=1 // pred_region
      _
    $region21: #{tpu_custom_call.1} parent=1 // pred_fallthru
      _
    // Predicated region
    $region22: #{tpu_custom_call.1} parent=1 // pred_check
      _
    $region23: #{tpu_custom_call.1} parent=1 // pred_check_branch
      %65 = sbr.rel (0) target = $region25
    $region24: #{tpu_custom_call.1} parent=1 // pred_region
      %66 = dma.done [#allocation3], 8192
    $region25: #{tpu_custom_call.1} parent=1 // pred_fallthru
      _
    // Predicated region
    $region26: #{tpu_custom_call.1} parent=1 // pred_check
      _
    $region27: #{tpu_custom_call.1} parent=1 // pred_check_branch
      %68 = sbr.rel (0) target = $region29
    $region28: #{tpu_custom_call.1} parent=1 // pred_region
      %69 = dma.done [#allocation6], 4096
    $region29: #{tpu_custom_call.1} parent=1 // pred_fallthru
      _
    // Predicated region
    $region30: #{tpu_custom_call.1} parent=1 // pred_check
      _
    $region31: #{tpu_custom_call.1} parent=1 // pred_check_branch
      %71 = sbr.rel (0) target = $region33
    $region32: #{tpu_custom_call.1} parent=1 // pred_region
      %72 = dma.done [#allocation6], 4096
    $region33: #{tpu_custom_call.1} parent=1 // pred_fallthru
      _
    // Predicated region
    $region34: #{tpu_custom_call.1} parent=1 // pred_check
      _
    $region35: #{tpu_custom_call.1} parent=1 // pred_check_branch
      %74 = sbr.rel (0) target = $region37
    $region36: #{tpu_custom_call.1} parent=1 // pred_region
      %75 = dma.done [#allocation9], 4096
    $region37: #{tpu_custom_call.1} parent=1 // pred_fallthru
      _
    %v77 = vld [vmem:[#allocation2] sm:$0xff]
    %v78 = vld [vmem:[#allocation2 + $0x8] sm:$0xff]
    %v79 = vld [vmem:[#allocation2 + $0x10] sm:$0xff]
    %v80 = vld [vmem:[#allocation2 + $0x18] sm:$0xff]
    %v81 = vld [vmem:[#allocation2 + $0x20] sm:$0xff]
    %v82 = vld [vmem:[#allocation2 + $0x28] sm:$0xff]
    %v83 = vld [vmem:[#allocation2 + $0x30] sm:$0xff]
    %v84 = vld [vmem:[#allocation2 + $0x38] sm:$0xff]
    %v85 = vld [vmem:[#allocation5] sm:$0xff]
    %v86 = vld [vmem:[#allocation5 + $0x8] sm:$0xff]
    %v87 = vld [vmem:[#allocation5 + $0x10] sm:$0xff]
    %v88 = vld [vmem:[#allocation5 + $0x18] sm:$0xff]
    %v89 = vld [vmem:[#allocation5 + $0x20] sm:$0xff]
    %v90 = vld [vmem:[#allocation5 + $0x28] sm:$0xff]
    %v91 = vld [vmem:[#allocation5 + $0x30] sm:$0xff]
    %v92 = vld [vmem:[#allocation5 + $0x38] sm:$0xff]
    %v93 = vld [vmem:[#allocation5 + $0x40] sm:$0xff]
    %v94 = vld [vmem:[#allocation5 + $0x48] sm:$0xff]
    %v95 = vld [vmem:[#allocation5 + $0x50] sm:$0xff]
    %v96 = vld [vmem:[#allocation5 + $0x58] sm:$0xff]
    %v97 = vld [vmem:[#allocation5 + $0x60] sm:$0xff]
    %v98 = vld [vmem:[#allocation5 + $0x68] sm:$0xff]
    %v99 = vld [vmem:[#allocation5 + $0x70] sm:$0xff]
    %v100 = vld [vmem:[#allocation5 + $0x78] sm:$0xff]
    %v101 = vld [vmem:[#allocation5 + $0x80] sm:$0xff]
    %v102 = vld [vmem:[#allocation5 + $0x88] sm:$0xff]
    %v103 = vld [vmem:[#allocation5 + $0x90] sm:$0xff]
    %v104 = vld [vmem:[#allocation5 + $0x98] sm:$0xff]
    %v105 = vld [vmem:[#allocation5 + $0xa0] sm:$0xff]
    %v106 = vld [vmem:[#allocation5 + $0xa8] sm:$0xff]
    %v107 = vld [vmem:[#allocation5 + $0xb0] sm:$0xff]
    %v108 = vld [vmem:[#allocation5 + $0xb8] sm:$0xff]
    %v109 = vld [vmem:[#allocation5 + $0xc0] sm:$0xff]
    %v110 = vld [vmem:[#allocation5 + $0xc8] sm:$0xff]
    %v111 = vld [vmem:[#allocation5 + $0xd0] sm:$0xff]
    %v112 = vld [vmem:[#allocation5 + $0xd8] sm:$0xff]
    %v113 = vld [vmem:[#allocation5 + $0xe0] sm:$0xff]
    %v114 = vld [vmem:[#allocation5 + $0xe8] sm:$0xff]
    %v115 = vld [vmem:[#allocation5 + $0xf0] sm:$0xff]
    %v116 = vld [vmem:[#allocation5 + $0xf8] sm:$0xff]
    %v149 = vunpack.c.l.b16 %v85
    %v150 = vunpack.c.h.b16 %v85
    %v151 = vunpack.c.l.b16 %v86
    %v152 = vunpack.c.h.b16 %v86
    %v153 = vunpack.c.l.b16 %v87
    %v154 = vunpack.c.h.b16 %v87
    %v155 = vunpack.c.l.b16 %v88
    %v156 = vunpack.c.h.b16 %v88
    %v157 = vunpack.c.l.b16 %v89
    %v158 = vunpack.c.h.b16 %v89
    %v159 = vunpack.c.l.b16 %v90
    %v160 = vunpack.c.h.b16 %v90
    %v161 = vunpack.c.l.b16 %v91
    %v162 = vunpack.c.h.b16 %v91
    %v163 = vunpack.c.l.b16 %v92
    %v164 = vunpack.c.h.b16 %v92
    %v165 = vunpack.c.l.b16 %v93
    %v166 = vunpack.c.h.b16 %v93
    %v167 = vunpack.c.l.b16 %v94
    %v168 = vunpack.c.h.b16 %v94
    %v169 = vunpack.c.l.b16 %v95
    %v170 = vunpack.c.h.b16 %v95
    %v171 = vunpack.c.l.b16 %v96
    %v172 = vunpack.c.h.b16 %v96
    %v173 = vunpack.c.l.b16 %v97
    %v174 = vunpack.c.h.b16 %v97
    %v175 = vunpack.c.l.b16 %v98
    %v176 = vunpack.c.h.b16 %v98
    %v177 = vunpack.c.l.b16 %v99
    %v178 = vunpack.c.h.b16 %v99
    %v179 = vunpack.c.l.b16 %v100
    %v180 = vunpack.c.h.b16 %v100
    %v181 = vunpack.c.l.b16 %v101
    %v182 = vunpack.c.h.b16 %v101
    %v183 = vunpack.c.l.b16 %v102
    %v184 = vunpack.c.h.b16 %v102
    %v185 = vunpack.c.l.b16 %v103
    %v186 = vunpack.c.h.b16 %v103
    %v187 = vunpack.c.l.b16 %v104
    %v188 = vunpack.c.h.b16 %v104
    %v189 = vunpack.c.l.b16 %v105
    %v190 = vunpack.c.h.b16 %v105
    %v191 = vunpack.c.l.b16 %v106
    %v192 = vunpack.c.h.b16 %v106
    %v193 = vunpack.c.l.b16 %v107
    %v194 = vunpack.c.h.b16 %v107
    %v195 = vunpack.c.l.b16 %v108
    %v196 = vunpack.c.h.b16 %v108
    %v197 = vunpack.c.l.b16 %v109
    %v198 = vunpack.c.h.b16 %v109
    %v199 = vunpack.c.l.b16 %v110
    %v200 = vunpack.c.h.b16 %v110
    %v201 = vunpack.c.l.b16 %v111
    %v202 = vunpack.c.h.b16 %v111
    %v203 = vunpack.c.l.b16 %v112
    %v204 = vunpack.c.h.b16 %v112
    %v205 = vunpack.c.l.b16 %v113
    %v206 = vunpack.c.h.b16 %v113
    %v207 = vunpack.c.l.b16 %v114
    %v208 = vunpack.c.h.b16 %v114
    %v209 = vunpack.c.l.b16 %v115
    %v210 = vunpack.c.h.b16 %v115
    %v211 = vunpack.c.l.b16 %v116
    %v212 = vunpack.c.h.b16 %v116
    %v213 = vpack.c.b16 %v153, %v149
    %v214 = vpack.c.b16 %v154, %v150
    %v215 = vpack.c.b16 %v155, %v151
    %v216 = vpack.c.b16 %v156, %v152
    %v217 = vpack.c.b16 %v161, %v157
    %v218 = vpack.c.b16 %v162, %v158
    %v219 = vpack.c.b16 %v163, %v159
    %v220 = vpack.c.b16 %v164, %v160
    %v221 = vpack.c.b16 %v169, %v165
    %v222 = vpack.c.b16 %v170, %v166
    %v223 = vpack.c.b16 %v171, %v167
    %v224 = vpack.c.b16 %v172, %v168
    %v225 = vpack.c.b16 %v177, %v173
    %v226 = vpack.c.b16 %v178, %v174
    %v227 = vpack.c.b16 %v179, %v175
    %v228 = vpack.c.b16 %v180, %v176
    %v229 = vpack.c.b16 %v185, %v181
    %v230 = vpack.c.b16 %v186, %v182
    %v231 = vpack.c.b16 %v187, %v183
    %v232 = vpack.c.b16 %v188, %v184
    %v233 = vpack.c.b16 %v193, %v189
    %v234 = vpack.c.b16 %v194, %v190
    %v235 = vpack.c.b16 %v195, %v191
    %v236 = vpack.c.b16 %v196, %v192
    %v237 = vpack.c.b16 %v201, %v197
    %v238 = vpack.c.b16 %v202, %v198
    %v239 = vpack.c.b16 %v203, %v199
    %v240 = vpack.c.b16 %v204, %v200
    %v241 = vpack.c.b16 %v209, %v205
    %v242 = vpack.c.b16 %v210, %v206
    %v243 = vpack.c.b16 %v211, %v207
    %v244 = vpack.c.b16 %v212, %v208
    %277 = vmatprep.subr.bf16.mxu0 %v242
    %278 = vmatpush1.bf16.msra.mxu0 %v241
    %279 = vmatprep.subr.bf16.mxu0 %v238
    %280 = vmatpush1.bf16.msra.mxu0 %v237
    %281 = vmatprep.subr.bf16.mxu0 %v234
    %282 = vmatpush1.bf16.msra.mxu0 %v233
    %283 = vmatprep.subr.bf16.mxu0 %v230
    %284 = vmatpush1.bf16.msra.mxu0 %v229
    %285 = vmatprep.subr.bf16.mxu0 %v226
    %286 = vmatpush1.bf16.msra.mxu0 %v225
    %287 = vmatprep.subr.bf16.mxu0 %v222
    %288 = vmatpush1.bf16.msra.mxu0 %v221
    %289 = vmatprep.subr.bf16.mxu0 %v218
    %290 = vmatpush1.bf16.msra.mxu0 %v217
    %291 = vmatprep.subr.bf16.mxu0 %v214
    %292 = vmatpush1.bf16.msra.mxu0 %v213
    %293 = vmatprep.subr.bf16.mxu0 0
    %294 = vmatpush2.bf16.msra.mxu0 0
    %295 = vmatprep.subr.bf16.mxu0 0
    %296 = vmatpush2.bf16.msra.mxu0 0
    %297 = vmatprep.subr.bf16.mxu0 0
    %298 = vmatpush2.bf16.msra.mxu0 0
    %299 = vmatprep.subr.bf16.mxu0 0
    %300 = vmatpush2.bf16.msra.mxu0 0
    %301 = vmatprep.subr.bf16.mxu0 0
    %302 = vmatpush2.bf16.msra.mxu0 0
    %303 = vmatprep.subr.bf16.mxu0 0
    %304 = vmatpush2.bf16.msra.mxu0 0
    %305 = vmatprep.subr.bf16.mxu0 0
    %306 = vmatpush2.bf16.msra.mxu0 0
    %307 = vmatprep.subr.bf16.mxu0 0
    %308 = vmatpush2.bf16.msra.mxu0 0
    %309 = vmatprep.mubr.bf16.mxu0 0
    %310 = vmatmul.mubr.bf16.gmra.mxu0 0
    %v311 = vpop.f32.mrf.mxu0
    %v312 = vadd.f32 0.0, %v311
    %v313 = vpop.f32.mrf.mxu0
    %v314 = vadd.f32 0.0, %v313
    %v315 = vpop.f32.mrf.mxu0
    %v316 = vadd.f32 0.0, %v315
    %v317 = vpop.f32.mrf.mxu0
    %v318 = vadd.f32 0.0, %v317
    %319 = vdwg.mxu0
    %320 = vmatprep.subr.bf16.mxu0 %v244
    %321 = vmatpush1.bf16.msra.mxu0 %v243
    %322 = vmatprep.subr.bf16.mxu0 %v240
    %323 = vmatpush1.bf16.msra.mxu0 %v239
    %324 = vmatprep.subr.bf16.mxu0 %v236
    %325 = vmatpush1.bf16.msra.mxu0 %v235
    %326 = vmatprep.subr.bf16.mxu0 %v232
    %327 = vmatpush1.bf16.msra.mxu0 %v231
    %328 = vmatprep.subr.bf16.mxu0 %v228
    %329 = vmatpush1.bf16.msra.mxu0 %v227
    %330 = vmatprep.subr.bf16.mxu0 %v224
    %331 = vmatpush1.bf16.msra.mxu0 %v223
    %332 = vmatprep.subr.bf16.mxu0 %v220
    %333 = vmatpush1.bf16.msra.mxu0 %v219
    %334 = vmatprep.subr.bf16.mxu0 %v216
    %335 = vmatpush1.bf16.msra.mxu0 %v215
    %336 = vmatprep.subr.bf16.mxu0 0
    %337 = vmatpush2.bf16.msra.mxu0 0
    %338 = vmatprep.subr.bf16.mxu0 0
    %339 = vmatpush2.bf16.msra.mxu0 0
    %340 = vmatprep.subr.bf16.mxu0 0
    %341 = vmatpush2.bf16.msra.mxu0 0
    %342 = vmatprep.subr.bf16.mxu0 0
    %343 = vmatpush2.bf16.msra.mxu0 0
    %344 = vmatprep.subr.bf16.mxu0 0
    %345 = vmatpush2.bf16.msra.mxu0 0
    %346 = vmatprep.subr.bf16.mxu0 0
    %347 = vmatpush2.bf16.msra.mxu0 0
    %348 = vmatprep.subr.bf16.mxu0 0
    %349 = vmatpush2.bf16.msra.mxu0 0
    %350 = vmatprep.subr.bf16.mxu0 0
    %351 = vmatpush2.bf16.msra.mxu0 0
    %352 = vmatprep.mubr.bf16.mxu0 0
    %353 = vmatmul.mubr.bf16.gmra.mxu0 0
    %v354 = vpop.f32.mrf.mxu0
    %v355 = vadd.f32 0.0, %v354
    %v356 = vpop.f32.mrf.mxu0
    %v357 = vadd.f32 0.0, %v356
    %v358 = vpop.f32.mrf.mxu0
    %v359 = vadd.f32 0.0, %v358
    %v360 = vpop.f32.mrf.mxu0
    %v361 = vadd.f32 0.0, %v360
    %362 = vdwg.mxu0
    %v363 = vadd.f32 %v77, %v312
    %v364 = vadd.f32 %v78, %v314
    %v365 = vadd.f32 %v79, %v355
    %v366 = vadd.f32 %v80, %v357
    %v367 = vadd.f32 %v81, %v316
    %v368 = vadd.f32 %v82, %v318
    %v369 = vadd.f32 %v83, %v359
    %v370 = vadd.f32 %v84, %v361
    %v371 = vxor.u32 %v363, 2147483648
    %v372 = vxor.u32 %v364, 2147483648
    %v373 = vxor.u32 %v365, 2147483648
    %v374 = vxor.u32 %v367, 2147483648
    %v375 = vxor.u32 %v368, 2147483648
    %v376 = vxor.u32 %v369, 2147483648
    %v377 = vmul.f32 %v371, 1.442695
    %v378 = vpow.pop %v377
    %v379 = vmul.f32 %v372, 1.442695
    %v380 = vpow.pop %v379
    %v381 = vmul.f32 %v373, 1.442695
    %v382 = vpow.pop %v381
    %v383 = vmul.f32 %v374, 1.442695
    %v384 = vpow.pop %v383
    %v385 = vmul.f32 %v375, 1.442695
    %v386 = vpow.pop %v385
    %v387 = vmul.f32 %v376, 1.442695
    %v388 = vpow.pop %v387
    %v389 = vadd.f32 %v378, 1.0
    %v390 = vadd.f32 %v380, 1.0
    %v391 = vadd.f32 %v382, 1.0
    %v392 = vadd.f32 %v384, 1.0
    %v393 = vadd.f32 %v386, 1.0
    %v394 = vadd.f32 %v388, 1.0
    %v395 = vrcp.pop %v389
    %v396 = vmul.f32 1.0, %v395
    %v397 = vrcp.pop %v390
    %v398 = vmul.f32 1.0, %v397
    %v399 = vrcp.pop %v391
    %v400 = vmul.f32 1.0, %v399
    %v401 = vrcp.pop %v392
    %v402 = vmul.f32 1.0, %v401
    %v403 = vrcp.pop %v393
    %v404 = vmul.f32 1.0, %v403
    %v405 = vrcp.pop %v394
    %v406 = vmul.f32 1.0, %v405
    %v407 = vtanh.pop %v366
    %v408 = vtanh.pop %v370
    %v409 = vmul.f32 %v398, 0.0
    %v410 = vmul.f32 %v404, 0.0
    %v411 = vmul.f32 %v396, %v407
    %v412 = vmul.f32 %v402, %v408
    %v413 = vadd.f32 %v409, %v411
    %v414 = vadd.f32 %v410, %v412
    %v415 = vtanh.pop %v413
    %v416 = vtanh.pop %v414
    %v417 = vmul.f32 %v400, %v415
    %v418 = vmul.f32 %v406, %v416
    %v419 = vpack.c.bf16 %v418, %v417
    %v420 = vld [vmem:[#allocation7] sm:$0xff]
    %v421 = vld [vmem:[#allocation7 + $0x8] sm:$0xff]
    %v422 = vld [vmem:[#allocation7 + $0x10] sm:$0xff]
    %v423 = vld [vmem:[#allocation7 + $0x18] sm:$0xff]
    %v424 = vld [vmem:[#allocation7 + $0x20] sm:$0xff]
    %v425 = vld [vmem:[#allocation7 + $0x28] sm:$0xff]
    %v426 = vld [vmem:[#allocation7 + $0x30] sm:$0xff]
    %v427 = vld [vmem:[#allocation7 + $0x38] sm:$0xff]
    %v428 = vld [vmem:[#allocation7 + $0x40] sm:$0xff]
    %v429 = vld [vmem:[#allocation7 + $0x48] sm:$0xff]
    %v430 = vld [vmem:[#allocation7 + $0x50] sm:$0xff]
    %v431 = vld [vmem:[#allocation7 + $0x58] sm:$0xff]
    %v432 = vld [vmem:[#allocation7 + $0x60] sm:$0xff]
    %v433 = vld [vmem:[#allocation7 + $0x68] sm:$0xff]
    %v434 = vld [vmem:[#allocation7 + $0x70] sm:$0xff]
    %v435 = vld [vmem:[#allocation7 + $0x78] sm:$0xff]
    %v436 = vld [vmem:[#allocation7 + $0x80] sm:$0xff]
    %v437 = vld [vmem:[#allocation7 + $0x88] sm:$0xff]
    %v438 = vld [vmem:[#allocation7 + $0x90] sm:$0xff]
    %v439 = vld [vmem:[#allocation7 + $0x98] sm:$0xff]
    %v440 = vld [vmem:[#allocation7 + $0xa0] sm:$0xff]
    %v441 = vld [vmem:[#allocation7 + $0xa8] sm:$0xff]
    %v442 = vld [vmem:[#allocation7 + $0xb0] sm:$0xff]
    %v443 = vld [vmem:[#allocation7 + $0xb8] sm:$0xff]
    %v444 = vld [vmem:[#allocation7 + $0xc0] sm:$0xff]
    %v445 = vld [vmem:[#allocation7 + $0xc8] sm:$0xff]
    %v446 = vld [vmem:[#allocation7 + $0xd0] sm:$0xff]
    %v447 = vld [vmem:[#allocation7 + $0xd8] sm:$0xff]
    %v448 = vld [vmem:[#allocation7 + $0xe0] sm:$0xff]
    %v449 = vld [vmem:[#allocation7 + $0xe8] sm:$0xff]
    %v450 = vld [vmem:[#allocation7 + $0xf0] sm:$0xff]
    %v451 = vld [vmem:[#allocation7 + $0xf8] sm:$0xff]
    %v452 = vld [vmem:[#allocation8] sm:$0xff]
    %v453 = vld [vmem:[#allocation8 + $0x8] sm:$0xff]
    %v454 = vld [vmem:[#allocation8 + $0x10] sm:$0xff]
    %v455 = vld [vmem:[#allocation8 + $0x18] sm:$0xff]
    %v456 = vld [vmem:[#allocation8 + $0x20] sm:$0xff]
    %v457 = vld [vmem:[#allocation8 + $0x28] sm:$0xff]
    %v458 = vld [vmem:[#allocation8 + $0x30] sm:$0xff]
    %v459 = vld [vmem:[#allocation8 + $0x38] sm:$0xff]
    %v460 = vld [vmem:[#allocation8 + $0x40] sm:$0xff]
    %v461 = vld [vmem:[#allocation8 + $0x48] sm:$0xff]
    %v462 = vld [vmem:[#allocation8 + $0x50] sm:$0xff]
    %v463 = vld [vmem:[#allocation8 + $0x58] sm:$0xff]
    %v464 = vld [vmem:[#allocation8 + $0x60] sm:$0xff]
    %v465 = vld [vmem:[#allocation8 + $0x68] sm:$0xff]
    %v466 = vld [vmem:[#allocation8 + $0x70] sm:$0xff]
    %v467 = vld [vmem:[#allocation8 + $0x78] sm:$0xff]
    %v468 = vld [vmem:[#allocation8 + $0x80] sm:$0xff]
    %v469 = vld [vmem:[#allocation8 + $0x88] sm:$0xff]
    %v470 = vld [vmem:[#allocation8 + $0x90] sm:$0xff]
    %v471 = vld [vmem:[#allocation8 + $0x98] sm:$0xff]
    %v472 = vld [vmem:[#allocation8 + $0xa0] sm:$0xff]
    %v473 = vld [vmem:[#allocation8 + $0xa8] sm:$0xff]
    %v474 = vld [vmem:[#allocation8 + $0xb0] sm:$0xff]
    %v475 = vld [vmem:[#allocation8 + $0xb8] sm:$0xff]
    %v476 = vld [vmem:[#allocation8 + $0xc0] sm:$0xff]
    %v477 = vld [vmem:[#allocation8 + $0xc8] sm:$0xff]
    %v478 = vld [vmem:[#allocation8 + $0xd0] sm:$0xff]
    %v479 = vld [vmem:[#allocation8 + $0xd8] sm:$0xff]
    %v480 = vld [vmem:[#allocation8 + $0xe0] sm:$0xff]
    %v481 = vld [vmem:[#allocation8 + $0xe8] sm:$0xff]
    %v482 = vld [vmem:[#allocation8 + $0xf0] sm:$0xff]
    %v483 = vld [vmem:[#allocation8 + $0xf8] sm:$0xff]
    %v516 = vunpack.c.l.b16 %v452
    %v517 = vunpack.c.h.b16 %v452
    %v518 = vunpack.c.l.b16 %v453
    %v519 = vunpack.c.h.b16 %v453
    %v520 = vunpack.c.l.b16 %v454
    %v521 = vunpack.c.h.b16 %v454
    %v522 = vunpack.c.l.b16 %v455
    %v523 = vunpack.c.h.b16 %v455
    %v524 = vunpack.c.l.b16 %v456
    %v525 = vunpack.c.h.b16 %v456
    %v526 = vunpack.c.l.b16 %v457
    %v527 = vunpack.c.h.b16 %v457
    %v528 = vunpack.c.l.b16 %v458
    %v529 = vunpack.c.h.b16 %v458
    %v530 = vunpack.c.l.b16 %v459
    %v531 = vunpack.c.h.b16 %v459
    %v532 = vunpack.c.l.b16 %v460
    %v533 = vunpack.c.h.b16 %v460
    %v534 = vunpack.c.l.b16 %v461
    %v535 = vunpack.c.h.b16 %v461
    %v536 = vunpack.c.l.b16 %v462
    %v537 = vunpack.c.h.b16 %v462
    %v538 = vunpack.c.l.b16 %v463
    %v539 = vunpack.c.h.b16 %v463
    %v540 = vunpack.c.l.b16 %v464
    %v541 = vunpack.c.h.b16 %v464
    %v542 = vunpack.c.l.b16 %v465
    %v543 = vunpack.c.h.b16 %v465
    %v544 = vunpack.c.l.b16 %v466
    %v545 = vunpack.c.h.b16 %v466
    %v546 = vunpack.c.l.b16 %v467
    %v547 = vunpack.c.h.b16 %v467
    %v548 = vunpack.c.l.b16 %v468
    %v549 = vunpack.c.h.b16 %v468
    %v550 = vunpack.c.l.b16 %v469
    %v551 = vunpack.c.h.b16 %v469
    %v552 = vunpack.c.l.b16 %v470
    %v553 = vunpack.c.h.b16 %v470
    %v554 = vunpack.c.l.b16 %v471
    %v555 = vunpack.c.h.b16 %v471
    %v556 = vunpack.c.l.b16 %v472
    %v557 = vunpack.c.h.b16 %v472
    %v558 = vunpack.c.l.b16 %v473
    %v559 = vunpack.c.h.b16 %v473
    %v560 = vunpack.c.l.b16 %v474
    %v561 = vunpack.c.h.b16 %v474
    %v562 = vunpack.c.l.b16 %v475
    %v563 = vunpack.c.h.b16 %v475
    %v564 = vunpack.c.l.b16 %v476
    %v565 = vunpack.c.h.b16 %v476
    %v566 = vunpack.c.l.b16 %v477
    %v567 = vunpack.c.h.b16 %v477
    %v568 = vunpack.c.l.b16 %v478
    %v569 = vunpack.c.h.b16 %v478
    %v570 = vunpack.c.l.b16 %v479
    %v571 = vunpack.c.h.b16 %v479
    %v572 = vunpack.c.l.b16 %v480
    %v573 = vunpack.c.h.b16 %v480
    %v574 = vunpack.c.l.b16 %v481
    %v575 = vunpack.c.h.b16 %v481
    %v576 = vunpack.c.l.b16 %v482
    %v577 = vunpack.c.h.b16 %v482
    %v578 = vunpack.c.l.b16 %v483
    %v579 = vunpack.c.h.b16 %v483
    %v580 = vpack.c.b16 %v520, %v516
    %v581 = vpack.c.b16 %v521, %v517
    %v582 = vpack.c.b16 %v522, %v518
    %v583 = vpack.c.b16 %v523, %v519
    %v584 = vpack.c.b16 %v528, %v524
    %v585 = vpack.c.b16 %v529, %v525
    %v586 = vpack.c.b16 %v530, %v526
    %v587 = vpack.c.b16 %v531, %v527
    %v588 = vpack.c.b16 %v536, %v532
    %v589 = vpack.c.b16 %v537, %v533
    %v590 = vpack.c.b16 %v538, %v534
    %v591 = vpack.c.b16 %v539, %v535
    %v592 = vpack.c.b16 %v544, %v540
    %v593 = vpack.c.b16 %v545, %v541
    %v594 = vpack.c.b16 %v546, %v542
    %v595 = vpack.c.b16 %v547, %v543
    %v596 = vpack.c.b16 %v552, %v548
    %v597 = vpack.c.b16 %v553, %v549
    %v598 = vpack.c.b16 %v554, %v550
    %v599 = vpack.c.b16 %v555, %v551
    %v600 = vpack.c.b16 %v560, %v556
    %v601 = vpack.c.b16 %v561, %v557
    %v602 = vpack.c.b16 %v562, %v558
    %v603 = vpack.c.b16 %v563, %v559
    %v604 = vpack.c.b16 %v568, %v564
    %v605 = vpack.c.b16 %v569, %v565
    %v606 = vpack.c.b16 %v570, %v566
    %v607 = vpack.c.b16 %v571, %v567
    %v608 = vpack.c.b16 %v576, %v572
    %v609 = vpack.c.b16 %v577, %v573
    %v610 = vpack.c.b16 %v578, %v574
    %v611 = vpack.c.b16 %v579, %v575
    %644 = vmatprep.subr.bf16.mxu0 %v609
    %645 = vmatpush1.bf16.msra.mxu0 %v608
    %646 = vmatprep.subr.bf16.mxu0 %v605
    %647 = vmatpush1.bf16.msra.mxu0 %v604
    %648 = vmatprep.subr.bf16.mxu0 %v601
    %649 = vmatpush1.bf16.msra.mxu0 %v600
    %650 = vmatprep.subr.bf16.mxu0 %v597
    %651 = vmatpush1.bf16.msra.mxu0 %v596
    %652 = vmatprep.subr.bf16.mxu0 %v593
    %653 = vmatpush1.bf16.msra.mxu0 %v592
    %654 = vmatprep.subr.bf16.mxu0 %v589
    %655 = vmatpush1.bf16.msra.mxu0 %v588
    %656 = vmatprep.subr.bf16.mxu0 %v585
    %657 = vmatpush1.bf16.msra.mxu0 %v584
    %658 = vmatprep.subr.bf16.mxu0 %v581
    %659 = vmatpush1.bf16.msra.mxu0 %v580
    %660 = vmatprep.subr.bf16.mxu0 0
    %661 = vmatpush2.bf16.msra.mxu0 0
    %662 = vmatprep.subr.bf16.mxu0 0
    %663 = vmatpush2.bf16.msra.mxu0 0
    %664 = vmatprep.subr.bf16.mxu0 0
    %665 = vmatpush2.bf16.msra.mxu0 0
    %666 = vmatprep.subr.bf16.mxu0 0
    %667 = vmatpush2.bf16.msra.mxu0 0
    %668 = vmatprep.subr.bf16.mxu0 0
    %669 = vmatpush2.bf16.msra.mxu0 0
    %670 = vmatprep.subr.bf16.mxu0 0
    %671 = vmatpush2.bf16.msra.mxu0 0
    %672 = vmatprep.subr.bf16.mxu0 0
    %673 = vmatpush2.bf16.msra.mxu0 0
    %674 = vmatprep.subr.bf16.mxu0 0
    %675 = vmatpush2.bf16.msra.mxu0 0
    %676 = vmatprep.mubr.bf16.mxu0 0
    %677 = vmatmul.mubr.bf16.gmra.mxu0 0
    %v678 = vpop.f32.mrf.mxu0
    %v679 = vadd.f32 0.0, %v678
    %v680 = vpop.f32.mrf.mxu0
    %v681 = vadd.f32 0.0, %v680
    %v682 = vpop.f32.mrf.mxu0
    %v683 = vadd.f32 0.0, %v682
    %v684 = vpop.f32.mrf.mxu0
    %v685 = vadd.f32 0.0, %v684
    %686 = vdwg.mxu0
    %687 = vmatprep.subr.bf16.mxu0 %v611
    %688 = vmatpush1.bf16.msra.mxu0 %v610
    %689 = vmatprep.subr.bf16.mxu0 %v607
    %690 = vmatpush1.bf16.msra.mxu0 %v606
    %691 = vmatprep.subr.bf16.mxu0 %v603
    %692 = vmatpush1.bf16.msra.mxu0 %v602
    %693 = vmatprep.subr.bf16.mxu0 %v599
    %694 = vmatpush1.bf16.msra.mxu0 %v598
    %695 = vmatprep.subr.bf16.mxu0 %v595
    %696 = vmatpush1.bf16.msra.mxu0 %v594
    %697 = vmatprep.subr.bf16.mxu0 %v591
    %698 = vmatpush1.bf16.msra.mxu0 %v590
    %699 = vmatprep.subr.bf16.mxu0 %v587
    %700 = vmatpush1.bf16.msra.mxu0 %v586
    %701 = vmatprep.subr.bf16.mxu0 %v583
    %702 = vmatpush1.bf16.msra.mxu0 %v582
    %703 = vmatprep.subr.bf16.mxu0 0
    %704 = vmatpush2.bf16.msra.mxu0 0
    %705 = vmatprep.subr.bf16.mxu0 0
    %706 = vmatpush2.bf16.msra.mxu0 0
    %707 = vmatprep.subr.bf16.mxu0 0
    %708 = vmatpush2.bf16.msra.mxu0 0
    %709 = vmatprep.subr.bf16.mxu0 0
    %710 = vmatpush2.bf16.msra.mxu0 0
    %711 = vmatprep.subr.bf16.mxu0 0
    %712 = vmatpush2.bf16.msra.mxu0 0
    %713 = vmatprep.subr.bf16.mxu0 0
    %714 = vmatpush2.bf16.msra.mxu0 0
    %715 = vmatprep.subr.bf16.mxu0 0
    %716 = vmatpush2.bf16.msra.mxu0 0
    %717 = vmatprep.subr.bf16.mxu0 0
    %718 = vmatpush2.bf16.msra.mxu0 0
    %719 = vmatprep.mubr.bf16.mxu0 0
    %720 = vmatmul.mubr.bf16.gmra.mxu0 0
    %v721 = vpop.f32.mrf.mxu0
    %v722 = vadd.f32 0.0, %v721
    %v723 = vpop.f32.mrf.mxu0
    %v724 = vadd.f32 0.0, %v723
    %v725 = vpop.f32.mrf.mxu0
    %v726 = vadd.f32 0.0, %v725
    %v727 = vpop.f32.mrf.mxu0
    %v728 = vadd.f32 0.0, %v727
    %729 = vdwg.mxu0
    %v762 = vunpack.c.l.b16 %v420
    %v763 = vunpack.c.h.b16 %v420
    %v764 = vunpack.c.l.b16 %v421
    %v765 = vunpack.c.h.b16 %v421
    %v766 = vunpack.c.l.b16 %v422
    %v767 = vunpack.c.h.b16 %v422
    %v768 = vunpack.c.l.b16 %v423
    %v769 = vunpack.c.h.b16 %v423
    %v770 = vunpack.c.l.b16 %v424
    %v771 = vunpack.c.h.b16 %v424
    %v772 = vunpack.c.l.b16 %v425
    %v773 = vunpack.c.h.b16 %v425
    %v774 = vunpack.c.l.b16 %v426
    %v775 = vunpack.c.h.b16 %v426
    %v776 = vunpack.c.l.b16 %v427
    %v777 = vunpack.c.h.b16 %v427
    %v778 = vunpack.c.l.b16 %v428
    %v779 = vunpack.c.h.b16 %v428
    %v780 = vunpack.c.l.b16 %v429
    %v781 = vunpack.c.h.b16 %v429
    %v782 = vunpack.c.l.b16 %v430
    %v783 = vunpack.c.h.b16 %v430
    %v784 = vunpack.c.l.b16 %v431
    %v785 = vunpack.c.h.b16 %v431
    %v786 = vunpack.c.l.b16 %v432
    %v787 = vunpack.c.h.b16 %v432
    %v788 = vunpack.c.l.b16 %v433
    %v789 = vunpack.c.h.b16 %v433
    %v790 = vunpack.c.l.b16 %v434
    %v791 = vunpack.c.h.b16 %v434
    %v792 = vunpack.c.l.b16 %v435
    %v793 = vunpack.c.h.b16 %v435
    %v794 = vunpack.c.l.b16 %v436
    %v795 = vunpack.c.h.b16 %v436
    %v796 = vunpack.c.l.b16 %v437
    %v797 = vunpack.c.h.b16 %v437
    %v798 = vunpack.c.l.b16 %v438
    %v799 = vunpack.c.h.b16 %v438
    %v800 = vunpack.c.l.b16 %v439
    %v801 = vunpack.c.h.b16 %v439
    %v802 = vunpack.c.l.b16 %v440
    %v803 = vunpack.c.h.b16 %v440
    %v804 = vunpack.c.l.b16 %v441
    %v805 = vunpack.c.h.b16 %v441
    %v806 = vunpack.c.l.b16 %v442
    %v807 = vunpack.c.h.b16 %v442
    %v808 = vunpack.c.l.b16 %v443
    %v809 = vunpack.c.h.b16 %v443
    %v810 = vunpack.c.l.b16 %v444
    %v811 = vunpack.c.h.b16 %v444
    %v812 = vunpack.c.l.b16 %v445
    %v813 = vunpack.c.h.b16 %v445
    %v814 = vunpack.c.l.b16 %v446
    %v815 = vunpack.c.h.b16 %v446
    %v816 = vunpack.c.l.b16 %v447
    %v817 = vunpack.c.h.b16 %v447
    %v818 = vunpack.c.l.b16 %v448
    %v819 = vunpack.c.h.b16 %v448
    %v820 = vunpack.c.l.b16 %v449
    %v821 = vunpack.c.h.b16 %v449
    %v822 = vunpack.c.l.b16 %v450
    %v823 = vunpack.c.h.b16 %v450
    %v824 = vunpack.c.l.b16 %v451
    %v825 = vunpack.c.h.b16 %v451
    %v826 = vpack.c.b16 %v766, %v762
    %v827 = vpack.c.b16 %v767, %v763
    %v828 = vpack.c.b16 %v768, %v764
    %v829 = vpack.c.b16 %v769, %v765
    %v830 = vpack.c.b16 %v774, %v770
    %v831 = vpack.c.b16 %v775, %v771
    %v832 = vpack.c.b16 %v776, %v772
    %v833 = vpack.c.b16 %v777, %v773
    %v834 = vpack.c.b16 %v782, %v778
    %v835 = vpack.c.b16 %v783, %v779
    %v836 = vpack.c.b16 %v784, %v780
    %v837 = vpack.c.b16 %v785, %v781
    %v838 = vpack.c.b16 %v790, %v786
    %v839 = vpack.c.b16 %v791, %v787
    %v840 = vpack.c.b16 %v792, %v788
    %v841 = vpack.c.b16 %v793, %v789
    %v842 = vpack.c.b16 %v798, %v794
    %v843 = vpack.c.b16 %v799, %v795
    %v844 = vpack.c.b16 %v800, %v796
    %v845 = vpack.c.b16 %v801, %v797
    %v846 = vpack.c.b16 %v806, %v802
    %v847 = vpack.c.b16 %v807, %v803
    %v848 = vpack.c.b16 %v808, %v804
    %v849 = vpack.c.b16 %v809, %v805
    %v850 = vpack.c.b16 %v814, %v810
    %v851 = vpack.c.b16 %v815, %v811
    %v852 = vpack.c.b16 %v816, %v812
    %v853 = vpack.c.b16 %v817, %v813
    %v854 = vpack.c.b16 %v822, %v818
    %v855 = vpack.c.b16 %v823, %v819
    %v856 = vpack.c.b16 %v824, %v820
    %v857 = vpack.c.b16 %v825, %v821
    %890 = vmatprep.subr.bf16.mxu0 %v855
    %891 = vmatpush1.bf16.msra.mxu0 %v854
    %892 = vmatprep.subr.bf16.mxu0 %v851
    %893 = vmatpush1.bf16.msra.mxu0 %v850
    %894 = vmatprep.subr.bf16.mxu0 %v847
    %895 = vmatpush1.bf16.msra.mxu0 %v846
    %896 = vmatprep.subr.bf16.mxu0 %v843
    %897 = vmatpush1.bf16.msra.mxu0 %v842
    %898 = vmatprep.subr.bf16.mxu0 %v839
    %899 = vmatpush1.bf16.msra.mxu0 %v838
    %900 = vmatprep.subr.bf16.mxu0 %v835
    %901 = vmatpush1.bf16.msra.mxu0 %v834
    %902 = vmatprep.subr.bf16.mxu0 %v831
    %903 = vmatpush1.bf16.msra.mxu0 %v830
    %904 = vmatprep.subr.bf16.mxu0 %v827
    %905 = vmatpush1.bf16.msra.mxu0 %v826
    %906 = vmatprep.subr.bf16.mxu0 0
    %907 = vmatpush2.bf16.msra.mxu0 0
    %908 = vmatprep.subr.bf16.mxu0 0
    %909 = vmatpush2.bf16.msra.mxu0 0
    %910 = vmatprep.subr.bf16.mxu0 0
    %911 = vmatpush2.bf16.msra.mxu0 0
    %912 = vmatprep.subr.bf16.mxu0 0
    %913 = vmatpush2.bf16.msra.mxu0 0
    %914 = vmatprep.subr.bf16.mxu0 0
    %915 = vmatpush2.bf16.msra.mxu0 0
    %916 = vmatprep.subr.bf16.mxu0 0
    %917 = vmatpush2.bf16.msra.mxu0 0
    %918 = vmatprep.subr.bf16.mxu0 0
    %919 = vmatpush2.bf16.msra.mxu0 0
    %920 = vmatprep.subr.bf16.mxu0 0
    %921 = vmatpush2.bf16.msra.mxu0 0
    %922 = vmatprep.mubr.bf16.mxu0 0
    %923 = vmatmul.mubr.bf16.gmra.mxu0 %v419
    %v924 = vpop.f32.mrf.mxu0
    %v925 = vadd.f32 %v679, %v924
    %v926 = vpop.f32.mrf.mxu0
    %v927 = vadd.f32 %v681, %v926
    %v928 = vpop.f32.mrf.mxu0
    %v929 = vadd.f32 %v683, %v928
    %v930 = vpop.f32.mrf.mxu0
    %v931 = vadd.f32 %v685, %v930
    %932 = vdwg.mxu0
    %933 = vmatprep.subr.bf16.mxu0 %v857
    %934 = vmatpush1.bf16.msra.mxu0 %v856
    %935 = vmatprep.subr.bf16.mxu0 %v853
    %936 = vmatpush1.bf16.msra.mxu0 %v852
    %937 = vmatprep.subr.bf16.mxu0 %v849
    %938 = vmatpush1.bf16.msra.mxu0 %v848
    %939 = vmatprep.subr.bf16.mxu0 %v845
    %940 = vmatpush1.bf16.msra.mxu0 %v844
    %941 = vmatprep.subr.bf16.mxu0 %v841
    %942 = vmatpush1.bf16.msra.mxu0 %v840
    %943 = vmatprep.subr.bf16.mxu0 %v837
    %944 = vmatpush1.bf16.msra.mxu0 %v836
    %945 = vmatprep.subr.bf16.mxu0 %v833
    %946 = vmatpush1.bf16.msra.mxu0 %v832
    %947 = vmatprep.subr.bf16.mxu0 %v829
    %948 = vmatpush1.bf16.msra.mxu0 %v828
    %949 = vmatprep.subr.bf16.mxu0 0
    %950 = vmatpush2.bf16.msra.mxu0 0
    %951 = vmatprep.subr.bf16.mxu0 0
    %952 = vmatpush2.bf16.msra.mxu0 0
    %953 = vmatprep.subr.bf16.mxu0 0
    %954 = vmatpush2.bf16.msra.mxu0 0
    %955 = vmatprep.subr.bf16.mxu0 0
    %956 = vmatpush2.bf16.msra.mxu0 0
    %957 = vmatprep.subr.bf16.mxu0 0
    %958 = vmatpush2.bf16.msra.mxu0 0
    %959 = vmatprep.subr.bf16.mxu0 0
    %960 = vmatpush2.bf16.msra.mxu0 0
    %961 = vmatprep.subr.bf16.mxu0 0
    %962 = vmatpush2.bf16.msra.mxu0 0
    %963 = vmatprep.subr.bf16.mxu0 0
    %964 = vmatpush2.bf16.msra.mxu0 0
    %965 = vmatprep.mubr.bf16.mxu0 0
    %966 = vmatmul.mubr.bf16.gmra.mxu0 %v419
    %v967 = vpop.f32.mrf.mxu0
    %v968 = vadd.f32 %v722, %v967
    %v969 = vpop.f32.mrf.mxu0
    %v970 = vadd.f32 %v724, %v969
    %v971 = vpop.f32.mrf.mxu0
    %v972 = vadd.f32 %v726, %v971
    %v973 = vpop.f32.mrf.mxu0
    %v974 = vadd.f32 %v728, %v973
    %975 = vdwg.mxu0
    %v976 = vld [vmem:[%s4] sm:$0xf]
    %v978 = vlaneseq
    %v979 = vshrl.u32 %v978, 7
    %v980 = vsub.s32 0, %v979
    %v981 = vrot.slane %v976, %v980
    %v982 = vlaneseq
    %v983 = vshrl.u32 %v982, 7
    %v984 = vsub.s32 1, %v983
    %v985 = vrot.slane %v976, %v984
    %v986 = vlaneseq
    %v987 = vshrl.u32 %v986, 7
    %v988 = vsub.s32 2, %v987
    %v989 = vrot.slane %v976, %v988
    %v990 = vlaneseq
    %v991 = vshrl.u32 %v990, 7
    %v992 = vsub.s32 3, %v991
    %v993 = vrot.slane %v976, %v992
    %v998 = vadd.f32 %v925, %v981
    %v999 = vadd.f32 %v927, %v985
    %v1000 = vadd.f32 %v968, %v989
    %v1001 = vadd.f32 %v970, %v993
    %v1002 = vadd.f32 %v929, %v981
    %v1003 = vadd.f32 %v931, %v985
    %v1004 = vadd.f32 %v972, %v989
    %v1005 = vadd.f32 %v974, %v993
    %v1006 = vxor.u32 %v998, 2147483648
    %v1007 = vxor.u32 %v999, 2147483648
    %v1008 = vxor.u32 %v1000, 2147483648
    %v1009 = vxor.u32 %v1002, 2147483648
    %v1010 = vxor.u32 %v1003, 2147483648
    %v1011 = vxor.u32 %v1004, 2147483648
    %v1012 = vmul.f32 %v1006, 1.442695
    %v1013 = vpow.pop %v1012
    %v1014 = vmul.f32 %v1007, 1.442695
    %v1015 = vpow.pop %v1014
    %v1016 = vmul.f32 %v1008, 1.442695
    %v1017 = vpow.pop %v1016
    %v1018 = vmul.f32 %v1009, 1.442695
    %v1019 = vpow.pop %v1018
    %v1020 = vmul.f32 %v1010, 1.442695
    %v1021 = vpow.pop %v1020
    %v1022 = vmul.f32 %v1011, 1.442695
    %v1023 = vpow.pop %v1022
    %v1024 = vadd.f32 %v1013, 1.0
    %v1025 = vadd.f32 %v1015, 1.0
    %v1026 = vadd.f32 %v1017, 1.0
    %v1027 = vadd.f32 %v1019, 1.0
    %v1028 = vadd.f32 %v1021, 1.0
    %v1029 = vadd.f32 %v1023, 1.0
    %v1030 = vrcp.pop %v1024
    %v1031 = vmul.f32 1.0, %v1030
    %v1032 = vrcp.pop %v1025
    %v1033 = vmul.f32 1.0, %v1032
    %v1034 = vrcp.pop %v1026
    %v1035 = vmul.f32 1.0, %v1034
    %v1036 = vrcp.pop %v1027
    %v1037 = vmul.f32 1.0, %v1036
    %v1038 = vrcp.pop %v1028
    %v1039 = vmul.f32 1.0, %v1038
    %v1040 = vrcp.pop %v1029
    %v1041 = vmul.f32 1.0, %v1040
    %v1042 = vtanh.pop %v1001
    %v1043 = vtanh.pop %v1005
    %v1044 = vmul.f32 %v1033, 0.0
    %v1045 = vmul.f32 %v1039, 0.0
    %v1046 = vmul.f32 %v1031, %v1042
    %v1047 = vmul.f32 %v1037, %v1043
    %v1048 = vadd.f32 %v1044, %v1046
    %v1049 = vadd.f32 %v1045, %v1047
    %v1050 = vtanh.pop %v1048
    %v1051 = vtanh.pop %v1049
    %v1052 = vmul.f32 %v1035, %v1050
    %v1053 = vmul.f32 %v1041, %v1051
    %s1054 = scalar_lea.vmem [#allocation2], 64
    %v1055 = vld [vmem:[%s1054] sm:$0xff]
    %v1056 = vld [vmem:[%s1054 + $0x8] sm:$0xff]
    %v1057 = vld [vmem:[%s1054 + $0x10] sm:$0xff]
    %v1058 = vld [vmem:[%s1054 + $0x18] sm:$0xff]
    %v1059 = vld [vmem:[%s1054 + $0x20] sm:$0xff]
    %v1060 = vld [vmem:[%s1054 + $0x28] sm:$0xff]
    %v1061 = vld [vmem:[%s1054 + $0x30] sm:$0xff]
    %v1062 = vld [vmem:[%s1054 + $0x38] sm:$0xff]
    %1063 = vmatprep.subr.bf16.mxu0 %v242
    %1064 = vmatpush1.bf16.msra.mxu0 %v241
    %1065 = vmatprep.subr.bf16.mxu0 %v238
    %1066 = vmatpush1.bf16.msra.mxu0 %v237
    %1067 = vmatprep.subr.bf16.mxu0 %v234
    %1068 = vmatpush1.bf16.msra.mxu0 %v233
    %1069 = vmatprep.subr.bf16.mxu0 %v230
    %1070 = vmatpush1.bf16.msra.mxu0 %v229
    %1071 = vmatprep.subr.bf16.mxu0 %v226
    %1072 = vmatpush1.bf16.msra.mxu0 %v225
    %1073 = vmatprep.subr.bf16.mxu0 %v222
    %1074 = vmatpush1.bf16.msra.mxu0 %v221
    %1075 = vmatprep.subr.bf16.mxu0 %v218
    %1076 = vmatpush1.bf16.msra.mxu0 %v217
    %1077 = vmatprep.subr.bf16.mxu0 %v214
    %1078 = vmatpush1.bf16.msra.mxu0 %v213
    %1079 = vmatprep.subr.bf16.mxu0 0
    %1080 = vmatpush2.bf16.msra.mxu0 0
    %1081 = vmatprep.subr.bf16.mxu0 0
    %1082 = vmatpush2.bf16.msra.mxu0 0
    %1083 = vmatprep.subr.bf16.mxu0 0
    %1084 = vmatpush2.bf16.msra.mxu0 0
    %1085 = vmatprep.subr.bf16.mxu0 0
    %1086 = vmatpush2.bf16.msra.mxu0 0
    %1087 = vmatprep.subr.bf16.mxu0 0
    %1088 = vmatpush2.bf16.msra.mxu0 0
    %1089 = vmatprep.subr.bf16.mxu0 0
    %1090 = vmatpush2.bf16.msra.mxu0 0
    %1091 = vmatprep.subr.bf16.mxu0 0
    %1092 = vmatpush2.bf16.msra.mxu0 0
    %1093 = vmatprep.subr.bf16.mxu0 0
    %1094 = vmatpush2.bf16.msra.mxu0 0
    %1095 = vmatprep.mubr.bf16.mxu0 0
    %1096 = vmatmul.mubr.bf16.gmra.mxu0 %v419
    %v1097 = vpop.f32.mrf.mxu0
    %v1098 = vadd.f32 0.0, %v1097
    %v1099 = vpop.f32.mrf.mxu0
    %v1100 = vadd.f32 0.0, %v1099
    %v1101 = vpop.f32.mrf.mxu0
    %v1102 = vadd.f32 0.0, %v1101
    %v1103 = vpop.f32.mrf.mxu0
    %v1104 = vadd.f32 0.0, %v1103
    %1105 = vdwg.mxu0
    %1106 = vmatprep.subr.bf16.mxu0 %v244
    %1107 = vmatpush1.bf16.msra.mxu0 %v243
    %1108 = vmatprep.subr.bf16.mxu0 %v240
    %1109 = vmatpush1.bf16.msra.mxu0 %v239
    %1110 = vmatprep.subr.bf16.mxu0 %v236
    %1111 = vmatpush1.bf16.msra.mxu0 %v235
    %1112 = vmatprep.subr.bf16.mxu0 %v232
    %1113 = vmatpush1.bf16.msra.mxu0 %v231
    %1114 = vmatprep.subr.bf16.mxu0 %v228
    %1115 = vmatpush1.bf16.msra.mxu0 %v227
    %1116 = vmatprep.subr.bf16.mxu0 %v224
    %1117 = vmatpush1.bf16.msra.mxu0 %v223
    %1118 = vmatprep.subr.bf16.mxu0 %v220
    %1119 = vmatpush1.bf16.msra.mxu0 %v219
    %1120 = vmatprep.subr.bf16.mxu0 %v216
    %1121 = vmatpush1.bf16.msra.mxu0 %v215
    %1122 = vmatprep.subr.bf16.mxu0 0
    %1123 = vmatpush2.bf16.msra.mxu0 0
    %1124 = vmatprep.subr.bf16.mxu0 0
    %1125 = vmatpush2.bf16.msra.mxu0 0
    %1126 = vmatprep.subr.bf16.mxu0 0
    %1127 = vmatpush2.bf16.msra.mxu0 0
    %1128 = vmatprep.subr.bf16.mxu0 0
    %1129 = vmatpush2.bf16.msra.mxu0 0
    %1130 = vmatprep.subr.bf16.mxu0 0
    %1131 = vmatpush2.bf16.msra.mxu0 0
    %1132 = vmatprep.subr.bf16.mxu0 0
    %1133 = vmatpush2.bf16.msra.mxu0 0
    %1134 = vmatprep.subr.bf16.mxu0 0
    %1135 = vmatpush2.bf16.msra.mxu0 0
    %1136 = vmatprep.subr.bf16.mxu0 0
    %1137 = vmatpush2.bf16.msra.mxu0 0
    %1138 = vmatprep.mubr.bf16.mxu0 0
    %1139 = vmatmul.mubr.bf16.gmra.mxu0 %v419
    %v1140 = vpop.f32.mrf.mxu0
    %v1141 = vadd.f32 0.0, %v1140
    %v1142 = vpop.f32.mrf.mxu0
    %v1143 = vadd.f32 0.0, %v1142
    %v1144 = vpop.f32.mrf.mxu0
    %v1145 = vadd.f32 0.0, %v1144
    %v1146 = vpop.f32.mrf.mxu0
    %v1147 = vadd.f32 0.0, %v1146
    %1148 = vdwg.mxu0
    %v1149 = vadd.f32 %v1055, %v1098
    %v1150 = vadd.f32 %v1056, %v1100
    %v1151 = vadd.f32 %v1057, %v1141
    %v1152 = vadd.f32 %v1058, %v1143
    %v1153 = vadd.f32 %v1059, %v1102
    %v1154 = vadd.f32 %v1060, %v1104
    %v1155 = vadd.f32 %v1061, %v1145
    %v1156 = vadd.f32 %v1062, %v1147
    %v1157 = vxor.u32 %v1149, 2147483648
    %v1158 = vxor.u32 %v1150, 2147483648
    %v1159 = vxor.u32 %v1151, 2147483648
    %v1160 = vxor.u32 %v1153, 2147483648
    %v1161 = vxor.u32 %v1154, 2147483648
    %v1162 = vxor.u32 %v1155, 2147483648
    %v1163 = vmul.f32 %v1157, 1.442695
    %v1164 = vpow.pop %v1163
    %v1165 = vmul.f32 %v1158, 1.442695
    %v1166 = vpow.pop %v1165
    %v1167 = vmul.f32 %v1159, 1.442695
    %v1168 = vpow.pop %v1167
    %v1169 = vmul.f32 %v1160, 1.442695
    %v1170 = vpow.pop %v1169
    %v1171 = vmul.f32 %v1161, 1.442695
    %v1172 = vpow.pop %v1171
    %v1173 = vmul.f32 %v1162, 1.442695
    %v1174 = vpow.pop %v1173
    %v1175 = vadd.f32 %v1164, 1.0
    %v1176 = vadd.f32 %v1166, 1.0
    %v1177 = vadd.f32 %v1168, 1.0
    %v1178 = vadd.f32 %v1170, 1.0
    %v1179 = vadd.f32 %v1172, 1.0
    %v1180 = vadd.f32 %v1174, 1.0
    %v1181 = vrcp.pop %v1175
    %v1182 = vmul.f32 1.0, %v1181
    %v1183 = vrcp.pop %v1176
    %v1184 = vmul.f32 1.0, %v1183
    %v1185 = vrcp.pop %v1177
    %v1186 = vmul.f32 1.0, %v1185
    %v1187 = vrcp.pop %v1178
    %v1188 = vmul.f32 1.0, %v1187
    %v1189 = vrcp.pop %v1179
    %v1190 = vmul.f32 1.0, %v1189
    %v1191 = vrcp.pop %v1180
    %v1192 = vmul.f32 1.0, %v1191
    %v1193 = vtanh.pop %v1152
    %v1194 = vtanh.pop %v1156
    %v1195 = vmul.f32 %v1184, %v413
    %v1196 = vmul.f32 %v1190, %v414
    %v1197 = vmul.f32 %v1182, %v1193
    %v1198 = vmul.f32 %v1188, %v1194
    %v1199 = vadd.f32 %v1195, %v1197
    %v1200 = vadd.f32 %v1196, %v1198
    %v1201 = vtanh.pop %v1199
    %v1202 = vtanh.pop %v1200
    %v1203 = vmul.f32 %v1186, %v1201
    %v1204 = vmul.f32 %v1192, %v1202
    %v1205 = vpack.c.bf16 %v1204, %v1203
    %v1206 = vpack.c.bf16 %v1053, %v1052
    %1207 = vmatprep.subr.bf16.mxu0 %v609
    %1208 = vmatpush1.bf16.msra.mxu0 %v608
    %1209 = vmatprep.subr.bf16.mxu0 %v605
    %1210 = vmatpush1.bf16.msra.mxu0 %v604
    %1211 = vmatprep.subr.bf16.mxu0 %v601
    %1212 = vmatpush1.bf16.msra.mxu0 %v600
    %1213 = vmatprep.subr.bf16.mxu0 %v597
    %1214 = vmatpush1.bf16.msra.mxu0 %v596
    %1215 = vmatprep.subr.bf16.mxu0 %v593
    %1216 = vmatpush1.bf16.msra.mxu0 %v592
    %1217 = vmatprep.subr.bf16.mxu0 %v589
    %1218 = vmatpush1.bf16.msra.mxu0 %v588
    %1219 = vmatprep.subr.bf16.mxu0 %v585
    %1220 = vmatpush1.bf16.msra.mxu0 %v584
    %1221 = vmatprep.subr.bf16.mxu0 %v581
    %1222 = vmatpush1.bf16.msra.mxu0 %v580
    %1223 = vmatprep.subr.bf16.mxu0 0
    %1224 = vmatpush2.bf16.msra.mxu0 0
    %1225 = vmatprep.subr.bf16.mxu0 0
    %1226 = vmatpush2.bf16.msra.mxu0 0
    %1227 = vmatprep.subr.bf16.mxu0 0
    %1228 = vmatpush2.bf16.msra.mxu0 0
    %1229 = vmatprep.subr.bf16.mxu0 0
    %1230 = vmatpush2.bf16.msra.mxu0 0
    %1231 = vmatprep.subr.bf16.mxu0 0
    %1232 = vmatpush2.bf16.msra.mxu0 0
    %1233 = vmatprep.subr.bf16.mxu0 0
    %1234 = vmatpush2.bf16.msra.mxu0 0
    %1235 = vmatprep.subr.bf16.mxu0 0
    %1236 = vmatpush2.bf16.msra.mxu0 0
    %1237 = vmatprep.subr.bf16.mxu0 0
    %1238 = vmatpush2.bf16.msra.mxu0 0
    %1239 = vmatprep.mubr.bf16.mxu0 0
    %1240 = vmatmul.mubr.bf16.gmra.mxu0 %v1206
    %v1241 = vpop.f32.mrf.mxu0
    %v1242 = vadd.f32 0.0, %v1241
    %v1243 = vpop.f32.mrf.mxu0
    %v1244 = vadd.f32 0.0, %v1243
    %v1245 = vpop.f32.mrf.mxu0
    %v1246 = vadd.f32 0.0, %v1245
    %v1247 = vpop.f32.mrf.mxu0
    %v1248 = vadd.f32 0.0, %v1247
    %1249 = vdwg.mxu0
    %1250 = vmatprep.subr.bf16.mxu0 %v611
    %1251 = vmatpush1.bf16.msra.mxu0 %v610
    %1252 = vmatprep.subr.bf16.mxu0 %v607
    %1253 = vmatpush1.bf16.msra.mxu0 %v606
    %1254 = vmatprep.subr.bf16.mxu0 %v603
    %1255 = vmatpush1.bf16.msra.mxu0 %v602
    %1256 = vmatprep.subr.bf16.mxu0 %v599
    %1257 = vmatpush1.bf16.msra.mxu0 %v598
    %1258 = vmatprep.subr.bf16.mxu0 %v595
    %1259 = vmatpush1.bf16.msra.mxu0 %v594
    %1260 = vmatprep.subr.bf16.mxu0 %v591
    %1261 = vmatpush1.bf16.msra.mxu0 %v590
    %1262 = vmatprep.subr.bf16.mxu0 %v587
    %1263 = vmatpush1.bf16.msra.mxu0 %v586
    %1264 = vmatprep.subr.bf16.mxu0 %v583
    %1265 = vmatpush1.bf16.msra.mxu0 %v582
    %1266 = vmatprep.subr.bf16.mxu0 0
    %1267 = vmatpush2.bf16.msra.mxu0 0
    %1268 = vmatprep.subr.bf16.mxu0 0
    %1269 = vmatpush2.bf16.msra.mxu0 0
    %1270 = vmatprep.subr.bf16.mxu0 0
    %1271 = vmatpush2.bf16.msra.mxu0 0
    %1272 = vmatprep.subr.bf16.mxu0 0
    %1273 = vmatpush2.bf16.msra.mxu0 0
    %1274 = vmatprep.subr.bf16.mxu0 0
    %1275 = vmatpush2.bf16.msra.mxu0 0
    %1276 = vmatprep.subr.bf16.mxu0 0
    %1277 = vmatpush2.bf16.msra.mxu0 0
    %1278 = vmatprep.subr.bf16.mxu0 0
    %1279 = vmatpush2.bf16.msra.mxu0 0
    %1280 = vmatprep.subr.bf16.mxu0 0
    %1281 = vmatpush2.bf16.msra.mxu0 0
    %1282 = vmatprep.mubr.bf16.mxu0 0
    %1283 = vmatmul.mubr.bf16.gmra.mxu0 %v1206
    %v1284 = vpop.f32.mrf.mxu0
    %v1285 = vadd.f32 0.0, %v1284
    %v1286 = vpop.f32.mrf.mxu0
    %v1287 = vadd.f32 0.0, %v1286
    %v1288 = vpop.f32.mrf.mxu0
    %v1289 = vadd.f32 0.0, %v1288
    %v1290 = vpop.f32.mrf.mxu0
    %v1291 = vadd.f32 0.0, %v1290
    %1292 = vdwg.mxu0
    %1293 = vmatprep.subr.bf16.mxu0 %v855
    %1294 = vmatpush1.bf16.msra.mxu0 %v854
    %1295 = vmatprep.subr.bf16.mxu0 %v851
    %1296 = vmatpush1.bf16.msra.mxu0 %v850
    %1297 = vmatprep.subr.bf16.mxu0 %v847
    %1298 = vmatpush1.bf16.msra.mxu0 %v846
    %1299 = vmatprep.subr.bf16.mxu0 %v843
    %1300 = vmatpush1.bf16.msra.mxu0 %v842
    %1301 = vmatprep.subr.bf16.mxu0 %v839
    %1302 = vmatpush1.bf16.msra.mxu0 %v838
    %1303 = vmatprep.subr.bf16.mxu0 %v835
    %1304 = vmatpush1.bf16.msra.mxu0 %v834
    %1305 = vmatprep.subr.bf16.mxu0 %v831
    %1306 = vmatpush1.bf16.msra.mxu0 %v830
    %1307 = vmatprep.subr.bf16.mxu0 %v827
    %1308 = vmatpush1.bf16.msra.mxu0 %v826
    %1309 = vmatprep.subr.bf16.mxu0 0
    %1310 = vmatpush2.bf16.msra.mxu0 0
    %1311 = vmatprep.subr.bf16.mxu0 0
    %1312 = vmatpush2.bf16.msra.mxu0 0
    %1313 = vmatprep.subr.bf16.mxu0 0
    %1314 = vmatpush2.bf16.msra.mxu0 0
    %1315 = vmatprep.subr.bf16.mxu0 0
    %1316 = vmatpush2.bf16.msra.mxu0 0
    %1317 = vmatprep.subr.bf16.mxu0 0
    %1318 = vmatpush2.bf16.msra.mxu0 0
    %1319 = vmatprep.subr.bf16.mxu0 0
    %1320 = vmatpush2.bf16.msra.mxu0 0
    %1321 = vmatprep.subr.bf16.mxu0 0
    %1322 = vmatpush2.bf16.msra.mxu0 0
    %1323 = vmatprep.subr.bf16.mxu0 0
    %1324 = vmatpush2.bf16.msra.mxu0 0
    %1325 = vmatprep.mubr.bf16.mxu0 0
    %1326 = vmatmul.mubr.bf16.gmra.mxu0 %v1205
    %v1327 = vpop.f32.mrf.mxu0
    %v1328 = vadd.f32 %v1242, %v1327
    %v1329 = vpop.f32.mrf.mxu0
    %v1330 = vadd.f32 %v1244, %v1329
    %v1331 = vpop.f32.mrf.mxu0
    %v1332 = vadd.f32 %v1246, %v1331
    %v1333 = vpop.f32.mrf.mxu0
    %v1334 = vadd.f32 %v1248, %v1333
    %1335 = vdwg.mxu0
    %1336 = vmatprep.subr.bf16.mxu0 %v857
    %1337 = vmatpush1.bf16.msra.mxu0 %v856
    %1338 = vmatprep.subr.bf16.mxu0 %v853
    %1339 = vmatpush1.bf16.msra.mxu0 %v852
    %1340 = vmatprep.subr.bf16.mxu0 %v849
    %1341 = vmatpush1.bf16.msra.mxu0 %v848
    %1342 = vmatprep.subr.bf16.mxu0 %v845
    %1343 = vmatpush1.bf16.msra.mxu0 %v844
    %1344 = vmatprep.subr.bf16.mxu0 %v841
    %1345 = vmatpush1.bf16.msra.mxu0 %v840
    %1346 = vmatprep.subr.bf16.mxu0 %v837
    %1347 = vmatpush1.bf16.msra.mxu0 %v836
    %1348 = vmatprep.subr.bf16.mxu0 %v833
    %1349 = vmatpush1.bf16.msra.mxu0 %v832
    %1350 = vmatprep.subr.bf16.mxu0 %v829
    %1351 = vmatpush1.bf16.msra.mxu0 %v828
    %1352 = vmatprep.subr.bf16.mxu0 0
    %1353 = vmatpush2.bf16.msra.mxu0 0
    %1354 = vmatprep.subr.bf16.mxu0 0
    %1355 = vmatpush2.bf16.msra.mxu0 0
    %1356 = vmatprep.subr.bf16.mxu0 0
    %1357 = vmatpush2.bf16.msra.mxu0 0
    %1358 = vmatprep.subr.bf16.mxu0 0
    %1359 = vmatpush2.bf16.msra.mxu0 0
    %1360 = vmatprep.subr.bf16.mxu0 0
    %1361 = vmatpush2.bf16.msra.mxu0 0
    %1362 = vmatprep.subr.bf16.mxu0 0
    %1363 = vmatpush2.bf16.msra.mxu0 0
    %1364 = vmatprep.subr.bf16.mxu0 0
    %1365 = vmatpush2.bf16.msra.mxu0 0
    %1366 = vmatprep.subr.bf16.mxu0 0
    %1367 = vmatpush2.bf16.msra.mxu0 0
    %1368 = vmatprep.mubr.bf16.mxu0 0
    %1369 = vmatmul.mubr.bf16.gmra.mxu0 %v1205
    %v1370 = vpop.f32.mrf.mxu0
    %v1371 = vadd.f32 %v1285, %v1370
    %v1372 = vpop.f32.mrf.mxu0
    %v1373 = vadd.f32 %v1287, %v1372
    %v1374 = vpop.f32.mrf.mxu0
    %v1375 = vadd.f32 %v1289, %v1374
    %v1376 = vpop.f32.mrf.mxu0
    %v1377 = vadd.f32 %v1291, %v1376
    %1378 = vdwg.mxu0
    %v1379 = vadd.f32 %v1328, %v981
    %v1380 = vadd.f32 %v1330, %v985
    %v1381 = vadd.f32 %v1371, %v989
    %v1382 = vadd.f32 %v1373, %v993
    %v1383 = vadd.f32 %v1332, %v981
    %v1384 = vadd.f32 %v1334, %v985
    %v1385 = vadd.f32 %v1375, %v989
    %v1386 = vadd.f32 %v1377, %v993
    %v1387 = vxor.u32 %v1379, 2147483648
    %v1388 = vxor.u32 %v1380, 2147483648
    %v1389 = vxor.u32 %v1381, 2147483648
    %v1390 = vxor.u32 %v1383, 2147483648
    %v1391 = vxor.u32 %v1384, 2147483648
    %v1392 = vxor.u32 %v1385, 2147483648
    %v1393 = vmul.f32 %v1387, 1.442695
    %v1394 = vpow.pop %v1393
    %v1395 = vmul.f32 %v1388, 1.442695
    %v1396 = vpow.pop %v1395
    %v1397 = vmul.f32 %v1389, 1.442695
    %v1398 = vpow.pop %v1397
    %v1399 = vmul.f32 %v1390, 1.442695
    %v1400 = vpow.pop %v1399
    %v1401 = vmul.f32 %v1391, 1.442695
    %v1402 = vpow.pop %v1401
    %v1403 = vmul.f32 %v1392, 1.442695
    %v1404 = vpow.pop %v1403
    %v1405 = vadd.f32 %v1394, 1.0
    %v1406 = vadd.f32 %v1396, 1.0
    %v1407 = vadd.f32 %v1398, 1.0
    %v1408 = vadd.f32 %v1400, 1.0
    %v1409 = vadd.f32 %v1402, 1.0
    %v1410 = vadd.f32 %v1404, 1.0
    %v1411 = vrcp.pop %v1405
    %v1412 = vmul.f32 1.0, %v1411
    %v1413 = vrcp.pop %v1406
    %v1414 = vmul.f32 1.0, %v1413
    %v1415 = vrcp.pop %v1407
    %v1416 = vmul.f32 1.0, %v1415
    %v1417 = vrcp.pop %v1408
    %v1418 = vmul.f32 1.0, %v1417
    %v1419 = vrcp.pop %v1409
    %v1420 = vmul.f32 1.0, %v1419
    %v1421 = vrcp.pop %v1410
    %v1422 = vmul.f32 1.0, %v1421
    %v1423 = vtanh.pop %v1382
    %v1424 = vtanh.pop %v1386
    %v1425 = vmul.f32 %v1414, %v1048
    %v1426 = vmul.f32 %v1420, %v1049
    %v1427 = vmul.f32 %v1412, %v1423
    %v1428 = vmul.f32 %v1418, %v1424
    %v1429 = vadd.f32 %v1425, %v1427
    %v1430 = vadd.f32 %v1426, %v1428
    %v1431 = vtanh.pop %v1429
    %v1432 = vtanh.pop %v1430
    %v1433 = vmul.f32 %v1416, %v1431
    %v1434 = vmul.f32 %v1422, %v1432
    %s1435 = scalar_lea.vmem [#allocation2], 128
    %v1436 = vld [vmem:[%s1435] sm:$0xff]
    %v1437 = vld [vmem:[%s1435 + $0x8] sm:$0xff]
    %v1438 = vld [vmem:[%s1435 + $0x10] sm:$0xff]
    %v1439 = vld [vmem:[%s1435 + $0x18] sm:$0xff]
    %v1440 = vld [vmem:[%s1435 + $0x20] sm:$0xff]
    %v1441 = vld [vmem:[%s1435 + $0x28] sm:$0xff]
    %v1442 = vld [vmem:[%s1435 + $0x30] sm:$0xff]
    %v1443 = vld [vmem:[%s1435 + $0x38] sm:$0xff]
    %1444 = vmatprep.subr.bf16.mxu0 %v242
    %1445 = vmatpush1.bf16.msra.mxu0 %v241
    %1446 = vmatprep.subr.bf16.mxu0 %v238
    %1447 = vmatpush1.bf16.msra.mxu0 %v237
    %1448 = vmatprep.subr.bf16.mxu0 %v234
    %1449 = vmatpush1.bf16.msra.mxu0 %v233
    %1450 = vmatprep.subr.bf16.mxu0 %v230
    %1451 = vmatpush1.bf16.msra.mxu0 %v229
    %1452 = vmatprep.subr.bf16.mxu0 %v226
    %1453 = vmatpush1.bf16.msra.mxu0 %v225
    %1454 = vmatprep.subr.bf16.mxu0 %v222
    %1455 = vmatpush1.bf16.msra.mxu0 %v221
    %1456 = vmatprep.subr.bf16.mxu0 %v218
    %1457 = vmatpush1.bf16.msra.mxu0 %v217
    %1458 = vmatprep.subr.bf16.mxu0 %v214
    %1459 = vmatpush1.bf16.msra.mxu0 %v213
    %1460 = vmatprep.subr.bf16.mxu0 0
    %1461 = vmatpush2.bf16.msra.mxu0 0
    %1462 = vmatprep.subr.bf16.mxu0 0
    %1463 = vmatpush2.bf16.msra.mxu0 0
    %1464 = vmatprep.subr.bf16.mxu0 0
    %1465 = vmatpush2.bf16.msra.mxu0 0
    %1466 = vmatprep.subr.bf16.mxu0 0
    %1467 = vmatpush2.bf16.msra.mxu0 0
    %1468 = vmatprep.subr.bf16.mxu0 0
    %1469 = vmatpush2.bf16.msra.mxu0 0
    %1470 = vmatprep.subr.bf16.mxu0 0
    %1471 = vmatpush2.bf16.msra.mxu0 0
    %1472 = vmatprep.subr.bf16.mxu0 0
    %1473 = vmatpush2.bf16.msra.mxu0 0
    %1474 = vmatprep.subr.bf16.mxu0 0
    %1475 = vmatpush2.bf16.msra.mxu0 0
    %1476 = vmatprep.mubr.bf16.mxu0 0
    %1477 = vmatmul.mubr.bf16.gmra.mxu0 %v1205
    %v1478 = vpop.f32.mrf.mxu0
    %v1479 = vadd.f32 0.0, %v1478
    %v1480 = vpop.f32.mrf.mxu0
    %v1481 = vadd.f32 0.0, %v1480
    %v1482 = vpop.f32.mrf.mxu0
    %v1483 = vadd.f32 0.0, %v1482
    %v1484 = vpop.f32.mrf.mxu0
    %v1485 = vadd.f32 0.0, %v1484
    %1486 = vdwg.mxu0
    %1487 = vmatprep.subr.bf16.mxu0 %v244
    %1488 = vmatpush1.bf16.msra.mxu0 %v243
    %1489 = vmatprep.subr.bf16.mxu0 %v240
    %1490 = vmatpush1.bf16.msra.mxu0 %v239
    %1491 = vmatprep.subr.bf16.mxu0 %v236
    %1492 = vmatpush1.bf16.msra.mxu0 %v235
    %1493 = vmatprep.subr.bf16.mxu0 %v232
    %1494 = vmatpush1.bf16.msra.mxu0 %v231
    %1495 = vmatprep.subr.bf16.mxu0 %v228
    %1496 = vmatpush1.bf16.msra.mxu0 %v227
    %1497 = vmatprep.subr.bf16.mxu0 %v224
    %1498 = vmatpush1.bf16.msra.mxu0 %v223
    %1499 = vmatprep.subr.bf16.mxu0 %v220
    %1500 = vmatpush1.bf16.msra.mxu0 %v219
    %1501 = vmatprep.subr.bf16.mxu0 %v216
    %1502 = vmatpush1.bf16.msra.mxu0 %v215
    %1503 = vmatprep.subr.bf16.mxu0 0
    %1504 = vmatpush2.bf16.msra.mxu0 0
    %1505 = vmatprep.subr.bf16.mxu0 0
    %1506 = vmatpush2.bf16.msra.mxu0 0
    %1507 = vmatprep.subr.bf16.mxu0 0
    %1508 = vmatpush2.bf16.msra.mxu0 0
    %1509 = vmatprep.subr.bf16.mxu0 0
    %1510 = vmatpush2.bf16.msra.mxu0 0
    %1511 = vmatprep.subr.bf16.mxu0 0
    %1512 = vmatpush2.bf16.msra.mxu0 0
    %1513 = vmatprep.subr.bf16.mxu0 0
    %1514 = vmatpush2.bf16.msra.mxu0 0
    %1515 = vmatprep.subr.bf16.mxu0 0
    %1516 = vmatpush2.bf16.msra.mxu0 0
    %1517 = vmatprep.subr.bf16.mxu0 0
    %1518 = vmatpush2.bf16.msra.mxu0 0
    %1519 = vmatprep.mubr.bf16.mxu0 0
    %1520 = vmatmul.mubr.bf16.gmra.mxu0 %v1205
    %v1521 = vpop.f32.mrf.mxu0
    %v1522 = vadd.f32 0.0, %v1521
    %v1523 = vpop.f32.mrf.mxu0
    %v1524 = vadd.f32 0.0, %v1523
    %v1525 = vpop.f32.mrf.mxu0
    %v1526 = vadd.f32 0.0, %v1525
    %v1527 = vpop.f32.mrf.mxu0
    %v1528 = vadd.f32 0.0, %v1527
    %1529 = vdwg.mxu0
    %v1530 = vadd.f32 %v1436, %v1479
    %v1531 = vadd.f32 %v1437, %v1481
    %v1532 = vadd.f32 %v1438, %v1522
    %v1533 = vadd.f32 %v1439, %v1524
    %v1534 = vadd.f32 %v1440, %v1483
    %v1535 = vadd.f32 %v1441, %v1485
    %v1536 = vadd.f32 %v1442, %v1526
    %v1537 = vadd.f32 %v1443, %v1528
    %v1538 = vxor.u32 %v1530, 2147483648
    %v1539 = vxor.u32 %v1531, 2147483648
    %v1540 = vxor.u32 %v1532, 2147483648
    %v1541 = vxor.u32 %v1534, 2147483648
    %v1542 = vxor.u32 %v1535, 2147483648
    %v1543 = vxor.u32 %v1536, 2147483648
    %v1544 = vmul.f32 %v1538, 1.442695
    %v1545 = vpow.pop %v1544
    %v1546 = vmul.f32 %v1539, 1.442695
    %v1547 = vpow.pop %v1546
    %v1548 = vmul.f32 %v1540, 1.442695
    %v1549 = vpow.pop %v1548
    %v1550 = vmul.f32 %v1541, 1.442695
    %v1551 = vpow.pop %v1550
    %v1552 = vmul.f32 %v1542, 1.442695
    %v1553 = vpow.pop %v1552
    %v1554 = vmul.f32 %v1543, 1.442695
    %v1555 = vpow.pop %v1554
    %v1556 = vadd.f32 %v1545, 1.0
    %v1557 = vadd.f32 %v1547, 1.0
    %v1558 = vadd.f32 %v1549, 1.0
    %v1559 = vadd.f32 %v1551, 1.0
    %v1560 = vadd.f32 %v1553, 1.0
    %v1561 = vadd.f32 %v1555, 1.0
    %v1562 = vrcp.pop %v1556
    %v1563 = vmul.f32 1.0, %v1562
    %v1564 = vrcp.pop %v1557
    %v1565 = vmul.f32 1.0, %v1564
    %v1566 = vrcp.pop %v1558
    %v1567 = vmul.f32 1.0, %v1566
    %v1568 = vrcp.pop %v1559
    %v1569 = vmul.f32 1.0, %v1568
    %v1570 = vrcp.pop %v1560
    %v1571 = vmul.f32 1.0, %v1570
    %v1572 = vrcp.pop %v1561
    %v1573 = vmul.f32 1.0, %v1572
    %v1574 = vtanh.pop %v1533
    %v1575 = vtanh.pop %v1537
    %v1576 = vmul.f32 %v1565, %v1199
    %v1577 = vmul.f32 %v1571, %v1200
    %v1578 = vmul.f32 %v1563, %v1574
    %v1579 = vmul.f32 %v1569, %v1575
    %v1580 = vadd.f32 %v1576, %v1578
    %v1581 = vadd.f32 %v1577, %v1579
    %v1582 = vtanh.pop %v1580
    %v1583 = vtanh.pop %v1581
    %v1584 = vmul.f32 %v1567, %v1582
    %v1585 = vmul.f32 %v1573, %v1583
    %v1586 = vpack.c.bf16 %v1585, %v1584
    %v1587 = vpack.c.bf16 %v1434, %v1433
    %1588 = vmatprep.subr.bf16.mxu0 %v609
    %1589 = vmatpush1.bf16.msra.mxu0 %v608
    %1590 = vmatprep.subr.bf16.mxu0 %v605
    %1591 = vmatpush1.bf16.msra.mxu0 %v604
    %1592 = vmatprep.subr.bf16.mxu0 %v601
    %1593 = vmatpush1.bf16.msra.mxu0 %v600
    %1594 = vmatprep.subr.bf16.mxu0 %v597
    %1595 = vmatpush1.bf16.msra.mxu0 %v596
    %1596 = vmatprep.subr.bf16.mxu0 %v593
    %1597 = vmatpush1.bf16.msra.mxu0 %v592
    %1598 = vmatprep.subr.bf16.mxu0 %v589
    %1599 = vmatpush1.bf16.msra.mxu0 %v588
    %1600 = vmatprep.subr.bf16.mxu0 %v585
    %1601 = vmatpush1.bf16.msra.mxu0 %v584
    %1602 = vmatprep.subr.bf16.mxu0 %v581
    %1603 = vmatpush1.bf16.msra.mxu0 %v580
    %1604 = vmatprep.subr.bf16.mxu0 0
    %1605 = vmatpush2.bf16.msra.mxu0 0
    %1606 = vmatprep.subr.bf16.mxu0 0
    %1607 = vmatpush2.bf16.msra.mxu0 0
    %1608 = vmatprep.subr.bf16.mxu0 0
    %1609 = vmatpush2.bf16.msra.mxu0 0
    %1610 = vmatprep.subr.bf16.mxu0 0
    %1611 = vmatpush2.bf16.msra.mxu0 0
    %1612 = vmatprep.subr.bf16.mxu0 0
    %1613 = vmatpush2.bf16.msra.mxu0 0
    %1614 = vmatprep.subr.bf16.mxu0 0
    %1615 = vmatpush2.bf16.msra.mxu0 0
    %1616 = vmatprep.subr.bf16.mxu0 0
    %1617 = vmatpush2.bf16.msra.mxu0 0
    %1618 = vmatprep.subr.bf16.mxu0 0
    %1619 = vmatpush2.bf16.msra.mxu0 0
    %1620 = vmatprep.mubr.bf16.mxu0 0
    %1621 = vmatmul.mubr.bf16.gmra.mxu0 %v1587
    %v1622 = vpop.f32.mrf.mxu0
    %v1623 = vadd.f32 0.0, %v1622
    %v1624 = vpop.f32.mrf.mxu0
    %v1625 = vadd.f32 0.0, %v1624
    %v1626 = vpop.f32.mrf.mxu0
    %v1627 = vadd.f32 0.0, %v1626
    %v1628 = vpop.f32.mrf.mxu0
    %v1629 = vadd.f32 0.0, %v1628
    %1630 = vdwg.mxu0
    %1631 = vmatprep.subr.bf16.mxu0 %v611
    %1632 = vmatpush1.bf16.msra.mxu0 %v610
    %1633 = vmatprep.subr.bf16.mxu0 %v607
    %1634 = vmatpush1.bf16.msra.mxu0 %v606
    %1635 = vmatprep.subr.bf16.mxu0 %v603
    %1636 = vmatpush1.bf16.msra.mxu0 %v602
    %1637 = vmatprep.subr.bf16.mxu0 %v599
    %1638 = vmatpush1.bf16.msra.mxu0 %v598
    %1639 = vmatprep.subr.bf16.mxu0 %v595
    %1640 = vmatpush1.bf16.msra.mxu0 %v594
    %1641 = vmatprep.subr.bf16.mxu0 %v591
    %1642 = vmatpush1.bf16.msra.mxu0 %v590
    %1643 = vmatprep.subr.bf16.mxu0 %v587
    %1644 = vmatpush1.bf16.msra.mxu0 %v586
    %1645 = vmatprep.subr.bf16.mxu0 %v583
    %1646 = vmatpush1.bf16.msra.mxu0 %v582
    %1647 = vmatprep.subr.bf16.mxu0 0
    %1648 = vmatpush2.bf16.msra.mxu0 0
    %1649 = vmatprep.subr.bf16.mxu0 0
    %1650 = vmatpush2.bf16.msra.mxu0 0
    %1651 = vmatprep.subr.bf16.mxu0 0
    %1652 = vmatpush2.bf16.msra.mxu0 0
    %1653 = vmatprep.subr.bf16.mxu0 0
    %1654 = vmatpush2.bf16.msra.mxu0 0
    %1655 = vmatprep.subr.bf16.mxu0 0
    %1656 = vmatpush2.bf16.msra.mxu0 0
    %1657 = vmatprep.subr.bf16.mxu0 0
    %1658 = vmatpush2.bf16.msra.mxu0 0
    %1659 = vmatprep.subr.bf16.mxu0 0
    %1660 = vmatpush2.bf16.msra.mxu0 0
    %1661 = vmatprep.subr.bf16.mxu0 0
    %1662 = vmatpush2.bf16.msra.mxu0 0
    %1663 = vmatprep.mubr.bf16.mxu0 0
    %1664 = vmatmul.mubr.bf16.gmra.mxu0 %v1587
    %v1665 = vpop.f32.mrf.mxu0
    %v1666 = vadd.f32 0.0, %v1665
    %v1667 = vpop.f32.mrf.mxu0
    %v1668 = vadd.f32 0.0, %v1667
    %v1669 = vpop.f32.mrf.mxu0
    %v1670 = vadd.f32 0.0, %v1669
    %v1671 = vpop.f32.mrf.mxu0
    %v1672 = vadd.f32 0.0, %v1671
    %1673 = vdwg.mxu0
    %1674 = vmatprep.subr.bf16.mxu0 %v855
    %1675 = vmatpush1.bf16.msra.mxu0 %v854
    %1676 = vmatprep.subr.bf16.mxu0 %v851
    %1677 = vmatpush1.bf16.msra.mxu0 %v850
    %1678 = vmatprep.subr.bf16.mxu0 %v847
    %1679 = vmatpush1.bf16.msra.mxu0 %v846
    %1680 = vmatprep.subr.bf16.mxu0 %v843
    %1681 = vmatpush1.bf16.msra.mxu0 %v842
    %1682 = vmatprep.subr.bf16.mxu0 %v839
    %1683 = vmatpush1.bf16.msra.mxu0 %v838
    %1684 = vmatprep.subr.bf16.mxu0 %v835
    %1685 = vmatpush1.bf16.msra.mxu0 %v834
    %1686 = vmatprep.subr.bf16.mxu0 %v831
    %1687 = vmatpush1.bf16.msra.mxu0 %v830
    %1688 = vmatprep.subr.bf16.mxu0 %v827
    %1689 = vmatpush1.bf16.msra.mxu0 %v826
    %1690 = vmatprep.subr.bf16.mxu0 0
    %1691 = vmatpush2.bf16.msra.mxu0 0
    %1692 = vmatprep.subr.bf16.mxu0 0
    %1693 = vmatpush2.bf16.msra.mxu0 0
    %1694 = vmatprep.subr.bf16.mxu0 0
    %1695 = vmatpush2.bf16.msra.mxu0 0
    %1696 = vmatprep.subr.bf16.mxu0 0
    %1697 = vmatpush2.bf16.msra.mxu0 0
    %1698 = vmatprep.subr.bf16.mxu0 0
    %1699 = vmatpush2.bf16.msra.mxu0 0
    %1700 = vmatprep.subr.bf16.mxu0 0
    %1701 = vmatpush2.bf16.msra.mxu0 0
    %1702 = vmatprep.subr.bf16.mxu0 0
    %1703 = vmatpush2.bf16.msra.mxu0 0
    %1704 = vmatprep.subr.bf16.mxu0 0
    %1705 = vmatpush2.bf16.msra.mxu0 0
    %1706 = vmatprep.mubr.bf16.mxu0 0
    %1707 = vmatmul.mubr.bf16.gmra.mxu0 %v1586
    %v1708 = vpop.f32.mrf.mxu0
    %v1709 = vadd.f32 %v1623, %v1708
    %v1710 = vpop.f32.mrf.mxu0
    %v1711 = vadd.f32 %v1625, %v1710
    %v1712 = vpop.f32.mrf.mxu0
    %v1713 = vadd.f32 %v1627, %v1712
    %v1714 = vpop.f32.mrf.mxu0
    %v1715 = vadd.f32 %v1629, %v1714
    %1716 = vdwg.mxu0
    %1717 = vmatprep.subr.bf16.mxu0 %v857
    %1718 = vmatpush1.bf16.msra.mxu0 %v856
    %1719 = vmatprep.subr.bf16.mxu0 %v853
    %1720 = vmatpush1.bf16.msra.mxu0 %v852
    %1721 = vmatprep.subr.bf16.mxu0 %v849
    %1722 = vmatpush1.bf16.msra.mxu0 %v848
    %1723 = vmatprep.subr.bf16.mxu0 %v845
    %1724 = vmatpush1.bf16.msra.mxu0 %v844
    %1725 = vmatprep.subr.bf16.mxu0 %v841
    %1726 = vmatpush1.bf16.msra.mxu0 %v840
    %1727 = vmatprep.subr.bf16.mxu0 %v837
    %1728 = vmatpush1.bf16.msra.mxu0 %v836
    %1729 = vmatprep.subr.bf16.mxu0 %v833
    %1730 = vmatpush1.bf16.msra.mxu0 %v832
    %1731 = vmatprep.subr.bf16.mxu0 %v829
    %1732 = vmatpush1.bf16.msra.mxu0 %v828
    %1733 = vmatprep.subr.bf16.mxu0 0
    %1734 = vmatpush2.bf16.msra.mxu0 0
    %1735 = vmatprep.subr.bf16.mxu0 0
    %1736 = vmatpush2.bf16.msra.mxu0 0
    %1737 = vmatprep.subr.bf16.mxu0 0
    %1738 = vmatpush2.bf16.msra.mxu0 0
    %1739 = vmatprep.subr.bf16.mxu0 0
    %1740 = vmatpush2.bf16.msra.mxu0 0
    %1741 = vmatprep.subr.bf16.mxu0 0
    %1742 = vmatpush2.bf16.msra.mxu0 0
    %1743 = vmatprep.subr.bf16.mxu0 0
    %1744 = vmatpush2.bf16.msra.mxu0 0
    %1745 = vmatprep.subr.bf16.mxu0 0
    %1746 = vmatpush2.bf16.msra.mxu0 0
    %1747 = vmatprep.subr.bf16.mxu0 0
    %1748 = vmatpush2.bf16.msra.mxu0 0
    %1749 = vmatprep.mubr.bf16.mxu0 0
    %1750 = vmatmul.mubr.bf16.gmra.mxu0 %v1586
    %v1751 = vpop.f32.mrf.mxu0
    %v1752 = vadd.f32 %v1666, %v1751
    %v1753 = vpop.f32.mrf.mxu0
    %v1754 = vadd.f32 %v1668, %v1753
    %v1755 = vpop.f32.mrf.mxu0
    %v1756 = vadd.f32 %v1670, %v1755
    %v1757 = vpop.f32.mrf.mxu0
    %v1758 = vadd.f32 %v1672, %v1757
    %1759 = vdwg.mxu0
    %v1760 = vadd.f32 %v1709, %v981
    %v1761 = vadd.f32 %v1711, %v985
    %v1762 = vadd.f32 %v1752, %v989
    %v1763 = vadd.f32 %v1754, %v993
    %v1764 = vadd.f32 %v1713, %v981
    %v1765 = vadd.f32 %v1715, %v985
    %v1766 = vadd.f32 %v1756, %v989
    %v1767 = vadd.f32 %v1758, %v993
    %v1768 = vxor.u32 %v1760, 2147483648
    %v1769 = vxor.u32 %v1761, 2147483648
    %v1770 = vxor.u32 %v1762, 2147483648
    %v1771 = vxor.u32 %v1764, 2147483648
    %v1772 = vxor.u32 %v1765, 2147483648
    %v1773 = vxor.u32 %v1766, 2147483648
    %v1774 = vmul.f32 %v1768, 1.442695
    %v1775 = vpow.pop %v1774
    %v1776 = vmul.f32 %v1769, 1.442695
    %v1777 = vpow.pop %v1776
    %v1778 = vmul.f32 %v1770, 1.442695
    %v1779 = vpow.pop %v1778
    %v1780 = vmul.f32 %v1771, 1.442695
    %v1781 = vpow.pop %v1780
    %v1782 = vmul.f32 %v1772, 1.442695
    %v1783 = vpow.pop %v1782
    %v1784 = vmul.f32 %v1773, 1.442695
    %v1785 = vpow.pop %v1784
    %v1786 = vadd.f32 %v1775, 1.0
    %v1787 = vadd.f32 %v1777, 1.0
    %v1788 = vadd.f32 %v1779, 1.0
    %v1789 = vadd.f32 %v1781, 1.0
    %v1790 = vadd.f32 %v1783, 1.0
    %v1791 = vadd.f32 %v1785, 1.0
    %v1792 = vrcp.pop %v1786
    %v1793 = vmul.f32 1.0, %v1792
    %v1794 = vrcp.pop %v1787
    %v1795 = vmul.f32 1.0, %v1794
    %v1796 = vrcp.pop %v1788
    %v1797 = vmul.f32 1.0, %v1796
    %v1798 = vrcp.pop %v1789
    %v1799 = vmul.f32 1.0, %v1798
    %v1800 = vrcp.pop %v1790
    %v1801 = vmul.f32 1.0, %v1800
    %v1802 = vrcp.pop %v1791
    %v1803 = vmul.f32 1.0, %v1802
    %v1804 = vtanh.pop %v1763
    %v1805 = vtanh.pop %v1767
    %v1806 = vmul.f32 %v1795, %v1429
    %v1807 = vmul.f32 %v1801, %v1430
    %v1808 = vmul.f32 %v1793, %v1804
    %v1809 = vmul.f32 %v1799, %v1805
    %v1810 = vadd.f32 %v1806, %v1808
    %v1811 = vadd.f32 %v1807, %v1809
    %v1812 = vtanh.pop %v1810
    %v1813 = vtanh.pop %v1811
    %v1814 = vmul.f32 %v1797, %v1812
    %v1815 = vmul.f32 %v1803, %v1813
    %s1816 = scalar_lea.vmem [#allocation2], 192
    %v1817 = vld [vmem:[%s1816] sm:$0xff]
    %v1818 = vld [vmem:[%s1816 + $0x8] sm:$0xff]
    %v1819 = vld [vmem:[%s1816 + $0x10] sm:$0xff]
    %v1820 = vld [vmem:[%s1816 + $0x18] sm:$0xff]
    %v1821 = vld [vmem:[%s1816 + $0x20] sm:$0xff]
    %v1822 = vld [vmem:[%s1816 + $0x28] sm:$0xff]
    %v1823 = vld [vmem:[%s1816 + $0x30] sm:$0xff]
    %v1824 = vld [vmem:[%s1816 + $0x38] sm:$0xff]
    %1825 = vmatprep.subr.bf16.mxu0 %v242
    %1826 = vmatpush1.bf16.msra.mxu0 %v241
    %1827 = vmatprep.subr.bf16.mxu0 %v238
    %1828 = vmatpush1.bf16.msra.mxu0 %v237
    %1829 = vmatprep.subr.bf16.mxu0 %v234
    %1830 = vmatpush1.bf16.msra.mxu0 %v233
    %1831 = vmatprep.subr.bf16.mxu0 %v230
    %1832 = vmatpush1.bf16.msra.mxu0 %v229
    %1833 = vmatprep.subr.bf16.mxu0 %v226
    %1834 = vmatpush1.bf16.msra.mxu0 %v225
    %1835 = vmatprep.subr.bf16.mxu0 %v222
    %1836 = vmatpush1.bf16.msra.mxu0 %v221
    %1837 = vmatprep.subr.bf16.mxu0 %v218
    %1838 = vmatpush1.bf16.msra.mxu0 %v217
    %1839 = vmatprep.subr.bf16.mxu0 %v214
    %1840 = vmatpush1.bf16.msra.mxu0 %v213
    %1841 = vmatprep.subr.bf16.mxu0 0
    %1842 = vmatpush2.bf16.msra.mxu0 0
    %1843 = vmatprep.subr.bf16.mxu0 0
    %1844 = vmatpush2.bf16.msra.mxu0 0
    %1845 = vmatprep.subr.bf16.mxu0 0
    %1846 = vmatpush2.bf16.msra.mxu0 0
    %1847 = vmatprep.subr.bf16.mxu0 0
    %1848 = vmatpush2.bf16.msra.mxu0 0
    %1849 = vmatprep.subr.bf16.mxu0 0
    %1850 = vmatpush2.bf16.msra.mxu0 0
    %1851 = vmatprep.subr.bf16.mxu0 0
    %1852 = vmatpush2.bf16.msra.mxu0 0
    %1853 = vmatprep.subr.bf16.mxu0 0
    %1854 = vmatpush2.bf16.msra.mxu0 0
    %1855 = vmatprep.subr.bf16.mxu0 0
    %1856 = vmatpush2.bf16.msra.mxu0 0
    %1857 = vmatprep.mubr.bf16.mxu0 0
    %1858 = vmatmul.mubr.bf16.gmra.mxu0 %v1586
    %v1859 = vpop.f32.mrf.mxu0
    %v1860 = vadd.f32 0.0, %v1859
    %v1861 = vpop.f32.mrf.mxu0
    %v1862 = vadd.f32 0.0, %v1861
    %v1863 = vpop.f32.mrf.mxu0
    %v1864 = vadd.f32 0.0, %v1863
    %v1865 = vpop.f32.mrf.mxu0
    %v1866 = vadd.f32 0.0, %v1865
    %1867 = vdwg.mxu0
    %1868 = vmatprep.subr.bf16.mxu0 %v244
    %1869 = vmatpush1.bf16.msra.mxu0 %v243
    %1870 = vmatprep.subr.bf16.mxu0 %v240
    %1871 = vmatpush1.bf16.msra.mxu0 %v239
    %1872 = vmatprep.subr.bf16.mxu0 %v236
    %1873 = vmatpush1.bf16.msra.mxu0 %v235
    %1874 = vmatprep.subr.bf16.mxu0 %v232
    %1875 = vmatpush1.bf16.msra.mxu0 %v231
    %1876 = vmatprep.subr.bf16.mxu0 %v228
    %1877 = vmatpush1.bf16.msra.mxu0 %v227
    %1878 = vmatprep.subr.bf16.mxu0 %v224
    %1879 = vmatpush1.bf16.msra.mxu0 %v223
    %1880 = vmatprep.subr.bf16.mxu0 %v220
    %1881 = vmatpush1.bf16.msra.mxu0 %v219
    %1882 = vmatprep.subr.bf16.mxu0 %v216
    %1883 = vmatpush1.bf16.msra.mxu0 %v215
    %1884 = vmatprep.subr.bf16.mxu0 0
    %1885 = vmatpush2.bf16.msra.mxu0 0
    %1886 = vmatprep.subr.bf16.mxu0 0
    %1887 = vmatpush2.bf16.msra.mxu0 0
    %1888 = vmatprep.subr.bf16.mxu0 0
    %1889 = vmatpush2.bf16.msra.mxu0 0
    %1890 = vmatprep.subr.bf16.mxu0 0
    %1891 = vmatpush2.bf16.msra.mxu0 0
    %1892 = vmatprep.subr.bf16.mxu0 0
    %1893 = vmatpush2.bf16.msra.mxu0 0
    %1894 = vmatprep.subr.bf16.mxu0 0
    %1895 = vmatpush2.bf16.msra.mxu0 0
    %1896 = vmatprep.subr.bf16.mxu0 0
    %1897 = vmatpush2.bf16.msra.mxu0 0
    %1898 = vmatprep.subr.bf16.mxu0 0
    %1899 = vmatpush2.bf16.msra.mxu0 0
    %1900 = vmatprep.mubr.bf16.mxu0 0
    %1901 = vmatmul.mubr.bf16.gmra.mxu0 %v1586
    %v1902 = vpop.f32.mrf.mxu0
    %v1903 = vadd.f32 0.0, %v1902
    %v1904 = vpop.f32.mrf.mxu0
    %v1905 = vadd.f32 0.0, %v1904
    %v1906 = vpop.f32.mrf.mxu0
    %v1907 = vadd.f32 0.0, %v1906
    %v1908 = vpop.f32.mrf.mxu0
    %v1909 = vadd.f32 0.0, %v1908
    %1910 = vdwg.mxu0
    %v1911 = vadd.f32 %v1817, %v1860
    %v1912 = vadd.f32 %v1818, %v1862
    %v1913 = vadd.f32 %v1819, %v1903
    %v1914 = vadd.f32 %v1820, %v1905
    %v1915 = vadd.f32 %v1821, %v1864
    %v1916 = vadd.f32 %v1822, %v1866
    %v1917 = vadd.f32 %v1823, %v1907
    %v1918 = vadd.f32 %v1824, %v1909
    %v1919 = vxor.u32 %v1911, 2147483648
    %v1920 = vxor.u32 %v1912, 2147483648
    %v1921 = vxor.u32 %v1913, 2147483648
    %v1922 = vxor.u32 %v1915, 2147483648
    %v1923 = vxor.u32 %v1916, 2147483648
    %v1924 = vxor.u32 %v1917, 2147483648
    %v1925 = vmul.f32 %v1919, 1.442695
    %v1926 = vpow.pop %v1925
    %v1927 = vmul.f32 %v1920, 1.442695
    %v1928 = vpow.pop %v1927
    %v1929 = vmul.f32 %v1921, 1.442695
    %v1930 = vpow.pop %v1929
    %v1931 = vmul.f32 %v1922, 1.442695
    %v1932 = vpow.pop %v1931
    %v1933 = vmul.f32 %v1923, 1.442695
    %v1934 = vpow.pop %v1933
    %v1935 = vmul.f32 %v1924, 1.442695
    %v1936 = vpow.pop %v1935
    %v1937 = vadd.f32 %v1926, 1.0
    %v1938 = vadd.f32 %v1928, 1.0
    %v1939 = vadd.f32 %v1930, 1.0
    %v1940 = vadd.f32 %v1932, 1.0
    %v1941 = vadd.f32 %v1934, 1.0
    %v1942 = vadd.f32 %v1936, 1.0
    %v1943 = vrcp.pop %v1937
    %v1944 = vmul.f32 1.0, %v1943
    %v1945 = vrcp.pop %v1938
    %v1946 = vmul.f32 1.0, %v1945
    %v1947 = vrcp.pop %v1939
    %v1948 = vmul.f32 1.0, %v1947
    %v1949 = vrcp.pop %v1940
    %v1950 = vmul.f32 1.0, %v1949
    %v1951 = vrcp.pop %v1941
    %v1952 = vmul.f32 1.0, %v1951
    %v1953 = vrcp.pop %v1942
    %v1954 = vmul.f32 1.0, %v1953
    %v1955 = vtanh.pop %v1914
    %v1956 = vtanh.pop %v1918
    %v1957 = vmul.f32 %v1946, %v1580
    %v1958 = vmul.f32 %v1952, %v1581
    %v1959 = vmul.f32 %v1944, %v1955
    %v1960 = vmul.f32 %v1950, %v1956
    %v1961 = vadd.f32 %v1957, %v1959
    %v1962 = vadd.f32 %v1958, %v1960
    %v1963 = vtanh.pop %v1961
    %v1964 = vtanh.pop %v1962
    %v1965 = vmul.f32 %v1948, %v1963
    %v1966 = vmul.f32 %v1954, %v1964
    %v1967 = vpack.c.bf16 %v1966, %v1965
    %v1968 = vpack.c.bf16 %v1815, %v1814
    %1969 = vmatprep.subr.bf16.mxu0 %v609
    %1970 = vmatpush1.bf16.msra.mxu0 %v608
    %1971 = vmatprep.subr.bf16.mxu0 %v605
    %1972 = vmatpush1.bf16.msra.mxu0 %v604
    %1973 = vmatprep.subr.bf16.mxu0 %v601
    %1974 = vmatpush1.bf16.msra.mxu0 %v600
    %1975 = vmatprep.subr.bf16.mxu0 %v597
    %1976 = vmatpush1.bf16.msra.mxu0 %v596
    %1977 = vmatprep.subr.bf16.mxu0 %v593
    %1978 = vmatpush1.bf16.msra.mxu0 %v592
    %1979 = vmatprep.subr.bf16.mxu0 %v589
    %1980 = vmatpush1.bf16.msra.mxu0 %v588
    %1981 = vmatprep.subr.bf16.mxu0 %v585
    %1982 = vmatpush1.bf16.msra.mxu0 %v584
    %1983 = vmatprep.subr.bf16.mxu0 %v581
    %1984 = vmatpush1.bf16.msra.mxu0 %v580
    %1985 = vmatprep.subr.bf16.mxu0 0
    %1986 = vmatpush2.bf16.msra.mxu0 0
    %1987 = vmatprep.subr.bf16.mxu0 0
    %1988 = vmatpush2.bf16.msra.mxu0 0
    %1989 = vmatprep.subr.bf16.mxu0 0
    %1990 = vmatpush2.bf16.msra.mxu0 0
    %1991 = vmatprep.subr.bf16.mxu0 0
    %1992 = vmatpush2.bf16.msra.mxu0 0
    %1993 = vmatprep.subr.bf16.mxu0 0
    %1994 = vmatpush2.bf16.msra.mxu0 0
    %1995 = vmatprep.subr.bf16.mxu0 0
    %1996 = vmatpush2.bf16.msra.mxu0 0
    %1997 = vmatprep.subr.bf16.mxu0 0
    %1998 = vmatpush2.bf16.msra.mxu0 0
    %1999 = vmatprep.subr.bf16.mxu0 0
    %2000 = vmatpush2.bf16.msra.mxu0 0
    %2001 = vmatprep.mubr.bf16.mxu0 0
    %2002 = vmatmul.mubr.bf16.gmra.mxu0 %v1968
    %v2003 = vpop.f32.mrf.mxu0
    %v2004 = vadd.f32 0.0, %v2003
    %v2005 = vpop.f32.mrf.mxu0
    %v2006 = vadd.f32 0.0, %v2005
    %v2007 = vpop.f32.mrf.mxu0
    %v2008 = vadd.f32 0.0, %v2007
    %v2009 = vpop.f32.mrf.mxu0
    %v2010 = vadd.f32 0.0, %v2009
    %2011 = vdwg.mxu0
    %2012 = vmatprep.subr.bf16.mxu0 %v611
    %2013 = vmatpush1.bf16.msra.mxu0 %v610
    %2014 = vmatprep.subr.bf16.mxu0 %v607
    %2015 = vmatpush1.bf16.msra.mxu0 %v606
    %2016 = vmatprep.subr.bf16.mxu0 %v603
    %2017 = vmatpush1.bf16.msra.mxu0 %v602
    %2018 = vmatprep.subr.bf16.mxu0 %v599
    %2019 = vmatpush1.bf16.msra.mxu0 %v598
    %2020 = vmatprep.subr.bf16.mxu0 %v595
    %2021 = vmatpush1.bf16.msra.mxu0 %v594
    %2022 = vmatprep.subr.bf16.mxu0 %v591
    %2023 = vmatpush1.bf16.msra.mxu0 %v590
    %2024 = vmatprep.subr.bf16.mxu0 %v587
    %2025 = vmatpush1.bf16.msra.mxu0 %v586
    %2026 = vmatprep.subr.bf16.mxu0 %v583
    %2027 = vmatpush1.bf16.msra.mxu0 %v582
    %2028 = vmatprep.subr.bf16.mxu0 0
    %2029 = vmatpush2.bf16.msra.mxu0 0
    %2030 = vmatprep.subr.bf16.mxu0 0
    %2031 = vmatpush2.bf16.msra.mxu0 0
    %2032 = vmatprep.subr.bf16.mxu0 0
    %2033 = vmatpush2.bf16.msra.mxu0 0
    %2034 = vmatprep.subr.bf16.mxu0 0
    %2035 = vmatpush2.bf16.msra.mxu0 0
    %2036 = vmatprep.subr.bf16.mxu0 0
    %2037 = vmatpush2.bf16.msra.mxu0 0
    %2038 = vmatprep.subr.bf16.mxu0 0
    %2039 = vmatpush2.bf16.msra.mxu0 0
    %2040 = vmatprep.subr.bf16.mxu0 0
    %2041 = vmatpush2.bf16.msra.mxu0 0
    %2042 = vmatprep.subr.bf16.mxu0 0
    %2043 = vmatpush2.bf16.msra.mxu0 0
    %2044 = vmatprep.mubr.bf16.mxu0 0
    %2045 = vmatmul.mubr.bf16.gmra.mxu0 %v1968
    %v2046 = vpop.f32.mrf.mxu0
    %v2047 = vadd.f32 0.0, %v2046
    %v2048 = vpop.f32.mrf.mxu0
    %v2049 = vadd.f32 0.0, %v2048
    %v2050 = vpop.f32.mrf.mxu0
    %v2051 = vadd.f32 0.0, %v2050
    %v2052 = vpop.f32.mrf.mxu0
    %v2053 = vadd.f32 0.0, %v2052
    %2054 = vdwg.mxu0
    %2055 = vmatprep.subr.bf16.mxu0 %v855
    %2056 = vmatpush1.bf16.msra.mxu0 %v854
    %2057 = vmatprep.subr.bf16.mxu0 %v851
    %2058 = vmatpush1.bf16.msra.mxu0 %v850
    %2059 = vmatprep.subr.bf16.mxu0 %v847
    %2060 = vmatpush1.bf16.msra.mxu0 %v846
    %2061 = vmatprep.subr.bf16.mxu0 %v843
    %2062 = vmatpush1.bf16.msra.mxu0 %v842
    %2063 = vmatprep.subr.bf16.mxu0 %v839
    %2064 = vmatpush1.bf16.msra.mxu0 %v838
    %2065 = vmatprep.subr.bf16.mxu0 %v835
    %2066 = vmatpush1.bf16.msra.mxu0 %v834
    %2067 = vmatprep.subr.bf16.mxu0 %v831
    %2068 = vmatpush1.bf16.msra.mxu0 %v830
    %2069 = vmatprep.subr.bf16.mxu0 %v827
    %2070 = vmatpush1.bf16.msra.mxu0 %v826
    %2071 = vmatprep.subr.bf16.mxu0 0
    %2072 = vmatpush2.bf16.msra.mxu0 0
    %2073 = vmatprep.subr.bf16.mxu0 0
    %2074 = vmatpush2.bf16.msra.mxu0 0
    %2075 = vmatprep.subr.bf16.mxu0 0
    %2076 = vmatpush2.bf16.msra.mxu0 0
    %2077 = vmatprep.subr.bf16.mxu0 0
    %2078 = vmatpush2.bf16.msra.mxu0 0
    %2079 = vmatprep.subr.bf16.mxu0 0
    %2080 = vmatpush2.bf16.msra.mxu0 0
    %2081 = vmatprep.subr.bf16.mxu0 0
    %2082 = vmatpush2.bf16.msra.mxu0 0
    %2083 = vmatprep.subr.bf16.mxu0 0
    %2084 = vmatpush2.bf16.msra.mxu0 0
    %2085 = vmatprep.subr.bf16.mxu0 0
    %2086 = vmatpush2.bf16.msra.mxu0 0
    %2087 = vmatprep.mubr.bf16.mxu0 0
    %2088 = vmatmul.mubr.bf16.gmra.mxu0 %v1967
    %v2089 = vpop.f32.mrf.mxu0
    %v2090 = vadd.f32 %v2004, %v2089
    %v2091 = vpop.f32.mrf.mxu0
    %v2092 = vadd.f32 %v2006, %v2091
    %v2093 = vpop.f32.mrf.mxu0
    %v2094 = vadd.f32 %v2008, %v2093
    %v2095 = vpop.f32.mrf.mxu0
    %v2096 = vadd.f32 %v2010, %v2095
    %2097 = vdwg.mxu0
    %2098 = vmatprep.subr.bf16.mxu0 %v857
    %2099 = vmatpush1.bf16.msra.mxu0 %v856
    %2100 = vmatprep.subr.bf16.mxu0 %v853
    %2101 = vmatpush1.bf16.msra.mxu0 %v852
    %2102 = vmatprep.subr.bf16.mxu0 %v849
    %2103 = vmatpush1.bf16.msra.mxu0 %v848
    %2104 = vmatprep.subr.bf16.mxu0 %v845
    %2105 = vmatpush1.bf16.msra.mxu0 %v844
    %2106 = vmatprep.subr.bf16.mxu0 %v841
    %2107 = vmatpush1.bf16.msra.mxu0 %v840
    %2108 = vmatprep.subr.bf16.mxu0 %v837
    %2109 = vmatpush1.bf16.msra.mxu0 %v836
    %2110 = vmatprep.subr.bf16.mxu0 %v833
    %2111 = vmatpush1.bf16.msra.mxu0 %v832
    %2112 = vmatprep.subr.bf16.mxu0 %v829
    %2113 = vmatpush1.bf16.msra.mxu0 %v828
    %2114 = vmatprep.subr.bf16.mxu0 0
    %2115 = vmatpush2.bf16.msra.mxu0 0
    %2116 = vmatprep.subr.bf16.mxu0 0
    %2117 = vmatpush2.bf16.msra.mxu0 0
    %2118 = vmatprep.subr.bf16.mxu0 0
    %2119 = vmatpush2.bf16.msra.mxu0 0
    %2120 = vmatprep.subr.bf16.mxu0 0
    %2121 = vmatpush2.bf16.msra.mxu0 0
    %2122 = vmatprep.subr.bf16.mxu0 0
    %2123 = vmatpush2.bf16.msra.mxu0 0
    %2124 = vmatprep.subr.bf16.mxu0 0
    %2125 = vmatpush2.bf16.msra.mxu0 0
    %2126 = vmatprep.subr.bf16.mxu0 0
    %2127 = vmatpush2.bf16.msra.mxu0 0
    %2128 = vmatprep.subr.bf16.mxu0 0
    %2129 = vmatpush2.bf16.msra.mxu0 0
    %2130 = vmatprep.mubr.bf16.mxu0 0
    %2131 = vmatmul.mubr.bf16.gmra.mxu0 %v1967
    %v2132 = vpop.f32.mrf.mxu0
    %v2133 = vadd.f32 %v2047, %v2132
    %v2134 = vpop.f32.mrf.mxu0
    %v2135 = vadd.f32 %v2049, %v2134
    %v2136 = vpop.f32.mrf.mxu0
    %v2137 = vadd.f32 %v2051, %v2136
    %v2138 = vpop.f32.mrf.mxu0
    %v2139 = vadd.f32 %v2053, %v2138
    %2140 = vdwg.mxu0
    %v2141 = vadd.f32 %v2090, %v981
    %v2142 = vadd.f32 %v2092, %v985
    %v2143 = vadd.f32 %v2133, %v989
    %v2144 = vadd.f32 %v2135, %v993
    %v2145 = vadd.f32 %v2094, %v981
    %v2146 = vadd.f32 %v2096, %v985
    %v2147 = vadd.f32 %v2137, %v989
    %v2148 = vadd.f32 %v2139, %v993
    %v2149 = vxor.u32 %v2141, 2147483648
    %v2150 = vxor.u32 %v2142, 2147483648
    %v2151 = vxor.u32 %v2143, 2147483648
    %v2152 = vxor.u32 %v2145, 2147483648
    %v2153 = vxor.u32 %v2146, 2147483648
    %v2154 = vxor.u32 %v2147, 2147483648
    %v2155 = vmul.f32 %v2149, 1.442695
    %v2156 = vpow.pop %v2155
    %v2157 = vmul.f32 %v2150, 1.442695
    %v2158 = vpow.pop %v2157
    %v2159 = vmul.f32 %v2151, 1.442695
    %v2160 = vpow.pop %v2159
    %v2161 = vmul.f32 %v2152, 1.442695
    %v2162 = vpow.pop %v2161
    %v2163 = vmul.f32 %v2153, 1.442695
    %v2164 = vpow.pop %v2163
    %v2165 = vmul.f32 %v2154, 1.442695
    %v2166 = vpow.pop %v2165
    %v2167 = vadd.f32 %v2156, 1.0
    %v2168 = vadd.f32 %v2158, 1.0
    %v2169 = vadd.f32 %v2160, 1.0
    %v2170 = vadd.f32 %v2162, 1.0
    %v2171 = vadd.f32 %v2164, 1.0
    %v2172 = vadd.f32 %v2166, 1.0
    %v2173 = vrcp.pop %v2167
    %v2174 = vmul.f32 1.0, %v2173
    %v2175 = vrcp.pop %v2168
    %v2176 = vmul.f32 1.0, %v2175
    %v2177 = vrcp.pop %v2169
    %v2178 = vmul.f32 1.0, %v2177
    %v2179 = vrcp.pop %v2170
    %v2180 = vmul.f32 1.0, %v2179
    %v2181 = vrcp.pop %v2171
    %v2182 = vmul.f32 1.0, %v2181
    %v2183 = vrcp.pop %v2172
    %v2184 = vmul.f32 1.0, %v2183
    %v2185 = vtanh.pop %v2144
    %v2186 = vtanh.pop %v2148
    %v2187 = vmul.f32 %v2176, %v1810
    %v2188 = vmul.f32 %v2182, %v1811
    %v2189 = vmul.f32 %v2174, %v2185
    %v2190 = vmul.f32 %v2180, %v2186
    %v2191 = vadd.f32 %v2187, %v2189
    %v2192 = vadd.f32 %v2188, %v2190
    %v2193 = vtanh.pop %v2191
    %v2194 = vtanh.pop %v2192
    %v2195 = vmul.f32 %v2178, %v2193
    %v2196 = vmul.f32 %v2184, %v2194
    %s2197 = scalar_lea.vmem [#allocation2], 256
    %v2198 = vld [vmem:[%s2197] sm:$0xff]
    %v2199 = vld [vmem:[%s2197 + $0x8] sm:$0xff]
    %v2200 = vld [vmem:[%s2197 + $0x10] sm:$0xff]
    %v2201 = vld [vmem:[%s2197 + $0x18] sm:$0xff]
    %v2202 = vld [vmem:[%s2197 + $0x20] sm:$0xff]
    %v2203 = vld [vmem:[%s2197 + $0x28] sm:$0xff]
    %v2204 = vld [vmem:[%s2197 + $0x30] sm:$0xff]
    %v2205 = vld [vmem:[%s2197 + $0x38] sm:$0xff]
    %2206 = vmatprep.subr.bf16.mxu0 %v242
    %2207 = vmatpush1.bf16.msra.mxu0 %v241
    %2208 = vmatprep.subr.bf16.mxu0 %v238
    %2209 = vmatpush1.bf16.msra.mxu0 %v237
    %2210 = vmatprep.subr.bf16.mxu0 %v234
    %2211 = vmatpush1.bf16.msra.mxu0 %v233
    %2212 = vmatprep.subr.bf16.mxu0 %v230
    %2213 = vmatpush1.bf16.msra.mxu0 %v229
    %2214 = vmatprep.subr.bf16.mxu0 %v226
    %2215 = vmatpush1.bf16.msra.mxu0 %v225
    %2216 = vmatprep.subr.bf16.mxu0 %v222
    %2217 = vmatpush1.bf16.msra.mxu0 %v221
    %2218 = vmatprep.subr.bf16.mxu0 %v218
    %2219 = vmatpush1.bf16.msra.mxu0 %v217
    %2220 = vmatprep.subr.bf16.mxu0 %v214
    %2221 = vmatpush1.bf16.msra.mxu0 %v213
    %2222 = vmatprep.subr.bf16.mxu0 0
    %2223 = vmatpush2.bf16.msra.mxu0 0
    %2224 = vmatprep.subr.bf16.mxu0 0
    %2225 = vmatpush2.bf16.msra.mxu0 0
    %2226 = vmatprep.subr.bf16.mxu0 0
    %2227 = vmatpush2.bf16.msra.mxu0 0
    %2228 = vmatprep.subr.bf16.mxu0 0
    %2229 = vmatpush2.bf16.msra.mxu0 0
    %2230 = vmatprep.subr.bf16.mxu0 0
    %2231 = vmatpush2.bf16.msra.mxu0 0
    %2232 = vmatprep.subr.bf16.mxu0 0
    %2233 = vmatpush2.bf16.msra.mxu0 0
    %2234 = vmatprep.subr.bf16.mxu0 0
    %2235 = vmatpush2.bf16.msra.mxu0 0
    %2236 = vmatprep.subr.bf16.mxu0 0
    %2237 = vmatpush2.bf16.msra.mxu0 0
    %2238 = vmatprep.mubr.bf16.mxu0 0
    %2239 = vmatmul.mubr.bf16.gmra.mxu0 %v1967
    %v2240 = vpop.f32.mrf.mxu0
    %v2241 = vadd.f32 0.0, %v2240
    %v2242 = vpop.f32.mrf.mxu0
    %v2243 = vadd.f32 0.0, %v2242
    %v2244 = vpop.f32.mrf.mxu0
    %v2245 = vadd.f32 0.0, %v2244
    %v2246 = vpop.f32.mrf.mxu0
    %v2247 = vadd.f32 0.0, %v2246
    %2248 = vdwg.mxu0
    %2249 = vmatprep.subr.bf16.mxu0 %v244
    %2250 = vmatpush1.bf16.msra.mxu0 %v243
    %2251 = vmatprep.subr.bf16.mxu0 %v240
    %2252 = vmatpush1.bf16.msra.mxu0 %v239
    %2253 = vmatprep.subr.bf16.mxu0 %v236
    %2254 = vmatpush1.bf16.msra.mxu0 %v235
    %2255 = vmatprep.subr.bf16.mxu0 %v232
    %2256 = vmatpush1.bf16.msra.mxu0 %v231
    %2257 = vmatprep.subr.bf16.mxu0 %v228
    %2258 = vmatpush1.bf16.msra.mxu0 %v227
    %2259 = vmatprep.subr.bf16.mxu0 %v224
    %2260 = vmatpush1.bf16.msra.mxu0 %v223
    %2261 = vmatprep.subr.bf16.mxu0 %v220
    %2262 = vmatpush1.bf16.msra.mxu0 %v219
    %2263 = vmatprep.subr.bf16.mxu0 %v216
    %2264 = vmatpush1.bf16.msra.mxu0 %v215
    %2265 = vmatprep.subr.bf16.mxu0 0
    %2266 = vmatpush2.bf16.msra.mxu0 0
    %2267 = vmatprep.subr.bf16.mxu0 0
    %2268 = vmatpush2.bf16.msra.mxu0 0
    %2269 = vmatprep.subr.bf16.mxu0 0
    %2270 = vmatpush2.bf16.msra.mxu0 0
    %2271 = vmatprep.subr.bf16.mxu0 0
    %2272 = vmatpush2.bf16.msra.mxu0 0
    %2273 = vmatprep.subr.bf16.mxu0 0
    %2274 = vmatpush2.bf16.msra.mxu0 0
    %2275 = vmatprep.subr.bf16.mxu0 0
    %2276 = vmatpush2.bf16.msra.mxu0 0
    %2277 = vmatprep.subr.bf16.mxu0 0
    %2278 = vmatpush2.bf16.msra.mxu0 0
    %2279 = vmatprep.subr.bf16.mxu0 0
    %2280 = vmatpush2.bf16.msra.mxu0 0
    %2281 = vmatprep.mubr.bf16.mxu0 0
    %2282 = vmatmul.mubr.bf16.gmra.mxu0 %v1967
    %v2283 = vpop.f32.mrf.mxu0
    %v2284 = vadd.f32 0.0, %v2283
    %v2285 = vpop.f32.mrf.mxu0
    %v2286 = vadd.f32 0.0, %v2285
    %v2287 = vpop.f32.mrf.mxu0
    %v2288 = vadd.f32 0.0, %v2287
    %v2289 = vpop.f32.mrf.mxu0
    %v2290 = vadd.f32 0.0, %v2289
    %2291 = vdwg.mxu0
    %v2292 = vadd.f32 %v2198, %v2241
    %v2293 = vadd.f32 %v2199, %v2243
    %v2294 = vadd.f32 %v2200, %v2284
    %v2295 = vadd.f32 %v2201, %v2286
    %v2296 = vadd.f32 %v2202, %v2245
    %v2297 = vadd.f32 %v2203, %v2247
    %v2298 = vadd.f32 %v2204, %v2288
    %v2299 = vadd.f32 %v2205, %v2290
    %v2300 = vxor.u32 %v2292, 2147483648
    %v2301 = vxor.u32 %v2293, 2147483648
    %v2302 = vxor.u32 %v2294, 2147483648
    %v2303 = vxor.u32 %v2296, 2147483648
    %v2304 = vxor.u32 %v2297, 2147483648
    %v2305 = vxor.u32 %v2298, 2147483648
    %v2306 = vmul.f32 %v2300, 1.442695
    %v2307 = vpow.pop %v2306
    %v2308 = vmul.f32 %v2301, 1.442695
    %v2309 = vpow.pop %v2308
    %v2310 = vmul.f32 %v2302, 1.442695
    %v2311 = vpow.pop %v2310
    %v2312 = vmul.f32 %v2303, 1.442695
    %v2313 = vpow.pop %v2312
    %v2314 = vmul.f32 %v2304, 1.442695
    %v2315 = vpow.pop %v2314
    %v2316 = vmul.f32 %v2305, 1.442695
    %v2317 = vpow.pop %v2316
    %v2318 = vadd.f32 %v2307, 1.0
    %v2319 = vadd.f32 %v2309, 1.0
    %v2320 = vadd.f32 %v2311, 1.0
    %v2321 = vadd.f32 %v2313, 1.0
    %v2322 = vadd.f32 %v2315, 1.0
    %v2323 = vadd.f32 %v2317, 1.0
    %v2324 = vrcp.pop %v2318
    %v2325 = vmul.f32 1.0, %v2324
    %v2326 = vrcp.pop %v2319
    %v2327 = vmul.f32 1.0, %v2326
    %v2328 = vrcp.pop %v2320
    %v2329 = vmul.f32 1.0, %v2328
    %v2330 = vrcp.pop %v2321
    %v2331 = vmul.f32 1.0, %v2330
    %v2332 = vrcp.pop %v2322
    %v2333 = vmul.f32 1.0, %v2332
    %v2334 = vrcp.pop %v2323
    %v2335 = vmul.f32 1.0, %v2334
    %v2336 = vtanh.pop %v2295
    %v2337 = vtanh.pop %v2299
    %v2338 = vmul.f32 %v2327, %v1961
    %v2339 = vmul.f32 %v2333, %v1962
    %v2340 = vmul.f32 %v2325, %v2336
    %v2341 = vmul.f32 %v2331, %v2337
    %v2342 = vadd.f32 %v2338, %v2340
    %v2343 = vadd.f32 %v2339, %v2341
    %v2344 = vtanh.pop %v2342
    %v2345 = vtanh.pop %v2343
    %v2346 = vmul.f32 %v2329, %v2344
    %v2347 = vmul.f32 %v2335, %v2345
    %v2348 = vpack.c.bf16 %v2347, %v2346
    %v2349 = vpack.c.bf16 %v2196, %v2195
    %2350 = vmatprep.subr.bf16.mxu0 %v609
    %2351 = vmatpush1.bf16.msra.mxu0 %v608
    %2352 = vmatprep.subr.bf16.mxu0 %v605
    %2353 = vmatpush1.bf16.msra.mxu0 %v604
    %2354 = vmatprep.subr.bf16.mxu0 %v601
    %2355 = vmatpush1.bf16.msra.mxu0 %v600
    %2356 = vmatprep.subr.bf16.mxu0 %v597
    %2357 = vmatpush1.bf16.msra.mxu0 %v596
    %2358 = vmatprep.subr.bf16.mxu0 %v593
    %2359 = vmatpush1.bf16.msra.mxu0 %v592
    %2360 = vmatprep.subr.bf16.mxu0 %v589
    %2361 = vmatpush1.bf16.msra.mxu0 %v588
    %2362 = vmatprep.subr.bf16.mxu0 %v585
    %2363 = vmatpush1.bf16.msra.mxu0 %v584
    %2364 = vmatprep.subr.bf16.mxu0 %v581
    %2365 = vmatpush1.bf16.msra.mxu0 %v580
    %2366 = vmatprep.subr.bf16.mxu0 0
    %2367 = vmatpush2.bf16.msra.mxu0 0
    %2368 = vmatprep.subr.bf16.mxu0 0
    %2369 = vmatpush2.bf16.msra.mxu0 0
    %2370 = vmatprep.subr.bf16.mxu0 0
    %2371 = vmatpush2.bf16.msra.mxu0 0
    %2372 = vmatprep.subr.bf16.mxu0 0
    %2373 = vmatpush2.bf16.msra.mxu0 0
    %2374 = vmatprep.subr.bf16.mxu0 0
    %2375 = vmatpush2.bf16.msra.mxu0 0
    %2376 = vmatprep.subr.bf16.mxu0 0
    %2377 = vmatpush2.bf16.msra.mxu0 0
    %2378 = vmatprep.subr.bf16.mxu0 0
    %2379 = vmatpush2.bf16.msra.mxu0 0
    %2380 = vmatprep.subr.bf16.mxu0 0
    %2381 = vmatpush2.bf16.msra.mxu0 0
    %2382 = vmatprep.mubr.bf16.mxu0 0
    %2383 = vmatmul.mubr.bf16.gmra.mxu0 %v2349
    %v2384 = vpop.f32.mrf.mxu0
    %v2385 = vadd.f32 0.0, %v2384
    %v2386 = vpop.f32.mrf.mxu0
    %v2387 = vadd.f32 0.0, %v2386
    %v2388 = vpop.f32.mrf.mxu0
    %v2389 = vadd.f32 0.0, %v2388
    %v2390 = vpop.f32.mrf.mxu0
    %v2391 = vadd.f32 0.0, %v2390
    %2392 = vdwg.mxu0
    %2393 = vmatprep.subr.bf16.mxu0 %v611
    %2394 = vmatpush1.bf16.msra.mxu0 %v610
    %2395 = vmatprep.subr.bf16.mxu0 %v607
    %2396 = vmatpush1.bf16.msra.mxu0 %v606
    %2397 = vmatprep.subr.bf16.mxu0 %v603
    %2398 = vmatpush1.bf16.msra.mxu0 %v602
    %2399 = vmatprep.subr.bf16.mxu0 %v599
    %2400 = vmatpush1.bf16.msra.mxu0 %v598
    %2401 = vmatprep.subr.bf16.mxu0 %v595
    %2402 = vmatpush1.bf16.msra.mxu0 %v594
    %2403 = vmatprep.subr.bf16.mxu0 %v591
    %2404 = vmatpush1.bf16.msra.mxu0 %v590
    %2405 = vmatprep.subr.bf16.mxu0 %v587
    %2406 = vmatpush1.bf16.msra.mxu0 %v586
    %2407 = vmatprep.subr.bf16.mxu0 %v583
    %2408 = vmatpush1.bf16.msra.mxu0 %v582
    %2409 = vmatprep.subr.bf16.mxu0 0
    %2410 = vmatpush2.bf16.msra.mxu0 0
    %2411 = vmatprep.subr.bf16.mxu0 0
    %2412 = vmatpush2.bf16.msra.mxu0 0
    %2413 = vmatprep.subr.bf16.mxu0 0
    %2414 = vmatpush2.bf16.msra.mxu0 0
    %2415 = vmatprep.subr.bf16.mxu0 0
    %2416 = vmatpush2.bf16.msra.mxu0 0
    %2417 = vmatprep.subr.bf16.mxu0 0
    %2418 = vmatpush2.bf16.msra.mxu0 0
    %2419 = vmatprep.subr.bf16.mxu0 0
    %2420 = vmatpush2.bf16.msra.mxu0 0
    %2421 = vmatprep.subr.bf16.mxu0 0
    %2422 = vmatpush2.bf16.msra.mxu0 0
    %2423 = vmatprep.subr.bf16.mxu0 0
    %2424 = vmatpush2.bf16.msra.mxu0 0
    %2425 = vmatprep.mubr.bf16.mxu0 0
    %2426 = vmatmul.mubr.bf16.gmra.mxu0 %v2349
    %v2427 = vpop.f32.mrf.mxu0
    %v2428 = vadd.f32 0.0, %v2427
    %v2429 = vpop.f32.mrf.mxu0
    %v2430 = vadd.f32 0.0, %v2429
    %v2431 = vpop.f32.mrf.mxu0
    %v2432 = vadd.f32 0.0, %v2431
    %v2433 = vpop.f32.mrf.mxu0
    %v2434 = vadd.f32 0.0, %v2433
    %2435 = vdwg.mxu0
    %2436 = vmatprep.subr.bf16.mxu0 %v855
    %2437 = vmatpush1.bf16.msra.mxu0 %v854
    %2438 = vmatprep.subr.bf16.mxu0 %v851
    %2439 = vmatpush1.bf16.msra.mxu0 %v850
    %2440 = vmatprep.subr.bf16.mxu0 %v847
    %2441 = vmatpush1.bf16.msra.mxu0 %v846
    %2442 = vmatprep.subr.bf16.mxu0 %v843
    %2443 = vmatpush1.bf16.msra.mxu0 %v842
    %2444 = vmatprep.subr.bf16.mxu0 %v839
    %2445 = vmatpush1.bf16.msra.mxu0 %v838
    %2446 = vmatprep.subr.bf16.mxu0 %v835
    %2447 = vmatpush1.bf16.msra.mxu0 %v834
    %2448 = vmatprep.subr.bf16.mxu0 %v831
    %2449 = vmatpush1.bf16.msra.mxu0 %v830
    %2450 = vmatprep.subr.bf16.mxu0 %v827
    %2451 = vmatpush1.bf16.msra.mxu0 %v826
    %2452 = vmatprep.subr.bf16.mxu0 0
    %2453 = vmatpush2.bf16.msra.mxu0 0
    %2454 = vmatprep.subr.bf16.mxu0 0
    %2455 = vmatpush2.bf16.msra.mxu0 0
    %2456 = vmatprep.subr.bf16.mxu0 0
    %2457 = vmatpush2.bf16.msra.mxu0 0
    %2458 = vmatprep.subr.bf16.mxu0 0
    %2459 = vmatpush2.bf16.msra.mxu0 0
    %2460 = vmatprep.subr.bf16.mxu0 0
    %2461 = vmatpush2.bf16.msra.mxu0 0
    %2462 = vmatprep.subr.bf16.mxu0 0
    %2463 = vmatpush2.bf16.msra.mxu0 0
    %2464 = vmatprep.subr.bf16.mxu0 0
    %2465 = vmatpush2.bf16.msra.mxu0 0
    %2466 = vmatprep.subr.bf16.mxu0 0
    %2467 = vmatpush2.bf16.msra.mxu0 0
    %2468 = vmatprep.mubr.bf16.mxu0 0
    %2469 = vmatmul.mubr.bf16.gmra.mxu0 %v2348
    %v2470 = vpop.f32.mrf.mxu0
    %v2471 = vadd.f32 %v2385, %v2470
    %v2472 = vpop.f32.mrf.mxu0
    %v2473 = vadd.f32 %v2387, %v2472
    %v2474 = vpop.f32.mrf.mxu0
    %v2475 = vadd.f32 %v2389, %v2474
    %v2476 = vpop.f32.mrf.mxu0
    %v2477 = vadd.f32 %v2391, %v2476
    %2478 = vdwg.mxu0
    %2479 = vmatprep.subr.bf16.mxu0 %v857
    %2480 = vmatpush1.bf16.msra.mxu0 %v856
    %2481 = vmatprep.subr.bf16.mxu0 %v853
    %2482 = vmatpush1.bf16.msra.mxu0 %v852
    %2483 = vmatprep.subr.bf16.mxu0 %v849
    %2484 = vmatpush1.bf16.msra.mxu0 %v848
    %2485 = vmatprep.subr.bf16.mxu0 %v845
    %2486 = vmatpush1.bf16.msra.mxu0 %v844
    %2487 = vmatprep.subr.bf16.mxu0 %v841
    %2488 = vmatpush1.bf16.msra.mxu0 %v840
    %2489 = vmatprep.subr.bf16.mxu0 %v837
    %2490 = vmatpush1.bf16.msra.mxu0 %v836
    %2491 = vmatprep.subr.bf16.mxu0 %v833
    %2492 = vmatpush1.bf16.msra.mxu0 %v832
    %2493 = vmatprep.subr.bf16.mxu0 %v829
    %2494 = vmatpush1.bf16.msra.mxu0 %v828
    %2495 = vmatprep.subr.bf16.mxu0 0
    %2496 = vmatpush2.bf16.msra.mxu0 0
    %2497 = vmatprep.subr.bf16.mxu0 0
    %2498 = vmatpush2.bf16.msra.mxu0 0
    %2499 = vmatprep.subr.bf16.mxu0 0
    %2500 = vmatpush2.bf16.msra.mxu0 0
    %2501 = vmatprep.subr.bf16.mxu0 0
    %2502 = vmatpush2.bf16.msra.mxu0 0
    %2503 = vmatprep.subr.bf16.mxu0 0
    %2504 = vmatpush2.bf16.msra.mxu0 0
    %2505 = vmatprep.subr.bf16.mxu0 0
    %2506 = vmatpush2.bf16.msra.mxu0 0
    %2507 = vmatprep.subr.bf16.mxu0 0
    %2508 = vmatpush2.bf16.msra.mxu0 0
    %2509 = vmatprep.subr.bf16.mxu0 0
    %2510 = vmatpush2.bf16.msra.mxu0 0
    %2511 = vmatprep.mubr.bf16.mxu0 0
    %2512 = vmatmul.mubr.bf16.gmra.mxu0 %v2348
    %v2513 = vpop.f32.mrf.mxu0
    %v2514 = vadd.f32 %v2428, %v2513
    %v2515 = vpop.f32.mrf.mxu0
    %v2516 = vadd.f32 %v2430, %v2515
    %v2517 = vpop.f32.mrf.mxu0
    %v2518 = vadd.f32 %v2432, %v2517
    %v2519 = vpop.f32.mrf.mxu0
    %v2520 = vadd.f32 %v2434, %v2519
    %2521 = vdwg.mxu0
    %v2522 = vadd.f32 %v2471, %v981
    %v2523 = vadd.f32 %v2473, %v985
    %v2524 = vadd.f32 %v2514, %v989
    %v2525 = vadd.f32 %v2516, %v993
    %v2526 = vadd.f32 %v2475, %v981
    %v2527 = vadd.f32 %v2477, %v985
    %v2528 = vadd.f32 %v2518, %v989
    %v2529 = vadd.f32 %v2520, %v993
    %v2530 = vxor.u32 %v2522, 2147483648
    %v2531 = vxor.u32 %v2523, 2147483648
    %v2532 = vxor.u32 %v2524, 2147483648
    %v2533 = vxor.u32 %v2526, 2147483648
    %v2534 = vxor.u32 %v2527, 2147483648
    %v2535 = vxor.u32 %v2528, 2147483648
    %v2536 = vmul.f32 %v2530, 1.442695
    %v2537 = vpow.pop %v2536
    %v2538 = vmul.f32 %v2531, 1.442695
    %v2539 = vpow.pop %v2538
    %v2540 = vmul.f32 %v2532, 1.442695
    %v2541 = vpow.pop %v2540
    %v2542 = vmul.f32 %v2533, 1.442695
    %v2543 = vpow.pop %v2542
    %v2544 = vmul.f32 %v2534, 1.442695
    %v2545 = vpow.pop %v2544
    %v2546 = vmul.f32 %v2535, 1.442695
    %v2547 = vpow.pop %v2546
    %v2548 = vadd.f32 %v2537, 1.0
    %v2549 = vadd.f32 %v2539, 1.0
    %v2550 = vadd.f32 %v2541, 1.0
    %v2551 = vadd.f32 %v2543, 1.0
    %v2552 = vadd.f32 %v2545, 1.0
    %v2553 = vadd.f32 %v2547, 1.0
    %v2554 = vrcp.pop %v2548
    %v2555 = vmul.f32 1.0, %v2554
    %v2556 = vrcp.pop %v2549
    %v2557 = vmul.f32 1.0, %v2556
    %v2558 = vrcp.pop %v2550
    %v2559 = vmul.f32 1.0, %v2558
    %v2560 = vrcp.pop %v2551
    %v2561 = vmul.f32 1.0, %v2560
    %v2562 = vrcp.pop %v2552
    %v2563 = vmul.f32 1.0, %v2562
    %v2564 = vrcp.pop %v2553
    %v2565 = vmul.f32 1.0, %v2564
    %v2566 = vtanh.pop %v2525
    %v2567 = vtanh.pop %v2529
    %v2568 = vmul.f32 %v2557, %v2191
    %v2569 = vmul.f32 %v2563, %v2192
    %v2570 = vmul.f32 %v2555, %v2566
    %v2571 = vmul.f32 %v2561, %v2567
    %v2572 = vadd.f32 %v2568, %v2570
    %v2573 = vadd.f32 %v2569, %v2571
    %v2574 = vtanh.pop %v2572
    %v2575 = vtanh.pop %v2573
    %v2576 = vmul.f32 %v2559, %v2574
    %v2577 = vmul.f32 %v2565, %v2575
    %s2578 = scalar_lea.vmem [#allocation2], 320
    %v2579 = vld [vmem:[%s2578] sm:$0xff]
    %v2580 = vld [vmem:[%s2578 + $0x8] sm:$0xff]
    %v2581 = vld [vmem:[%s2578 + $0x10] sm:$0xff]
    %v2582 = vld [vmem:[%s2578 + $0x18] sm:$0xff]
    %v2583 = vld [vmem:[%s2578 + $0x20] sm:$0xff]
    %v2584 = vld [vmem:[%s2578 + $0x28] sm:$0xff]
    %v2585 = vld [vmem:[%s2578 + $0x30] sm:$0xff]
    %v2586 = vld [vmem:[%s2578 + $0x38] sm:$0xff]
    %2587 = vmatprep.subr.bf16.mxu0 %v242
    %2588 = vmatpush1.bf16.msra.mxu0 %v241
    %2589 = vmatprep.subr.bf16.mxu0 %v238
    %2590 = vmatpush1.bf16.msra.mxu0 %v237
    %2591 = vmatprep.subr.bf16.mxu0 %v234
    %2592 = vmatpush1.bf16.msra.mxu0 %v233
    %2593 = vmatprep.subr.bf16.mxu0 %v230
    %2594 = vmatpush1.bf16.msra.mxu0 %v229
    %2595 = vmatprep.subr.bf16.mxu0 %v226
    %2596 = vmatpush1.bf16.msra.mxu0 %v225
    %2597 = vmatprep.subr.bf16.mxu0 %v222
    %2598 = vmatpush1.bf16.msra.mxu0 %v221
    %2599 = vmatprep.subr.bf16.mxu0 %v218
    %2600 = vmatpush1.bf16.msra.mxu0 %v217
    %2601 = vmatprep.subr.bf16.mxu0 %v214
    %2602 = vmatpush1.bf16.msra.mxu0 %v213
    %2603 = vmatprep.subr.bf16.mxu0 0
    %2604 = vmatpush2.bf16.msra.mxu0 0
    %2605 = vmatprep.subr.bf16.mxu0 0
    %2606 = vmatpush2.bf16.msra.mxu0 0
    %2607 = vmatprep.subr.bf16.mxu0 0
    %2608 = vmatpush2.bf16.msra.mxu0 0
    %2609 = vmatprep.subr.bf16.mxu0 0
    %2610 = vmatpush2.bf16.msra.mxu0 0
    %2611 = vmatprep.subr.bf16.mxu0 0
    %2612 = vmatpush2.bf16.msra.mxu0 0
    %2613 = vmatprep.subr.bf16.mxu0 0
    %2614 = vmatpush2.bf16.msra.mxu0 0
    %2615 = vmatprep.subr.bf16.mxu0 0
    %2616 = vmatpush2.bf16.msra.mxu0 0
    %2617 = vmatprep.subr.bf16.mxu0 0
    %2618 = vmatpush2.bf16.msra.mxu0 0
    %2619 = vmatprep.mubr.bf16.mxu0 0
    %2620 = vmatmul.mubr.bf16.gmra.mxu0 %v2348
    %v2621 = vpop.f32.mrf.mxu0
    %v2622 = vadd.f32 0.0, %v2621
    %v2623 = vpop.f32.mrf.mxu0
    %v2624 = vadd.f32 0.0, %v2623
    %v2625 = vpop.f32.mrf.mxu0
    %v2626 = vadd.f32 0.0, %v2625
    %v2627 = vpop.f32.mrf.mxu0
    %v2628 = vadd.f32 0.0, %v2627
    %2629 = vdwg.mxu0
    %2630 = vmatprep.subr.bf16.mxu0 %v244
    %2631 = vmatpush1.bf16.msra.mxu0 %v243
    %2632 = vmatprep.subr.bf16.mxu0 %v240
    %2633 = vmatpush1.bf16.msra.mxu0 %v239
    %2634 = vmatprep.subr.bf16.mxu0 %v236
    %2635 = vmatpush1.bf16.msra.mxu0 %v235
    %2636 = vmatprep.subr.bf16.mxu0 %v232
    %2637 = vmatpush1.bf16.msra.mxu0 %v231
    %2638 = vmatprep.subr.bf16.mxu0 %v228
    %2639 = vmatpush1.bf16.msra.mxu0 %v227
    %2640 = vmatprep.subr.bf16.mxu0 %v224
    %2641 = vmatpush1.bf16.msra.mxu0 %v223
    %2642 = vmatprep.subr.bf16.mxu0 %v220
    %2643 = vmatpush1.bf16.msra.mxu0 %v219
    %2644 = vmatprep.subr.bf16.mxu0 %v216
    %2645 = vmatpush1.bf16.msra.mxu0 %v215
    %2646 = vmatprep.subr.bf16.mxu0 0
    %2647 = vmatpush2.bf16.msra.mxu0 0
    %2648 = vmatprep.subr.bf16.mxu0 0
    %2649 = vmatpush2.bf16.msra.mxu0 0
    %2650 = vmatprep.subr.bf16.mxu0 0
    %2651 = vmatpush2.bf16.msra.mxu0 0
    %2652 = vmatprep.subr.bf16.mxu0 0
    %2653 = vmatpush2.bf16.msra.mxu0 0
    %2654 = vmatprep.subr.bf16.mxu0 0
    %2655 = vmatpush2.bf16.msra.mxu0 0
    %2656 = vmatprep.subr.bf16.mxu0 0
    %2657 = vmatpush2.bf16.msra.mxu0 0
    %2658 = vmatprep.subr.bf16.mxu0 0
    %2659 = vmatpush2.bf16.msra.mxu0 0
    %2660 = vmatprep.subr.bf16.mxu0 0
    %2661 = vmatpush2.bf16.msra.mxu0 0
    %2662 = vmatprep.mubr.bf16.mxu0 0
    %2663 = vmatmul.mubr.bf16.gmra.mxu0 %v2348
    %v2664 = vpop.f32.mrf.mxu0
    %v2665 = vadd.f32 0.0, %v2664
    %v2666 = vpop.f32.mrf.mxu0
    %v2667 = vadd.f32 0.0, %v2666
    %v2668 = vpop.f32.mrf.mxu0
    %v2669 = vadd.f32 0.0, %v2668
    %v2670 = vpop.f32.mrf.mxu0
    %v2671 = vadd.f32 0.0, %v2670
    %2672 = vdwg.mxu0
    %v2673 = vadd.f32 %v2579, %v2622
    %v2674 = vadd.f32 %v2580, %v2624
    %v2675 = vadd.f32 %v2581, %v2665
    %v2676 = vadd.f32 %v2582, %v2667
    %v2677 = vadd.f32 %v2583, %v2626
    %v2678 = vadd.f32 %v2584, %v2628
    %v2679 = vadd.f32 %v2585, %v2669
    %v2680 = vadd.f32 %v2586, %v2671
    %v2681 = vxor.u32 %v2673, 2147483648
    %v2682 = vxor.u32 %v2674, 2147483648
    %v2683 = vxor.u32 %v2675, 2147483648
    %v2684 = vxor.u32 %v2677, 2147483648
    %v2685 = vxor.u32 %v2678, 2147483648
    %v2686 = vxor.u32 %v2679, 2147483648
    %v2687 = vmul.f32 %v2681, 1.442695
    %v2688 = vpow.pop %v2687
    %v2689 = vmul.f32 %v2682, 1.442695
    %v2690 = vpow.pop %v2689
    %v2691 = vmul.f32 %v2683, 1.442695
    %v2692 = vpow.pop %v2691
    %v2693 = vmul.f32 %v2684, 1.442695
    %v2694 = vpow.pop %v2693
    %v2695 = vmul.f32 %v2685, 1.442695
    %v2696 = vpow.pop %v2695
    %v2697 = vmul.f32 %v2686, 1.442695
    %v2698 = vpow.pop %v2697
    %v2699 = vadd.f32 %v2688, 1.0
    %v2700 = vadd.f32 %v2690, 1.0
    %v2701 = vadd.f32 %v2692, 1.0
    %v2702 = vadd.f32 %v2694, 1.0
    %v2703 = vadd.f32 %v2696, 1.0
    %v2704 = vadd.f32 %v2698, 1.0
    %v2705 = vrcp.pop %v2699
    %v2706 = vmul.f32 1.0, %v2705
    %v2707 = vrcp.pop %v2700
    %v2708 = vmul.f32 1.0, %v2707
    %v2709 = vrcp.pop %v2701
    %v2710 = vmul.f32 1.0, %v2709
    %v2711 = vrcp.pop %v2702
    %v2712 = vmul.f32 1.0, %v2711
    %v2713 = vrcp.pop %v2703
    %v2714 = vmul.f32 1.0, %v2713
    %v2715 = vrcp.pop %v2704
    %v2716 = vmul.f32 1.0, %v2715
    %v2717 = vtanh.pop %v2676
    %v2718 = vtanh.pop %v2680
    %v2719 = vmul.f32 %v2708, %v2342
    %v2720 = vmul.f32 %v2714, %v2343
    %v2721 = vmul.f32 %v2706, %v2717
    %v2722 = vmul.f32 %v2712, %v2718
    %v2723 = vadd.f32 %v2719, %v2721
    %v2724 = vadd.f32 %v2720, %v2722
    %v2725 = vtanh.pop %v2723
    %v2726 = vtanh.pop %v2724
    %v2727 = vmul.f32 %v2710, %v2725
    %v2728 = vmul.f32 %v2716, %v2726
    %v2729 = vpack.c.bf16 %v2728, %v2727
    %v2730 = vpack.c.bf16 %v2577, %v2576
    %2731 = vmatprep.subr.bf16.mxu0 %v609
    %2732 = vmatpush1.bf16.msra.mxu0 %v608
    %2733 = vmatprep.subr.bf16.mxu0 %v605
    %2734 = vmatpush1.bf16.msra.mxu0 %v604
    %2735 = vmatprep.subr.bf16.mxu0 %v601
    %2736 = vmatpush1.bf16.msra.mxu0 %v600
    %2737 = vmatprep.subr.bf16.mxu0 %v597
    %2738 = vmatpush1.bf16.msra.mxu0 %v596
    %2739 = vmatprep.subr.bf16.mxu0 %v593
    %2740 = vmatpush1.bf16.msra.mxu0 %v592
    %2741 = vmatprep.subr.bf16.mxu0 %v589
    %2742 = vmatpush1.bf16.msra.mxu0 %v588
    %2743 = vmatprep.subr.bf16.mxu0 %v585
    %2744 = vmatpush1.bf16.msra.mxu0 %v584
    %2745 = vmatprep.subr.bf16.mxu0 %v581
    %2746 = vmatpush1.bf16.msra.mxu0 %v580
    %2747 = vmatprep.subr.bf16.mxu0 0
    %2748 = vmatpush2.bf16.msra.mxu0 0
    %2749 = vmatprep.subr.bf16.mxu0 0
    %2750 = vmatpush2.bf16.msra.mxu0 0
    %2751 = vmatprep.subr.bf16.mxu0 0
    %2752 = vmatpush2.bf16.msra.mxu0 0
    %2753 = vmatprep.subr.bf16.mxu0 0
    %2754 = vmatpush2.bf16.msra.mxu0 0
    %2755 = vmatprep.subr.bf16.mxu0 0
    %2756 = vmatpush2.bf16.msra.mxu0 0
    %2757 = vmatprep.subr.bf16.mxu0 0
    %2758 = vmatpush2.bf16.msra.mxu0 0
    %2759 = vmatprep.subr.bf16.mxu0 0
    %2760 = vmatpush2.bf16.msra.mxu0 0
    %2761 = vmatprep.subr.bf16.mxu0 0
    %2762 = vmatpush2.bf16.msra.mxu0 0
    %2763 = vmatprep.mubr.bf16.mxu0 0
    %2764 = vmatmul.mubr.bf16.gmra.mxu0 %v2730
    %v2765 = vpop.f32.mrf.mxu0
    %v2766 = vadd.f32 0.0, %v2765
    %v2767 = vpop.f32.mrf.mxu0
    %v2768 = vadd.f32 0.0, %v2767
    %v2769 = vpop.f32.mrf.mxu0
    %v2770 = vadd.f32 0.0, %v2769
    %v2771 = vpop.f32.mrf.mxu0
    %v2772 = vadd.f32 0.0, %v2771
    %2773 = vdwg.mxu0
    %2774 = vmatprep.subr.bf16.mxu0 %v611
    %2775 = vmatpush1.bf16.msra.mxu0 %v610
    %2776 = vmatprep.subr.bf16.mxu0 %v607
    %2777 = vmatpush1.bf16.msra.mxu0 %v606
    %2778 = vmatprep.subr.bf16.mxu0 %v603
    %2779 = vmatpush1.bf16.msra.mxu0 %v602
    %2780 = vmatprep.subr.bf16.mxu0 %v599
    %2781 = vmatpush1.bf16.msra.mxu0 %v598
    %2782 = vmatprep.subr.bf16.mxu0 %v595
    %2783 = vmatpush1.bf16.msra.mxu0 %v594
    %2784 = vmatprep.subr.bf16.mxu0 %v591
    %2785 = vmatpush1.bf16.msra.mxu0 %v590
    %2786 = vmatprep.subr.bf16.mxu0 %v587
    %2787 = vmatpush1.bf16.msra.mxu0 %v586
    %2788 = vmatprep.subr.bf16.mxu0 %v583
    %2789 = vmatpush1.bf16.msra.mxu0 %v582
    %2790 = vmatprep.subr.bf16.mxu0 0
    %2791 = vmatpush2.bf16.msra.mxu0 0
    %2792 = vmatprep.subr.bf16.mxu0 0
    %2793 = vmatpush2.bf16.msra.mxu0 0
    %2794 = vmatprep.subr.bf16.mxu0 0
    %2795 = vmatpush2.bf16.msra.mxu0 0
    %2796 = vmatprep.subr.bf16.mxu0 0
    %2797 = vmatpush2.bf16.msra.mxu0 0
    %2798 = vmatprep.subr.bf16.mxu0 0
    %2799 = vmatpush2.bf16.msra.mxu0 0
    %2800 = vmatprep.subr.bf16.mxu0 0
    %2801 = vmatpush2.bf16.msra.mxu0 0
    %2802 = vmatprep.subr.bf16.mxu0 0
    %2803 = vmatpush2.bf16.msra.mxu0 0
    %2804 = vmatprep.subr.bf16.mxu0 0
    %2805 = vmatpush2.bf16.msra.mxu0 0
    %2806 = vmatprep.mubr.bf16.mxu0 0
    %2807 = vmatmul.mubr.bf16.gmra.mxu0 %v2730
    %v2808 = vpop.f32.mrf.mxu0
    %v2809 = vadd.f32 0.0, %v2808
    %v2810 = vpop.f32.mrf.mxu0
    %v2811 = vadd.f32 0.0, %v2810
    %v2812 = vpop.f32.mrf.mxu0
    %v2813 = vadd.f32 0.0, %v2812
    %v2814 = vpop.f32.mrf.mxu0
    %v2815 = vadd.f32 0.0, %v2814
    %2816 = vdwg.mxu0
    %2817 = vmatprep.subr.bf16.mxu0 %v855
    %2818 = vmatpush1.bf16.msra.mxu0 %v854
    %2819 = vmatprep.subr.bf16.mxu0 %v851
    %2820 = vmatpush1.bf16.msra.mxu0 %v850
    %2821 = vmatprep.subr.bf16.mxu0 %v847
    %2822 = vmatpush1.bf16.msra.mxu0 %v846
    %2823 = vmatprep.subr.bf16.mxu0 %v843
    %2824 = vmatpush1.bf16.msra.mxu0 %v842
    %2825 = vmatprep.subr.bf16.mxu0 %v839
    %2826 = vmatpush1.bf16.msra.mxu0 %v838
    %2827 = vmatprep.subr.bf16.mxu0 %v835
    %2828 = vmatpush1.bf16.msra.mxu0 %v834
    %2829 = vmatprep.subr.bf16.mxu0 %v831
    %2830 = vmatpush1.bf16.msra.mxu0 %v830
    %2831 = vmatprep.subr.bf16.mxu0 %v827
    %2832 = vmatpush1.bf16.msra.mxu0 %v826
    %2833 = vmatprep.subr.bf16.mxu0 0
    %2834 = vmatpush2.bf16.msra.mxu0 0
    %2835 = vmatprep.subr.bf16.mxu0 0
    %2836 = vmatpush2.bf16.msra.mxu0 0
    %2837 = vmatprep.subr.bf16.mxu0 0
    %2838 = vmatpush2.bf16.msra.mxu0 0
    %2839 = vmatprep.subr.bf16.mxu0 0
    %2840 = vmatpush2.bf16.msra.mxu0 0
    %2841 = vmatprep.subr.bf16.mxu0 0
    %2842 = vmatpush2.bf16.msra.mxu0 0
    %2843 = vmatprep.subr.bf16.mxu0 0
    %2844 = vmatpush2.bf16.msra.mxu0 0
    %2845 = vmatprep.subr.bf16.mxu0 0
    %2846 = vmatpush2.bf16.msra.mxu0 0
    %2847 = vmatprep.subr.bf16.mxu0 0
    %2848 = vmatpush2.bf16.msra.mxu0 0
    %2849 = vmatprep.mubr.bf16.mxu0 0
    %2850 = vmatmul.mubr.bf16.gmra.mxu0 %v2729
    %v2851 = vpop.f32.mrf.mxu0
    %v2852 = vadd.f32 %v2766, %v2851
    %v2853 = vpop.f32.mrf.mxu0
    %v2854 = vadd.f32 %v2768, %v2853
    %v2855 = vpop.f32.mrf.mxu0
    %v2856 = vadd.f32 %v2770, %v2855
    %v2857 = vpop.f32.mrf.mxu0
    %v2858 = vadd.f32 %v2772, %v2857
    %2859 = vdwg.mxu0
    %2860 = vmatprep.subr.bf16.mxu0 %v857
    %2861 = vmatpush1.bf16.msra.mxu0 %v856
    %2862 = vmatprep.subr.bf16.mxu0 %v853
    %2863 = vmatpush1.bf16.msra.mxu0 %v852
    %2864 = vmatprep.subr.bf16.mxu0 %v849
    %2865 = vmatpush1.bf16.msra.mxu0 %v848
    %2866 = vmatprep.subr.bf16.mxu0 %v845
    %2867 = vmatpush1.bf16.msra.mxu0 %v844
    %2868 = vmatprep.subr.bf16.mxu0 %v841
    %2869 = vmatpush1.bf16.msra.mxu0 %v840
    %2870 = vmatprep.subr.bf16.mxu0 %v837
    %2871 = vmatpush1.bf16.msra.mxu0 %v836
    %2872 = vmatprep.subr.bf16.mxu0 %v833
    %2873 = vmatpush1.bf16.msra.mxu0 %v832
    %2874 = vmatprep.subr.bf16.mxu0 %v829
    %2875 = vmatpush1.bf16.msra.mxu0 %v828
    %2876 = vmatprep.subr.bf16.mxu0 0
    %2877 = vmatpush2.bf16.msra.mxu0 0
    %2878 = vmatprep.subr.bf16.mxu0 0
    %2879 = vmatpush2.bf16.msra.mxu0 0
    %2880 = vmatprep.subr.bf16.mxu0 0
    %2881 = vmatpush2.bf16.msra.mxu0 0
    %2882 = vmatprep.subr.bf16.mxu0 0
    %2883 = vmatpush2.bf16.msra.mxu0 0
    %2884 = vmatprep.subr.bf16.mxu0 0
    %2885 = vmatpush2.bf16.msra.mxu0 0
    %2886 = vmatprep.subr.bf16.mxu0 0
    %2887 = vmatpush2.bf16.msra.mxu0 0
    %2888 = vmatprep.subr.bf16.mxu0 0
    %2889 = vmatpush2.bf16.msra.mxu0 0
    %2890 = vmatprep.subr.bf16.mxu0 0
    %2891 = vmatpush2.bf16.msra.mxu0 0
    %2892 = vmatprep.mubr.bf16.mxu0 0
    %2893 = vmatmul.mubr.bf16.gmra.mxu0 %v2729
    %v2894 = vpop.f32.mrf.mxu0
    %v2895 = vadd.f32 %v2809, %v2894
    %v2896 = vpop.f32.mrf.mxu0
    %v2897 = vadd.f32 %v2811, %v2896
    %v2898 = vpop.f32.mrf.mxu0
    %v2899 = vadd.f32 %v2813, %v2898
    %v2900 = vpop.f32.mrf.mxu0
    %v2901 = vadd.f32 %v2815, %v2900
    %2902 = vdwg.mxu0
    %v2903 = vadd.f32 %v2852, %v981
    %v2904 = vadd.f32 %v2854, %v985
    %v2905 = vadd.f32 %v2895, %v989
    %v2906 = vadd.f32 %v2897, %v993
    %v2907 = vadd.f32 %v2856, %v981
    %v2908 = vadd.f32 %v2858, %v985
    %v2909 = vadd.f32 %v2899, %v989
    %v2910 = vadd.f32 %v2901, %v993
    %v2911 = vxor.u32 %v2903, 2147483648
    %v2912 = vxor.u32 %v2904, 2147483648
    %v2913 = vxor.u32 %v2905, 2147483648
    %v2914 = vxor.u32 %v2907, 2147483648
    %v2915 = vxor.u32 %v2908, 2147483648
    %v2916 = vxor.u32 %v2909, 2147483648
    %v2917 = vmul.f32 %v2911, 1.442695
    %v2918 = vpow.pop %v2917
    %v2919 = vmul.f32 %v2912, 1.442695
    %v2920 = vpow.pop %v2919
    %v2921 = vmul.f32 %v2913, 1.442695
    %v2922 = vpow.pop %v2921
    %v2923 = vmul.f32 %v2914, 1.442695
    %v2924 = vpow.pop %v2923
    %v2925 = vmul.f32 %v2915, 1.442695
    %v2926 = vpow.pop %v2925
    %v2927 = vmul.f32 %v2916, 1.442695
    %v2928 = vpow.pop %v2927
    %v2929 = vadd.f32 %v2918, 1.0
    %v2930 = vadd.f32 %v2920, 1.0
    %v2931 = vadd.f32 %v2922, 1.0
    %v2932 = vadd.f32 %v2924, 1.0
    %v2933 = vadd.f32 %v2926, 1.0
    %v2934 = vadd.f32 %v2928, 1.0
    %v2935 = vrcp.pop %v2929
    %v2936 = vmul.f32 1.0, %v2935
    %v2937 = vrcp.pop %v2930
    %v2938 = vmul.f32 1.0, %v2937
    %v2939 = vrcp.pop %v2931
    %v2940 = vmul.f32 1.0, %v2939
    %v2941 = vrcp.pop %v2932
    %v2942 = vmul.f32 1.0, %v2941
    %v2943 = vrcp.pop %v2933
    %v2944 = vmul.f32 1.0, %v2943
    %v2945 = vrcp.pop %v2934
    %v2946 = vmul.f32 1.0, %v2945
    %v2947 = vtanh.pop %v2906
    %v2948 = vtanh.pop %v2910
    %v2949 = vmul.f32 %v2938, %v2572
    %v2950 = vmul.f32 %v2944, %v2573
    %v2951 = vmul.f32 %v2936, %v2947
    %v2952 = vmul.f32 %v2942, %v2948
    %v2953 = vadd.f32 %v2949, %v2951
    %v2954 = vadd.f32 %v2950, %v2952
    %v2955 = vtanh.pop %v2953
    %v2956 = vtanh.pop %v2954
    %v2957 = vmul.f32 %v2940, %v2955
    %v2958 = vmul.f32 %v2946, %v2956
    %s2959 = scalar_lea.vmem [#allocation2], 384
    %v2960 = vld [vmem:[%s2959] sm:$0xff]
    %v2961 = vld [vmem:[%s2959 + $0x8] sm:$0xff]
    %v2962 = vld [vmem:[%s2959 + $0x10] sm:$0xff]
    %v2963 = vld [vmem:[%s2959 + $0x18] sm:$0xff]
    %v2964 = vld [vmem:[%s2959 + $0x20] sm:$0xff]
    %v2965 = vld [vmem:[%s2959 + $0x28] sm:$0xff]
    %v2966 = vld [vmem:[%s2959 + $0x30] sm:$0xff]
    %v2967 = vld [vmem:[%s2959 + $0x38] sm:$0xff]
    %2968 = vmatprep.subr.bf16.mxu0 %v242
    %2969 = vmatpush1.bf16.msra.mxu0 %v241
    %2970 = vmatprep.subr.bf16.mxu0 %v238
    %2971 = vmatpush1.bf16.msra.mxu0 %v237
    %2972 = vmatprep.subr.bf16.mxu0 %v234
    %2973 = vmatpush1.bf16.msra.mxu0 %v233
    %2974 = vmatprep.subr.bf16.mxu0 %v230
    %2975 = vmatpush1.bf16.msra.mxu0 %v229
    %2976 = vmatprep.subr.bf16.mxu0 %v226
    %2977 = vmatpush1.bf16.msra.mxu0 %v225
    %2978 = vmatprep.subr.bf16.mxu0 %v222
    %2979 = vmatpush1.bf16.msra.mxu0 %v221
    %2980 = vmatprep.subr.bf16.mxu0 %v218
    %2981 = vmatpush1.bf16.msra.mxu0 %v217
    %2982 = vmatprep.subr.bf16.mxu0 %v214
    %2983 = vmatpush1.bf16.msra.mxu0 %v213
    %2984 = vmatprep.subr.bf16.mxu0 0
    %2985 = vmatpush2.bf16.msra.mxu0 0
    %2986 = vmatprep.subr.bf16.mxu0 0
    %2987 = vmatpush2.bf16.msra.mxu0 0
    %2988 = vmatprep.subr.bf16.mxu0 0
    %2989 = vmatpush2.bf16.msra.mxu0 0
    %2990 = vmatprep.subr.bf16.mxu0 0
    %2991 = vmatpush2.bf16.msra.mxu0 0
    %2992 = vmatprep.subr.bf16.mxu0 0
    %2993 = vmatpush2.bf16.msra.mxu0 0
    %2994 = vmatprep.subr.bf16.mxu0 0
    %2995 = vmatpush2.bf16.msra.mxu0 0
    %2996 = vmatprep.subr.bf16.mxu0 0
    %2997 = vmatpush2.bf16.msra.mxu0 0
    %2998 = vmatprep.subr.bf16.mxu0 0
    %2999 = vmatpush2.bf16.msra.mxu0 0
    %3000 = vmatprep.mubr.bf16.mxu0 0
    %3001 = vmatmul.mubr.bf16.gmra.mxu0 %v2729
    %v3002 = vpop.f32.mrf.mxu0
    %v3003 = vadd.f32 0.0, %v3002
    %v3004 = vpop.f32.mrf.mxu0
    %v3005 = vadd.f32 0.0, %v3004
    %v3006 = vpop.f32.mrf.mxu0
    %v3007 = vadd.f32 0.0, %v3006
    %v3008 = vpop.f32.mrf.mxu0
    %v3009 = vadd.f32 0.0, %v3008
    %3010 = vdwg.mxu0
    %3011 = vmatprep.subr.bf16.mxu0 %v244
    %3012 = vmatpush1.bf16.msra.mxu0 %v243
    %3013 = vmatprep.subr.bf16.mxu0 %v240
    %3014 = vmatpush1.bf16.msra.mxu0 %v239
    %3015 = vmatprep.subr.bf16.mxu0 %v236
    %3016 = vmatpush1.bf16.msra.mxu0 %v235
    %3017 = vmatprep.subr.bf16.mxu0 %v232
    %3018 = vmatpush1.bf16.msra.mxu0 %v231
    %3019 = vmatprep.subr.bf16.mxu0 %v228
    %3020 = vmatpush1.bf16.msra.mxu0 %v227
    %3021 = vmatprep.subr.bf16.mxu0 %v224
    %3022 = vmatpush1.bf16.msra.mxu0 %v223
    %3023 = vmatprep.subr.bf16.mxu0 %v220
    %3024 = vmatpush1.bf16.msra.mxu0 %v219
    %3025 = vmatprep.subr.bf16.mxu0 %v216
    %3026 = vmatpush1.bf16.msra.mxu0 %v215
    %3027 = vmatprep.subr.bf16.mxu0 0
    %3028 = vmatpush2.bf16.msra.mxu0 0
    %3029 = vmatprep.subr.bf16.mxu0 0
    %3030 = vmatpush2.bf16.msra.mxu0 0
    %3031 = vmatprep.subr.bf16.mxu0 0
    %3032 = vmatpush2.bf16.msra.mxu0 0
    %3033 = vmatprep.subr.bf16.mxu0 0
    %3034 = vmatpush2.bf16.msra.mxu0 0
    %3035 = vmatprep.subr.bf16.mxu0 0
    %3036 = vmatpush2.bf16.msra.mxu0 0
    %3037 = vmatprep.subr.bf16.mxu0 0
    %3038 = vmatpush2.bf16.msra.mxu0 0
    %3039 = vmatprep.subr.bf16.mxu0 0
    %3040 = vmatpush2.bf16.msra.mxu0 0
    %3041 = vmatprep.subr.bf16.mxu0 0
    %3042 = vmatpush2.bf16.msra.mxu0 0
    %3043 = vmatprep.mubr.bf16.mxu0 0
    %3044 = vmatmul.mubr.bf16.gmra.mxu0 %v2729
    %v3045 = vpop.f32.mrf.mxu0
    %v3046 = vadd.f32 0.0, %v3045
    %v3047 = vpop.f32.mrf.mxu0
    %v3048 = vadd.f32 0.0, %v3047
    %v3049 = vpop.f32.mrf.mxu0
    %v3050 = vadd.f32 0.0, %v3049
    %v3051 = vpop.f32.mrf.mxu0
    %v3052 = vadd.f32 0.0, %v3051
    %3053 = vdwg.mxu0
    %v3054 = vadd.f32 %v2960, %v3003
    %v3055 = vadd.f32 %v2961, %v3005
    %v3056 = vadd.f32 %v2962, %v3046
    %v3057 = vadd.f32 %v2963, %v3048
    %v3058 = vadd.f32 %v2964, %v3007
    %v3059 = vadd.f32 %v2965, %v3009
    %v3060 = vadd.f32 %v2966, %v3050
    %v3061 = vadd.f32 %v2967, %v3052
    %v3062 = vxor.u32 %v3054, 2147483648
    %v3063 = vxor.u32 %v3055, 2147483648
    %v3064 = vxor.u32 %v3056, 2147483648
    %v3065 = vxor.u32 %v3058, 2147483648
    %v3066 = vxor.u32 %v3059, 2147483648
    %v3067 = vxor.u32 %v3060, 2147483648
    %v3068 = vmul.f32 %v3062, 1.442695
    %v3069 = vpow.pop %v3068
    %v3070 = vmul.f32 %v3063, 1.442695
    %v3071 = vpow.pop %v3070
    %v3072 = vmul.f32 %v3064, 1.442695
    %v3073 = vpow.pop %v3072
    %v3074 = vmul.f32 %v3065, 1.442695
    %v3075 = vpow.pop %v3074
    %v3076 = vmul.f32 %v3066, 1.442695
    %v3077 = vpow.pop %v3076
    %v3078 = vmul.f32 %v3067, 1.442695
    %v3079 = vpow.pop %v3078
    %v3080 = vadd.f32 %v3069, 1.0
    %v3081 = vadd.f32 %v3071, 1.0
    %v3082 = vadd.f32 %v3073, 1.0
    %v3083 = vadd.f32 %v3075, 1.0
    %v3084 = vadd.f32 %v3077, 1.0
    %v3085 = vadd.f32 %v3079, 1.0
    %v3086 = vrcp.pop %v3080
    %v3087 = vmul.f32 1.0, %v3086
    %v3088 = vrcp.pop %v3081
    %v3089 = vmul.f32 1.0, %v3088
    %v3090 = vrcp.pop %v3082
    %v3091 = vmul.f32 1.0, %v3090
    %v3092 = vrcp.pop %v3083
    %v3093 = vmul.f32 1.0, %v3092
    %v3094 = vrcp.pop %v3084
    %v3095 = vmul.f32 1.0, %v3094
    %v3096 = vrcp.pop %v3085
    %v3097 = vmul.f32 1.0, %v3096
    %v3098 = vtanh.pop %v3057
    %v3099 = vtanh.pop %v3061
    %v3100 = vmul.f32 %v3089, %v2723
    %v3101 = vmul.f32 %v3095, %v2724
    %v3102 = vmul.f32 %v3087, %v3098
    %v3103 = vmul.f32 %v3093, %v3099
    %v3104 = vadd.f32 %v3100, %v3102
    %v3105 = vadd.f32 %v3101, %v3103
    %v3106 = vtanh.pop %v3104
    %v3107 = vtanh.pop %v3105
    %v3108 = vmul.f32 %v3091, %v3106
    %v3109 = vmul.f32 %v3097, %v3107
    %v3110 = vpack.c.bf16 %v3109, %v3108
    %v3111 = vpack.c.bf16 %v2958, %v2957
    %3112 = vmatprep.subr.bf16.mxu0 %v609
    %3113 = vmatpush1.bf16.msra.mxu0 %v608
    %3114 = vmatprep.subr.bf16.mxu0 %v605
    %3115 = vmatpush1.bf16.msra.mxu0 %v604
    %3116 = vmatprep.subr.bf16.mxu0 %v601
    %3117 = vmatpush1.bf16.msra.mxu0 %v600
    %3118 = vmatprep.subr.bf16.mxu0 %v597
    %3119 = vmatpush1.bf16.msra.mxu0 %v596
    %3120 = vmatprep.subr.bf16.mxu0 %v593
    %3121 = vmatpush1.bf16.msra.mxu0 %v592
    %3122 = vmatprep.subr.bf16.mxu0 %v589
    %3123 = vmatpush1.bf16.msra.mxu0 %v588
    %3124 = vmatprep.subr.bf16.mxu0 %v585
    %3125 = vmatpush1.bf16.msra.mxu0 %v584
    %3126 = vmatprep.subr.bf16.mxu0 %v581
    %3127 = vmatpush1.bf16.msra.mxu0 %v580
    %3128 = vmatprep.subr.bf16.mxu0 0
    %3129 = vmatpush2.bf16.msra.mxu0 0
    %3130 = vmatprep.subr.bf16.mxu0 0
    %3131 = vmatpush2.bf16.msra.mxu0 0
    %3132 = vmatprep.subr.bf16.mxu0 0
    %3133 = vmatpush2.bf16.msra.mxu0 0
    %3134 = vmatprep.subr.bf16.mxu0 0
    %3135 = vmatpush2.bf16.msra.mxu0 0
    %3136 = vmatprep.subr.bf16.mxu0 0
    %3137 = vmatpush2.bf16.msra.mxu0 0
    %3138 = vmatprep.subr.bf16.mxu0 0
    %3139 = vmatpush2.bf16.msra.mxu0 0
    %3140 = vmatprep.subr.bf16.mxu0 0
    %3141 = vmatpush2.bf16.msra.mxu0 0
    %3142 = vmatprep.subr.bf16.mxu0 0
    %3143 = vmatpush2.bf16.msra.mxu0 0
    %3144 = vmatprep.mubr.bf16.mxu0 0
    %3145 = vmatmul.mubr.bf16.gmra.mxu0 %v3111
    %v3146 = vpop.f32.mrf.mxu0
    %v3147 = vadd.f32 0.0, %v3146
    %v3148 = vpop.f32.mrf.mxu0
    %v3149 = vadd.f32 0.0, %v3148
    %v3150 = vpop.f32.mrf.mxu0
    %v3151 = vadd.f32 0.0, %v3150
    %v3152 = vpop.f32.mrf.mxu0
    %v3153 = vadd.f32 0.0, %v3152
    %3154 = vdwg.mxu0
    %3155 = vmatprep.subr.bf16.mxu0 %v611
    %3156 = vmatpush1.bf16.msra.mxu0 %v610
    %3157 = vmatprep.subr.bf16.mxu0 %v607
    %3158 = vmatpush1.bf16.msra.mxu0 %v606
    %3159 = vmatprep.subr.bf16.mxu0 %v603
    %3160 = vmatpush1.bf16.msra.mxu0 %v602
    %3161 = vmatprep.subr.bf16.mxu0 %v599
    %3162 = vmatpush1.bf16.msra.mxu0 %v598
    %3163 = vmatprep.subr.bf16.mxu0 %v595
    %3164 = vmatpush1.bf16.msra.mxu0 %v594
    %3165 = vmatprep.subr.bf16.mxu0 %v591
    %3166 = vmatpush1.bf16.msra.mxu0 %v590
    %3167 = vmatprep.subr.bf16.mxu0 %v587
    %3168 = vmatpush1.bf16.msra.mxu0 %v586
    %3169 = vmatprep.subr.bf16.mxu0 %v583
    %3170 = vmatpush1.bf16.msra.mxu0 %v582
    %3171 = vmatprep.subr.bf16.mxu0 0
    %3172 = vmatpush2.bf16.msra.mxu0 0
    %3173 = vmatprep.subr.bf16.mxu0 0
    %3174 = vmatpush2.bf16.msra.mxu0 0
    %3175 = vmatprep.subr.bf16.mxu0 0
    %3176 = vmatpush2.bf16.msra.mxu0 0
    %3177 = vmatprep.subr.bf16.mxu0 0
    %3178 = vmatpush2.bf16.msra.mxu0 0
    %3179 = vmatprep.subr.bf16.mxu0 0
    %3180 = vmatpush2.bf16.msra.mxu0 0
    %3181 = vmatprep.subr.bf16.mxu0 0
    %3182 = vmatpush2.bf16.msra.mxu0 0
    %3183 = vmatprep.subr.bf16.mxu0 0
    %3184 = vmatpush2.bf16.msra.mxu0 0
    %3185 = vmatprep.subr.bf16.mxu0 0
    %3186 = vmatpush2.bf16.msra.mxu0 0
    %3187 = vmatprep.mubr.bf16.mxu0 0
    %3188 = vmatmul.mubr.bf16.gmra.mxu0 %v3111
    %v3189 = vpop.f32.mrf.mxu0
    %v3190 = vadd.f32 0.0, %v3189
    %v3191 = vpop.f32.mrf.mxu0
    %v3192 = vadd.f32 0.0, %v3191
    %v3193 = vpop.f32.mrf.mxu0
    %v3194 = vadd.f32 0.0, %v3193
    %v3195 = vpop.f32.mrf.mxu0
    %v3196 = vadd.f32 0.0, %v3195
    %3197 = vdwg.mxu0
    %3198 = vmatprep.subr.bf16.mxu0 %v855
    %3199 = vmatpush1.bf16.msra.mxu0 %v854
    %3200 = vmatprep.subr.bf16.mxu0 %v851
    %3201 = vmatpush1.bf16.msra.mxu0 %v850
    %3202 = vmatprep.subr.bf16.mxu0 %v847
    %3203 = vmatpush1.bf16.msra.mxu0 %v846
    %3204 = vmatprep.subr.bf16.mxu0 %v843
    %3205 = vmatpush1.bf16.msra.mxu0 %v842
    %3206 = vmatprep.subr.bf16.mxu0 %v839
    %3207 = vmatpush1.bf16.msra.mxu0 %v838
    %3208 = vmatprep.subr.bf16.mxu0 %v835
    %3209 = vmatpush1.bf16.msra.mxu0 %v834
    %3210 = vmatprep.subr.bf16.mxu0 %v831
    %3211 = vmatpush1.bf16.msra.mxu0 %v830
    %3212 = vmatprep.subr.bf16.mxu0 %v827
    %3213 = vmatpush1.bf16.msra.mxu0 %v826
    %3214 = vmatprep.subr.bf16.mxu0 0
    %3215 = vmatpush2.bf16.msra.mxu0 0
    %3216 = vmatprep.subr.bf16.mxu0 0
    %3217 = vmatpush2.bf16.msra.mxu0 0
    %3218 = vmatprep.subr.bf16.mxu0 0
    %3219 = vmatpush2.bf16.msra.mxu0 0
    %3220 = vmatprep.subr.bf16.mxu0 0
    %3221 = vmatpush2.bf16.msra.mxu0 0
    %3222 = vmatprep.subr.bf16.mxu0 0
    %3223 = vmatpush2.bf16.msra.mxu0 0
    %3224 = vmatprep.subr.bf16.mxu0 0
    %3225 = vmatpush2.bf16.msra.mxu0 0
    %3226 = vmatprep.subr.bf16.mxu0 0
    %3227 = vmatpush2.bf16.msra.mxu0 0
    %3228 = vmatprep.subr.bf16.mxu0 0
    %3229 = vmatpush2.bf16.msra.mxu0 0
    %3230 = vmatprep.mubr.bf16.mxu0 0
    %3231 = vmatmul.mubr.bf16.gmra.mxu0 %v3110
    %v3232 = vpop.f32.mrf.mxu0
    %v3233 = vadd.f32 %v3147, %v3232
    %v3234 = vpop.f32.mrf.mxu0
    %v3235 = vadd.f32 %v3149, %v3234
    %v3236 = vpop.f32.mrf.mxu0
    %v3237 = vadd.f32 %v3151, %v3236
    %v3238 = vpop.f32.mrf.mxu0
    %v3239 = vadd.f32 %v3153, %v3238
    %3240 = vdwg.mxu0
    %3241 = vmatprep.subr.bf16.mxu0 %v857
    %3242 = vmatpush1.bf16.msra.mxu0 %v856
    %3243 = vmatprep.subr.bf16.mxu0 %v853
    %3244 = vmatpush1.bf16.msra.mxu0 %v852
    %3245 = vmatprep.subr.bf16.mxu0 %v849
    %3246 = vmatpush1.bf16.msra.mxu0 %v848
    %3247 = vmatprep.subr.bf16.mxu0 %v845
    %3248 = vmatpush1.bf16.msra.mxu0 %v844
    %3249 = vmatprep.subr.bf16.mxu0 %v841
    %3250 = vmatpush1.bf16.msra.mxu0 %v840
    %3251 = vmatprep.subr.bf16.mxu0 %v837
    %3252 = vmatpush1.bf16.msra.mxu0 %v836
    %3253 = vmatprep.subr.bf16.mxu0 %v833
    %3254 = vmatpush1.bf16.msra.mxu0 %v832
    %3255 = vmatprep.subr.bf16.mxu0 %v829
    %3256 = vmatpush1.bf16.msra.mxu0 %v828
    %3257 = vmatprep.subr.bf16.mxu0 0
    %3258 = vmatpush2.bf16.msra.mxu0 0
    %3259 = vmatprep.subr.bf16.mxu0 0
    %3260 = vmatpush2.bf16.msra.mxu0 0
    %3261 = vmatprep.subr.bf16.mxu0 0
    %3262 = vmatpush2.bf16.msra.mxu0 0
    %3263 = vmatprep.subr.bf16.mxu0 0
    %3264 = vmatpush2.bf16.msra.mxu0 0
    %3265 = vmatprep.subr.bf16.mxu0 0
    %3266 = vmatpush2.bf16.msra.mxu0 0
    %3267 = vmatprep.subr.bf16.mxu0 0
    %3268 = vmatpush2.bf16.msra.mxu0 0
    %3269 = vmatprep.subr.bf16.mxu0 0
    %3270 = vmatpush2.bf16.msra.mxu0 0
    %3271 = vmatprep.subr.bf16.mxu0 0
    %3272 = vmatpush2.bf16.msra.mxu0 0
    %3273 = vmatprep.mubr.bf16.mxu0 0
    %3274 = vmatmul.mubr.bf16.gmra.mxu0 %v3110
    %v3275 = vpop.f32.mrf.mxu0
    %v3276 = vadd.f32 %v3190, %v3275
    %v3277 = vpop.f32.mrf.mxu0
    %v3278 = vadd.f32 %v3192, %v3277
    %v3279 = vpop.f32.mrf.mxu0
    %v3280 = vadd.f32 %v3194, %v3279
    %v3281 = vpop.f32.mrf.mxu0
    %v3282 = vadd.f32 %v3196, %v3281
    %3283 = vdwg.mxu0
    %v3284 = vadd.f32 %v3233, %v981
    %v3285 = vadd.f32 %v3235, %v985
    %v3286 = vadd.f32 %v3276, %v989
    %v3287 = vadd.f32 %v3278, %v993
    %v3288 = vadd.f32 %v3237, %v981
    %v3289 = vadd.f32 %v3239, %v985
    %v3290 = vadd.f32 %v3280, %v989
    %v3291 = vadd.f32 %v3282, %v993
    %v3292 = vxor.u32 %v3284, 2147483648
    %v3293 = vxor.u32 %v3285, 2147483648
    %v3294 = vxor.u32 %v3286, 2147483648
    %v3295 = vxor.u32 %v3288, 2147483648
    %v3296 = vxor.u32 %v3289, 2147483648
    %v3297 = vxor.u32 %v3290, 2147483648
    %v3298 = vmul.f32 %v3292, 1.442695
    %v3299 = vpow.pop %v3298
    %v3300 = vmul.f32 %v3293, 1.442695
    %v3301 = vpow.pop %v3300
    %v3302 = vmul.f32 %v3294, 1.442695
    %v3303 = vpow.pop %v3302
    %v3304 = vmul.f32 %v3295, 1.442695
    %v3305 = vpow.pop %v3304
    %v3306 = vmul.f32 %v3296, 1.442695
    %v3307 = vpow.pop %v3306
    %v3308 = vmul.f32 %v3297, 1.442695
    %v3309 = vpow.pop %v3308
    %v3310 = vadd.f32 %v3299, 1.0
    %v3311 = vadd.f32 %v3301, 1.0
    %v3312 = vadd.f32 %v3303, 1.0
    %v3313 = vadd.f32 %v3305, 1.0
    %v3314 = vadd.f32 %v3307, 1.0
    %v3315 = vadd.f32 %v3309, 1.0
    %v3316 = vrcp.pop %v3310
    %v3317 = vmul.f32 1.0, %v3316
    %v3318 = vrcp.pop %v3311
    %v3319 = vmul.f32 1.0, %v3318
    %v3320 = vrcp.pop %v3312
    %v3321 = vmul.f32 1.0, %v3320
    %v3322 = vrcp.pop %v3313
    %v3323 = vmul.f32 1.0, %v3322
    %v3324 = vrcp.pop %v3314
    %v3325 = vmul.f32 1.0, %v3324
    %v3326 = vrcp.pop %v3315
    %v3327 = vmul.f32 1.0, %v3326
    %v3328 = vtanh.pop %v3287
    %v3329 = vtanh.pop %v3291
    %v3330 = vmul.f32 %v3319, %v2953
    %v3331 = vmul.f32 %v3325, %v2954
    %v3332 = vmul.f32 %v3317, %v3328
    %v3333 = vmul.f32 %v3323, %v3329
    %v3334 = vadd.f32 %v3330, %v3332
    %v3335 = vadd.f32 %v3331, %v3333
    %v3336 = vtanh.pop %v3334
    %v3337 = vtanh.pop %v3335
    %v3338 = vmul.f32 %v3321, %v3336
    %v3339 = vmul.f32 %v3327, %v3337
    %s3340 = scalar_lea.vmem [#allocation2], 448
    %v3341 = vld [vmem:[%s3340] sm:$0xff]
    %v3342 = vld [vmem:[%s3340 + $0x8] sm:$0xff]
    %v3343 = vld [vmem:[%s3340 + $0x10] sm:$0xff]
    %v3344 = vld [vmem:[%s3340 + $0x18] sm:$0xff]
    %v3345 = vld [vmem:[%s3340 + $0x20] sm:$0xff]
    %v3346 = vld [vmem:[%s3340 + $0x28] sm:$0xff]
    %v3347 = vld [vmem:[%s3340 + $0x30] sm:$0xff]
    %v3348 = vld [vmem:[%s3340 + $0x38] sm:$0xff]
    %3349 = vmatprep.subr.bf16.mxu0 %v242
    %3350 = vmatpush1.bf16.msra.mxu0 %v241
    %3351 = vmatprep.subr.bf16.mxu0 %v238
    %3352 = vmatpush1.bf16.msra.mxu0 %v237
    %3353 = vmatprep.subr.bf16.mxu0 %v234
    %3354 = vmatpush1.bf16.msra.mxu0 %v233
    %3355 = vmatprep.subr.bf16.mxu0 %v230
    %3356 = vmatpush1.bf16.msra.mxu0 %v229
    %3357 = vmatprep.subr.bf16.mxu0 %v226
    %3358 = vmatpush1.bf16.msra.mxu0 %v225
    %3359 = vmatprep.subr.bf16.mxu0 %v222
    %3360 = vmatpush1.bf16.msra.mxu0 %v221
    %3361 = vmatprep.subr.bf16.mxu0 %v218
    %3362 = vmatpush1.bf16.msra.mxu0 %v217
    %3363 = vmatprep.subr.bf16.mxu0 %v214
    %3364 = vmatpush1.bf16.msra.mxu0 %v213
    %3365 = vmatprep.subr.bf16.mxu0 0
    %3366 = vmatpush2.bf16.msra.mxu0 0
    %3367 = vmatprep.subr.bf16.mxu0 0
    %3368 = vmatpush2.bf16.msra.mxu0 0
    %3369 = vmatprep.subr.bf16.mxu0 0
    %3370 = vmatpush2.bf16.msra.mxu0 0
    %3371 = vmatprep.subr.bf16.mxu0 0
    %3372 = vmatpush2.bf16.msra.mxu0 0
    %3373 = vmatprep.subr.bf16.mxu0 0
    %3374 = vmatpush2.bf16.msra.mxu0 0
    %3375 = vmatprep.subr.bf16.mxu0 0
    %3376 = vmatpush2.bf16.msra.mxu0 0
    %3377 = vmatprep.subr.bf16.mxu0 0
    %3378 = vmatpush2.bf16.msra.mxu0 0
    %3379 = vmatprep.subr.bf16.mxu0 0
    %3380 = vmatpush2.bf16.msra.mxu0 0
    %3381 = vmatprep.mubr.bf16.mxu0 0
    %3382 = vmatmul.mubr.bf16.gmra.mxu0 %v3110
    %v3383 = vpop.f32.mrf.mxu0
    %v3384 = vadd.f32 0.0, %v3383
    %v3385 = vpop.f32.mrf.mxu0
    %v3386 = vadd.f32 0.0, %v3385
    %v3387 = vpop.f32.mrf.mxu0
    %v3388 = vadd.f32 0.0, %v3387
    %v3389 = vpop.f32.mrf.mxu0
    %v3390 = vadd.f32 0.0, %v3389
    %3391 = vdwg.mxu0
    %3392 = vmatprep.subr.bf16.mxu0 %v244
    %3393 = vmatpush1.bf16.msra.mxu0 %v243
    %3394 = vmatprep.subr.bf16.mxu0 %v240
    %3395 = vmatpush1.bf16.msra.mxu0 %v239
    %3396 = vmatprep.subr.bf16.mxu0 %v236
    %3397 = vmatpush1.bf16.msra.mxu0 %v235
    %3398 = vmatprep.subr.bf16.mxu0 %v232
    %3399 = vmatpush1.bf16.msra.mxu0 %v231
    %3400 = vmatprep.subr.bf16.mxu0 %v228
    %3401 = vmatpush1.bf16.msra.mxu0 %v227
    %3402 = vmatprep.subr.bf16.mxu0 %v224
    %3403 = vmatpush1.bf16.msra.mxu0 %v223
    %3404 = vmatprep.subr.bf16.mxu0 %v220
    %3405 = vmatpush1.bf16.msra.mxu0 %v219
    %3406 = vmatprep.subr.bf16.mxu0 %v216
    %3407 = vmatpush1.bf16.msra.mxu0 %v215
    %3408 = vmatprep.subr.bf16.mxu0 0
    %3409 = vmatpush2.bf16.msra.mxu0 0
    %3410 = vmatprep.subr.bf16.mxu0 0
    %3411 = vmatpush2.bf16.msra.mxu0 0
    %3412 = vmatprep.subr.bf16.mxu0 0
    %3413 = vmatpush2.bf16.msra.mxu0 0
    %3414 = vmatprep.subr.bf16.mxu0 0
    %3415 = vmatpush2.bf16.msra.mxu0 0
    %3416 = vmatprep.subr.bf16.mxu0 0
    %3417 = vmatpush2.bf16.msra.mxu0 0
    %3418 = vmatprep.subr.bf16.mxu0 0
    %3419 = vmatpush2.bf16.msra.mxu0 0
    %3420 = vmatprep.subr.bf16.mxu0 0
    %3421 = vmatpush2.bf16.msra.mxu0 0
    %3422 = vmatprep.subr.bf16.mxu0 0
    %3423 = vmatpush2.bf16.msra.mxu0 0
    %3424 = vmatprep.mubr.bf16.mxu0 0
    %3425 = vmatmul.mubr.bf16.gmra.mxu0 %v3110
    %v3426 = vpop.f32.mrf.mxu0
    %v3427 = vadd.f32 0.0, %v3426
    %v3428 = vpop.f32.mrf.mxu0
    %v3429 = vadd.f32 0.0, %v3428
    %v3430 = vpop.f32.mrf.mxu0
    %v3431 = vadd.f32 0.0, %v3430
    %v3432 = vpop.f32.mrf.mxu0
    %v3433 = vadd.f32 0.0, %v3432
    %3434 = vdwg.mxu0
    %v3435 = vadd.f32 %v3341, %v3384
    %v3436 = vadd.f32 %v3342, %v3386
    %v3437 = vadd.f32 %v3343, %v3427
    %v3438 = vadd.f32 %v3344, %v3429
    %v3439 = vadd.f32 %v3345, %v3388
    %v3440 = vadd.f32 %v3346, %v3390
    %v3441 = vadd.f32 %v3347, %v3431
    %v3442 = vadd.f32 %v3348, %v3433
    %v3443 = vxor.u32 %v3435, 2147483648
    %v3444 = vxor.u32 %v3436, 2147483648
    %v3445 = vxor.u32 %v3437, 2147483648
    %v3446 = vxor.u32 %v3439, 2147483648
    %v3447 = vxor.u32 %v3440, 2147483648
    %v3448 = vxor.u32 %v3441, 2147483648
    %v3449 = vmul.f32 %v3443, 1.442695
    %v3450 = vpow.pop %v3449
    %v3451 = vmul.f32 %v3444, 1.442695
    %v3452 = vpow.pop %v3451
    %v3453 = vmul.f32 %v3445, 1.442695
    %v3454 = vpow.pop %v3453
    %v3455 = vmul.f32 %v3446, 1.442695
    %v3456 = vpow.pop %v3455
    %v3457 = vmul.f32 %v3447, 1.442695
    %v3458 = vpow.pop %v3457
    %v3459 = vmul.f32 %v3448, 1.442695
    %v3460 = vpow.pop %v3459
    %v3461 = vadd.f32 %v3450, 1.0
    %v3462 = vadd.f32 %v3452, 1.0
    %v3463 = vadd.f32 %v3454, 1.0
    %v3464 = vadd.f32 %v3456, 1.0
    %v3465 = vadd.f32 %v3458, 1.0
    %v3466 = vadd.f32 %v3460, 1.0
    %v3467 = vrcp.pop %v3461
    %v3468 = vmul.f32 1.0, %v3467
    %v3469 = vrcp.pop %v3462
    %v3470 = vmul.f32 1.0, %v3469
    %v3471 = vrcp.pop %v3463
    %v3472 = vmul.f32 1.0, %v3471
    %v3473 = vrcp.pop %v3464
    %v3474 = vmul.f32 1.0, %v3473
    %v3475 = vrcp.pop %v3465
    %v3476 = vmul.f32 1.0, %v3475
    %v3477 = vrcp.pop %v3466
    %v3478 = vmul.f32 1.0, %v3477
    %v3479 = vtanh.pop %v3438
    %v3480 = vtanh.pop %v3442
    %v3481 = vmul.f32 %v3470, %v3104
    %v3482 = vmul.f32 %v3476, %v3105
    %v3483 = vmul.f32 %v3468, %v3479
    %v3484 = vmul.f32 %v3474, %v3480
    %v3485 = vadd.f32 %v3481, %v3483
    %v3486 = vadd.f32 %v3482, %v3484
    %v3487 = vtanh.pop %v3485
    %v3488 = vtanh.pop %v3486
    %v3489 = vmul.f32 %v3472, %v3487
    %v3490 = vmul.f32 %v3478, %v3488
    %v3491 = vpack.c.bf16 %v3490, %v3489
    %v3492 = vpack.c.bf16 %v3339, %v3338
    %3493 = vmatprep.subr.bf16.mxu0 %v609
    %3494 = vmatpush1.bf16.msra.mxu0 %v608
    %3495 = vmatprep.subr.bf16.mxu0 %v605
    %3496 = vmatpush1.bf16.msra.mxu0 %v604
    %3497 = vmatprep.subr.bf16.mxu0 %v601
    %3498 = vmatpush1.bf16.msra.mxu0 %v600
    %3499 = vmatprep.subr.bf16.mxu0 %v597
    %3500 = vmatpush1.bf16.msra.mxu0 %v596
    %3501 = vmatprep.subr.bf16.mxu0 %v593
    %3502 = vmatpush1.bf16.msra.mxu0 %v592
    %3503 = vmatprep.subr.bf16.mxu0 %v589
    %3504 = vmatpush1.bf16.msra.mxu0 %v588
    %3505 = vmatprep.subr.bf16.mxu0 %v585
    %3506 = vmatpush1.bf16.msra.mxu0 %v584
    %3507 = vmatprep.subr.bf16.mxu0 %v581
    %3508 = vmatpush1.bf16.msra.mxu0 %v580
    %3509 = vmatprep.subr.bf16.mxu0 0
    %3510 = vmatpush2.bf16.msra.mxu0 0
    %3511 = vmatprep.subr.bf16.mxu0 0
    %3512 = vmatpush2.bf16.msra.mxu0 0
    %3513 = vmatprep.subr.bf16.mxu0 0
    %3514 = vmatpush2.bf16.msra.mxu0 0
    %3515 = vmatprep.subr.bf16.mxu0 0
    %3516 = vmatpush2.bf16.msra.mxu0 0
    %3517 = vmatprep.subr.bf16.mxu0 0
    %3518 = vmatpush2.bf16.msra.mxu0 0
    %3519 = vmatprep.subr.bf16.mxu0 0
    %3520 = vmatpush2.bf16.msra.mxu0 0
    %3521 = vmatprep.subr.bf16.mxu0 0
    %3522 = vmatpush2.bf16.msra.mxu0 0
    %3523 = vmatprep.subr.bf16.mxu0 0
    %3524 = vmatpush2.bf16.msra.mxu0 0
    %3525 = vmatprep.mubr.bf16.mxu0 0
    %3526 = vmatmul.mubr.bf16.gmra.mxu0 %v3492
    %v3527 = vpop.f32.mrf.mxu0
    %v3528 = vadd.f32 0.0, %v3527
    %v3529 = vpop.f32.mrf.mxu0
    %v3530 = vadd.f32 0.0, %v3529
    %v3531 = vpop.f32.mrf.mxu0
    %v3532 = vadd.f32 0.0, %v3531
    %v3533 = vpop.f32.mrf.mxu0
    %v3534 = vadd.f32 0.0, %v3533
    %3535 = vdwg.mxu0
    %3536 = vmatprep.subr.bf16.mxu0 %v611
    %3537 = vmatpush1.bf16.msra.mxu0 %v610
    %3538 = vmatprep.subr.bf16.mxu0 %v607
    %3539 = vmatpush1.bf16.msra.mxu0 %v606
    %3540 = vmatprep.subr.bf16.mxu0 %v603
    %3541 = vmatpush1.bf16.msra.mxu0 %v602
    %3542 = vmatprep.subr.bf16.mxu0 %v599
    %3543 = vmatpush1.bf16.msra.mxu0 %v598
    %3544 = vmatprep.subr.bf16.mxu0 %v595
    %3545 = vmatpush1.bf16.msra.mxu0 %v594
    %3546 = vmatprep.subr.bf16.mxu0 %v591
    %3547 = vmatpush1.bf16.msra.mxu0 %v590
    %3548 = vmatprep.subr.bf16.mxu0 %v587
    %3549 = vmatpush1.bf16.msra.mxu0 %v586
    %3550 = vmatprep.subr.bf16.mxu0 %v583
    %3551 = vmatpush1.bf16.msra.mxu0 %v582
    %3552 = vmatprep.subr.bf16.mxu0 0
    %3553 = vmatpush2.bf16.msra.mxu0 0
    %3554 = vmatprep.subr.bf16.mxu0 0
    %3555 = vmatpush2.bf16.msra.mxu0 0
    %3556 = vmatprep.subr.bf16.mxu0 0
    %3557 = vmatpush2.bf16.msra.mxu0 0
    %3558 = vmatprep.subr.bf16.mxu0 0
    %3559 = vmatpush2.bf16.msra.mxu0 0
    %3560 = vmatprep.subr.bf16.mxu0 0
    %3561 = vmatpush2.bf16.msra.mxu0 0
    %3562 = vmatprep.subr.bf16.mxu0 0
    %3563 = vmatpush2.bf16.msra.mxu0 0
    %3564 = vmatprep.subr.bf16.mxu0 0
    %3565 = vmatpush2.bf16.msra.mxu0 0
    %3566 = vmatprep.subr.bf16.mxu0 0
    %3567 = vmatpush2.bf16.msra.mxu0 0
    %3568 = vmatprep.mubr.bf16.mxu0 0
    %3569 = vmatmul.mubr.bf16.gmra.mxu0 %v3492
    %v3570 = vpop.f32.mrf.mxu0
    %v3571 = vadd.f32 0.0, %v3570
    %v3572 = vpop.f32.mrf.mxu0
    %v3573 = vadd.f32 0.0, %v3572
    %v3574 = vpop.f32.mrf.mxu0
    %v3575 = vadd.f32 0.0, %v3574
    %v3576 = vpop.f32.mrf.mxu0
    %v3577 = vadd.f32 0.0, %v3576
    %3578 = vdwg.mxu0
    %3579 = vmatprep.subr.bf16.mxu0 %v855
    %3580 = vmatpush1.bf16.msra.mxu0 %v854
    %3581 = vmatprep.subr.bf16.mxu0 %v851
    %3582 = vmatpush1.bf16.msra.mxu0 %v850
    %3583 = vmatprep.subr.bf16.mxu0 %v847
    %3584 = vmatpush1.bf16.msra.mxu0 %v846
    %3585 = vmatprep.subr.bf16.mxu0 %v843
    %3586 = vmatpush1.bf16.msra.mxu0 %v842
    %3587 = vmatprep.subr.bf16.mxu0 %v839
    %3588 = vmatpush1.bf16.msra.mxu0 %v838
    %3589 = vmatprep.subr.bf16.mxu0 %v835
    %3590 = vmatpush1.bf16.msra.mxu0 %v834
    %3591 = vmatprep.subr.bf16.mxu0 %v831
    %3592 = vmatpush1.bf16.msra.mxu0 %v830
    %3593 = vmatprep.subr.bf16.mxu0 %v827
    %3594 = vmatpush1.bf16.msra.mxu0 %v826
    %3595 = vmatprep.subr.bf16.mxu0 0
    %3596 = vmatpush2.bf16.msra.mxu0 0
    %3597 = vmatprep.subr.bf16.mxu0 0
    %3598 = vmatpush2.bf16.msra.mxu0 0
    %3599 = vmatprep.subr.bf16.mxu0 0
    %3600 = vmatpush2.bf16.msra.mxu0 0
    %3601 = vmatprep.subr.bf16.mxu0 0
    %3602 = vmatpush2.bf16.msra.mxu0 0
    %3603 = vmatprep.subr.bf16.mxu0 0
    %3604 = vmatpush2.bf16.msra.mxu0 0
    %3605 = vmatprep.subr.bf16.mxu0 0
    %3606 = vmatpush2.bf16.msra.mxu0 0
    %3607 = vmatprep.subr.bf16.mxu0 0
    %3608 = vmatpush2.bf16.msra.mxu0 0
    %3609 = vmatprep.subr.bf16.mxu0 0
    %3610 = vmatpush2.bf16.msra.mxu0 0
    %3611 = vmatprep.mubr.bf16.mxu0 0
    %3612 = vmatmul.mubr.bf16.gmra.mxu0 %v3491
    %v3613 = vpop.f32.mrf.mxu0
    %v3614 = vadd.f32 %v3528, %v3613
    %v3615 = vpop.f32.mrf.mxu0
    %v3616 = vadd.f32 %v3530, %v3615
    %v3617 = vpop.f32.mrf.mxu0
    %v3618 = vadd.f32 %v3532, %v3617
    %v3619 = vpop.f32.mrf.mxu0
    %v3620 = vadd.f32 %v3534, %v3619
    %3621 = vdwg.mxu0
    %3622 = vmatprep.subr.bf16.mxu0 %v857
    %3623 = vmatpush1.bf16.msra.mxu0 %v856
    %3624 = vmatprep.subr.bf16.mxu0 %v853
    %3625 = vmatpush1.bf16.msra.mxu0 %v852
    %3626 = vmatprep.subr.bf16.mxu0 %v849
    %3627 = vmatpush1.bf16.msra.mxu0 %v848
    %3628 = vmatprep.subr.bf16.mxu0 %v845
    %3629 = vmatpush1.bf16.msra.mxu0 %v844
    %3630 = vmatprep.subr.bf16.mxu0 %v841
    %3631 = vmatpush1.bf16.msra.mxu0 %v840
    %3632 = vmatprep.subr.bf16.mxu0 %v837
    %3633 = vmatpush1.bf16.msra.mxu0 %v836
    %3634 = vmatprep.subr.bf16.mxu0 %v833
    %3635 = vmatpush1.bf16.msra.mxu0 %v832
    %3636 = vmatprep.subr.bf16.mxu0 %v829
    %3637 = vmatpush1.bf16.msra.mxu0 %v828
    %3638 = vmatprep.subr.bf16.mxu0 0
    %3639 = vmatpush2.bf16.msra.mxu0 0
    %3640 = vmatprep.subr.bf16.mxu0 0
    %3641 = vmatpush2.bf16.msra.mxu0 0
    %3642 = vmatprep.subr.bf16.mxu0 0
    %3643 = vmatpush2.bf16.msra.mxu0 0
    %3644 = vmatprep.subr.bf16.mxu0 0
    %3645 = vmatpush2.bf16.msra.mxu0 0
    %3646 = vmatprep.subr.bf16.mxu0 0
    %3647 = vmatpush2.bf16.msra.mxu0 0
    %3648 = vmatprep.subr.bf16.mxu0 0
    %3649 = vmatpush2.bf16.msra.mxu0 0
    %3650 = vmatprep.subr.bf16.mxu0 0
    %3651 = vmatpush2.bf16.msra.mxu0 0
    %3652 = vmatprep.subr.bf16.mxu0 0
    %3653 = vmatpush2.bf16.msra.mxu0 0
    %3654 = vmatprep.mubr.bf16.mxu0 0
    %3655 = vmatmul.mubr.bf16.gmra.mxu0 %v3491
    %v3656 = vpop.f32.mrf.mxu0
    %v3657 = vadd.f32 %v3571, %v3656
    %v3658 = vpop.f32.mrf.mxu0
    %v3659 = vadd.f32 %v3573, %v3658
    %v3660 = vpop.f32.mrf.mxu0
    %v3661 = vadd.f32 %v3575, %v3660
    %v3662 = vpop.f32.mrf.mxu0
    %v3663 = vadd.f32 %v3577, %v3662
    %3664 = vdwg.mxu0
    %v3665 = vadd.f32 %v3614, %v981
    %v3666 = vadd.f32 %v3616, %v985
    %v3667 = vadd.f32 %v3657, %v989
    %v3668 = vadd.f32 %v3659, %v993
    %v3669 = vadd.f32 %v3618, %v981
    %v3670 = vadd.f32 %v3620, %v985
    %v3671 = vadd.f32 %v3661, %v989
    %v3672 = vadd.f32 %v3663, %v993
    %v3673 = vxor.u32 %v3665, 2147483648
    %v3674 = vxor.u32 %v3666, 2147483648
    %v3675 = vxor.u32 %v3667, 2147483648
    %v3676 = vxor.u32 %v3669, 2147483648
    %v3677 = vxor.u32 %v3670, 2147483648
    %v3678 = vxor.u32 %v3671, 2147483648
    %v3679 = vmul.f32 %v3673, 1.442695
    %v3680 = vpow.pop %v3679
    %v3681 = vmul.f32 %v3674, 1.442695
    %v3682 = vpow.pop %v3681
    %v3683 = vmul.f32 %v3675, 1.442695
    %v3684 = vpow.pop %v3683
    %v3685 = vmul.f32 %v3676, 1.442695
    %v3686 = vpow.pop %v3685
    %v3687 = vmul.f32 %v3677, 1.442695
    %v3688 = vpow.pop %v3687
    %v3689 = vmul.f32 %v3678, 1.442695
    %v3690 = vpow.pop %v3689
    %v3691 = vadd.f32 %v3680, 1.0
    %v3692 = vadd.f32 %v3682, 1.0
    %v3693 = vadd.f32 %v3684, 1.0
    %v3694 = vadd.f32 %v3686, 1.0
    %v3695 = vadd.f32 %v3688, 1.0
    %v3696 = vadd.f32 %v3690, 1.0
    %v3697 = vrcp.pop %v3691
    %v3698 = vmul.f32 1.0, %v3697
    %v3699 = vrcp.pop %v3692
    %v3700 = vmul.f32 1.0, %v3699
    %v3701 = vrcp.pop %v3693
    %v3702 = vmul.f32 1.0, %v3701
    %v3703 = vrcp.pop %v3694
    %v3704 = vmul.f32 1.0, %v3703
    %v3705 = vrcp.pop %v3695
    %v3706 = vmul.f32 1.0, %v3705
    %v3707 = vrcp.pop %v3696
    %v3708 = vmul.f32 1.0, %v3707
    %v3709 = vtanh.pop %v3668
    %v3710 = vtanh.pop %v3672
    %v3711 = vmul.f32 %v3700, %v3334
    %v3712 = vmul.f32 %v3706, %v3335
    %v3713 = vmul.f32 %v3698, %v3709
    %v3714 = vmul.f32 %v3704, %v3710
    %v3715 = vadd.f32 %v3711, %v3713
    %v3716 = vadd.f32 %v3712, %v3714
    %v3717 = vtanh.pop %v3715
    %v3718 = vtanh.pop %v3716
    %v3719 = vmul.f32 %v3702, %v3717
    %v3720 = vmul.f32 %v3708, %v3718
    %3721 = vst [vmem:[#allocation10] sm:$0xff] %v3719
    %3722 = vst [vmem:[#allocation10 + $0x8] sm:$0xff] %v3720
    // Predicated region
    $region38: #{tpu_custom_call.1} parent=1 // pred_check
      _
    $region39: #{tpu_custom_call.1} parent=1 // pred_check_branch
      %3724 = sbr.rel (0) target = $region41
    $region40: #{tpu_custom_call.1} parent=1 // pred_region
      %s3726 = ssub.s32 256, 256
      %3727 = vsyncadd [#allocation4], %s3726
      %s3728 = sshll.u32 [#allocation10], 4
      %s3729 = int_to_ptr.vmem [resolvable:$true] %s3728
      %3734 = dma.vmem_to_hbm [thread:$0]  %s3729, 256, %s5, [#allocation4], 128, 128, 8
    $region41: #{tpu_custom_call.1} parent=1 // pred_fallthru
      _
    // Predicated region
    $region42: #{tpu_custom_call.1} parent=1 // pred_check
      _
    $region43: #{tpu_custom_call.1} parent=1 // pred_check_branch
      %3736 = sbr.rel (0) target = $region45
    $region44: #{tpu_custom_call.1} parent=1 // pred_region
      %3737 = dma.done [#allocation4], 256
    $region45: #{tpu_custom_call.1} parent=1 // pred_fallthru
      _
    %3738 = vsyncpa [#allocation3], 1
    %3739 = vsyncpa [#allocation6], 1
    %3740 = vsyncpa [#allocation9], 1
    %3741 = vsyncpa [#allocation4], 1

</llo_original>
